<compile_context>
chip_gen: v6e
topology: v6e:2x2x1
jax: 0.10.0
libtpu: 0.0.40
codegen_flags: <defaults>
</compile_context>

<pallas_src>
import jax
import jax.numpy as jnp
from jax.experimental import pallas as pl
from jax.experimental.pallas import tpu as pltpu

# Module hyper-parameters (from the PyTorch source).
N_HEAD = 6
HEAD_SIZE = 64
N_EMBD = N_HEAD * HEAD_SIZE  # 384


def _make_mha_kernel(B, T, H, D, C):
    def kernel(x_ref, wqkv_ref, wp_ref, bp_ref, mask_ref, o_ref):
        x = x_ref[...]  # (B*T, C) bf16

        # --- Fused QKV projection: single lane-dense matmul (B*T, C) @ (C, 3*H*D).
        #     Attention scale is already folded into the Q columns of wqkv.
        qkv = jnp.dot(x, wqkv_ref[...],
                      preferred_element_type=jnp.float32).astype(jnp.bfloat16)  # (B*T, 3HD)

        mask = mask_ref[...]  # (T, T) f32 additive causal bias (0 / -1e30)

        # --- Per-(batch, head) attention on static slices of the qkv slab.
        #     No head-major relayout of the whole slab; each slice is tiny.
        batch_outs = []
        for b in range(B):
            r0 = b * T
            head_outs = []
            for h in range(H):
                q = qkv[r0:r0 + T, h * D:(h + 1) * D]                    # (T, D) bf16
                k = qkv[r0:r0 + T, (H + h) * D:(H + h + 1) * D]          # (T, D) bf16
                v = qkv[r0:r0 + T, (2 * H + h) * D:(2 * H + h + 1) * D]  # (T, D) bf16

                s = jnp.einsum('td,sd->ts', q, k,
                               preferred_element_type=jnp.float32) + mask  # (T, T) f32

                # Softmax over keys (f32 math; reciprocal goes to the EUP slot).
                m = jnp.max(s, axis=-1, keepdims=True)
                e = jnp.exp(s - m)
                denom = jnp.sum(e, axis=-1, keepdims=True)
                p = (e * pl.reciprocal(denom, approx=True)).astype(jnp.bfloat16)

                head_outs.append(
                    jnp.dot(p, v,
                            preferred_element_type=jnp.float32).astype(jnp.bfloat16))  # (T, D)
            batch_outs.append(jnp.concatenate(head_outs, axis=-1))       # (T, H*D)
        att = jnp.concatenate(batch_outs, axis=0)                         # (B*T, H*D) bf16

        # --- Output projection: head-concat folded into MXU K accumulation.
        #     One lane-dense matmul (B*T, H*D) @ (H*D, C) + bias.
        y = jnp.dot(att, wp_ref[...],
                    preferred_element_type=jnp.float32) + bp_ref[...]     # (B*T, C) f32
        o_ref[...] = y.astype(o_ref.dtype)

    return kernel


def pack_params(wq, wk, wv, w_proj, b_proj):
    """One-time weight packing (call at init, NOT per forward).

    wq/wk/wv: (H, C, D); w_proj: (C_out, C_in); b_proj: (C_out,).
    Returns bf16-packed (C, 3*H*D) QKV weight (scale folded into Q columns),
    bf16 (H*D, C) W_proj.T, and f32 (1, C) bias.
    """
    H, C, D = wq.shape
    scale = float(C) ** -0.5  # NOTE: PyTorch module scales by full C, not head_size.

    def _flat(w):  # (H, C, D) -> (C, H*D), column h*D+d == head h, dim d
        return jnp.transpose(w, (1, 0, 2)).reshape(C, H * D)

    w_qkv = jnp.concatenate([_flat(wq) * scale, _flat(wk), _flat(wv)],
                            axis=-1).astype(jnp.bfloat16)              # (C, 3*H*D)
    w_proj_t = jnp.transpose(w_proj).astype(jnp.bfloat16)              # (H*D, C)
    b_p = b_proj.reshape(1, C).astype(jnp.float32)                     # (1, C)
    return w_qkv, w_proj_t, b_p


def make_causal_bias(T):
    keep = jnp.tril(jnp.ones((T, T), dtype=bool))
    return jnp.where(keep, 0.0, -1e30).astype(jnp.float32)             # (T, T)


def multi_head_attention(x, w_qkv, w_proj_t, b_proj, mask):
    """x: (B, T, C); packed weights from pack_params; mask: (T, T) additive bias."""
    B, T, C = x.shape
    H, D = N_HEAD, HEAD_SIZE

    x_flat = x.reshape(B * T, C).astype(jnp.bfloat16)
    kernel = _make_mha_kernel(B, T, H, D, C)

    out_flat = pl.pallas_call(
        kernel,
        out_shape=jax.ShapeDtypeStruct((B * T, C), x.dtype),
        grid_spec=pltpu.PrefetchScalarGridSpec(
            num_scalar_prefetch=0,
            grid=(1,),
            in_specs=[
                pl.BlockSpec((B * T, C), lambda i: (0, 0)),        # x (flattened batch)
                pl.BlockSpec((C, 3 * H * D), lambda i: (0, 0)),    # packed QKV weight
                pl.BlockSpec((H * D, C), lambda i: (0, 0)),        # W_proj.T
                pl.BlockSpec((1, C), lambda i: (0, 0)),            # bias
                pl.BlockSpec((T, T), lambda i: (0, 0)),            # additive causal mask
            ],
            out_specs=pl.BlockSpec((B * T, C), lambda i: (0, 0)),
        ),
        compiler_params=pltpu.CompilerParams(
            dimension_semantics=("arbitrary",)),
    )(x_flat, w_qkv, w_proj_t, b_proj, mask)

    return out_flat.reshape(B, T, C)


def reference(x, wq, wk, wv, w_proj, b_proj):
    """Plain-JAX f32 reference mirroring the PyTorch forward (eval mode)."""
    B, T, C = x.shape
    q = jnp.einsum('btc,hcd->bhtd', x, wq)
    k = jnp.einsum('btc,hcd->bhtd', x, wk)
    v = jnp.einsum('btc,hcd->bhtd', x, wv)
    s = jnp.einsum('bhtd,bhsd->bhts', q, k) * (C ** -0.5)
    tril = jnp.tril(jnp.ones((T, T), dtype=bool))
    s = jnp.where(tril[None, None], s, -jnp.inf)
    p = jax.nn.softmax(s, axis=-1)
    out = jnp.einsum('bhts,bhsd->bthd', p, v).reshape(B, T, C)
    return out @ w_proj.T + b_proj


if __name__ == "__main__":
    B, T = 2, 16
    C, H, D = N_EMBD, N_HEAD, HEAD_SIZE

    key = jax.random.PRNGKey(0)
    kx, kq, kk, kv, kp, kb = jax.random.split(key, 6)

    # Deterministic parameter init (PyTorch Linear-style uniform bounds).
    bound_in = 1.0 / (C ** 0.5)
    x = jax.random.normal(kx, (B, T, C), dtype=jnp.float32)
    wq = jax.random.uniform(kq, (H, C, D), jnp.float32, -bound_in, bound_in)
    wk = jax.random.uniform(kk, (H, C, D), jnp.float32, -bound_in, bound_in)
    wv = jax.random.uniform(kv, (H, C, D), jnp.float32, -bound_in, bound_in)
    w_proj = jax.random.uniform(kp, (C, C), jnp.float32, -bound_in, bound_in)
    b_proj = jax.random.uniform(kb, (C,), jnp.float32, -bound_in, bound_in)

    # One-time packing (hoisted out of the forward path).
    w_qkv, w_proj_t, b_p = pack_params(wq, wk, wv, w_proj, b_proj)
    mask = make_causal_bias(T)

    out = multi_head_attention(x, w_qkv, w_proj_t, b_p, mask)
    out = jax.block_until_ready(out)

    ref = reference(x, wq, wk, wv, w_proj, b_proj)
    max_err = float(jnp.max(jnp.abs(out - ref)))
    assert max_err < 5e-2, f"mismatch vs reference: {max_err}"
    print("KERNEL_OK")
</pallas_src>

<mosaic_0001>
module attributes {stable_mosaic.version = 11 : i64} {
  func.func @kernel(%arg0: i32, %arg1: memref<32x384xbf16, #tpu.memory_space<vmem>>, %arg2: memref<384x1152xbf16, #tpu.memory_space<vmem>>, %arg3: memref<384x384xbf16, #tpu.memory_space<vmem>>, %arg4: memref<1x384xf32, #tpu.memory_space<vmem>>, %arg5: memref<16x16xf32, #tpu.memory_space<vmem>>, %arg6: memref<32x384xf32, #tpu.memory_space<vmem>>) attributes {dimension_semantics = [#tpu.dimension_semantics<arbitrary>], iteration_bounds = array<i64: 1>, scalar_prefetch = 0 : i64, scratch_operands = 0 : i64, tpu.core_type = #tpu.core_type<tc>, window_params = [{pipeline_mode = #tpu.pipeline_mode<synchronous>, transform_indices = @transform_0, window_bounds = array<i64: 32, 384>}, {pipeline_mode = #tpu.pipeline_mode<synchronous>, transform_indices = @transform_1, window_bounds = array<i64: 384, 1152>}, {pipeline_mode = #tpu.pipeline_mode<synchronous>, transform_indices = @transform_2, window_bounds = array<i64: 384, 384>}, {pipeline_mode = #tpu.pipeline_mode<synchronous>, transform_indices = @transform_3, window_bounds = array<i64: 1, 384>}, {pipeline_mode = #tpu.pipeline_mode<synchronous>, transform_indices = @transform_4, window_bounds = array<i64: 16, 16>}, {pipeline_mode = #tpu.pipeline_mode<synchronous>, transform_indices = @transform_5, window_bounds = array<i64: 32, 384>}]} {
    %c0 = arith.constant 0 : index
    %c0_0 = arith.constant 0 : index
    %0 = vector.load %arg1[%c0, %c0_0] : memref<32x384xbf16, #tpu.memory_space<vmem>>, vector<32x384xbf16>
    %c0_1 = arith.constant 0 : index
    %c0_2 = arith.constant 0 : index
    %1 = vector.load %arg2[%c0_1, %c0_2] : memref<384x1152xbf16, #tpu.memory_space<vmem>>, vector<384x1152xbf16>
    %cst = arith.constant dense<0.000000e+00> : vector<32x1152xf32>
    %2 = tpu.matmul %0, %1, %cst {dimension_numbers = #tpu.dot_dimension_numbers<[1], [0], [0], [1], [0, 0, 1, 1], [], []>} : vector<32x384xbf16>, vector<384x1152xbf16>, vector<32x1152xf32> -> vector<32x1152xf32>
    %3 = arith.truncf %2 : vector<32x1152xf32> to vector<32x1152xbf16>
    %c0_3 = arith.constant 0 : index
    %c0_4 = arith.constant 0 : index
    %4 = vector.load %arg5[%c0_3, %c0_4] : memref<16x16xf32, #tpu.memory_space<vmem>>, vector<16x16xf32>
    %5 = vector.extract_strided_slice %3 {offsets = [0, 0], sizes = [16, 64], strides = [1, 1]} : vector<32x1152xbf16> to vector<16x64xbf16>
    %6 = vector.extract_strided_slice %3 {offsets = [0, 384], sizes = [16, 64], strides = [1, 1]} : vector<32x1152xbf16> to vector<16x64xbf16>
    %7 = vector.extract_strided_slice %3 {offsets = [0, 768], sizes = [16, 64], strides = [1, 1]} : vector<32x1152xbf16> to vector<16x64xbf16>
    "tpu.trace_start"() <{level = 10 : i32, message = "td,sd->ts"}> : () -> ()
    %cst_5 = arith.constant dense<0.000000e+00> : vector<16x16xf32>
    %8 = tpu.matmul %5, %6, %cst_5 {dimension_numbers = #tpu.dot_dimension_numbers<[1], [1], [0], [0], [0, 0, 1, 0], [], []>} : vector<16x64xbf16>, vector<16x64xbf16>, vector<16x16xf32> -> vector<16x16xf32>
    "tpu.trace_stop"() : () -> ()
    %9 = arith.addf %8, %4 : vector<16x16xf32>
    %cst_6 = arith.constant dense<0xFF800000> : vector<16xf32>
    %10 = vector.multi_reduction <maximumf>, %9, %cst_6 [1] : vector<16x16xf32> to vector<16xf32>
    %11 = vector.shape_cast %10 : vector<16xf32> to vector<16x1xf32>
    %12 = vector.broadcast %11 : vector<16x1xf32> to vector<16x16xf32>
    %13 = arith.subf %9, %12 : vector<16x16xf32>
    %14 = math.exp %13 : vector<16x16xf32>
    %cst_7 = arith.constant dense<0.000000e+00> : vector<16xf32>
    %15 = vector.multi_reduction <add>, %14, %cst_7 [1] : vector<16x16xf32> to vector<16xf32>
    %16 = vector.shape_cast %15 : vector<16xf32> to vector<16x1xf32>
    %17 = tpu.reciprocal %16 {approx = true} : vector<16x1xf32> -> vector<16x1xf32>
    %18 = vector.broadcast %17 : vector<16x1xf32> to vector<16x16xf32>
    %19 = arith.mulf %14, %18 : vector<16x16xf32>
    %20 = arith.truncf %19 : vector<16x16xf32> to vector<16x16xbf16>
    %cst_8 = arith.constant dense<0.000000e+00> : vector<16x64xf32>
    %21 = tpu.matmul %20, %7, %cst_8 {dimension_numbers = #tpu.dot_dimension_numbers<[1], [0], [0], [1], [0, 0, 1, 1], [], []>} : vector<16x16xbf16>, vector<16x64xbf16>, vector<16x64xf32> -> vector<16x64xf32>
    %22 = arith.truncf %21 : vector<16x64xf32> to vector<16x64xbf16>
    %23 = vector.extract_strided_slice %3 {offsets = [0, 64], sizes = [16, 64], strides = [1, 1]} : vector<32x1152xbf16> to vector<16x64xbf16>
    %24 = vector.extract_strided_slice %3 {offsets = [0, 448], sizes = [16, 64], strides = [1, 1]} : vector<32x1152xbf16> to vector<16x64xbf16>
    %25 = vector.extract_strided_slice %3 {offsets = [0, 832], sizes = [16, 64], strides = [1, 1]} : vector<32x1152xbf16> to vector<16x64xbf16>
    "tpu.trace_start"() <{level = 10 : i32, message = "td,sd->ts"}> : () -> ()
    %cst_9 = arith.constant dense<0.000000e+00> : vector<16x16xf32>
    %26 = tpu.matmul %23, %24, %cst_9 {dimension_numbers = #tpu.dot_dimension_numbers<[1], [1], [0], [0], [0, 0, 1, 0], [], []>} : vector<16x64xbf16>, vector<16x64xbf16>, vector<16x16xf32> -> vector<16x16xf32>
    "tpu.trace_stop"() : () -> ()
    %27 = arith.addf %26, %4 : vector<16x16xf32>
    %cst_10 = arith.constant dense<0xFF800000> : vector<16xf32>
    %28 = vector.multi_reduction <maximumf>, %27, %cst_10 [1] : vector<16x16xf32> to vector<16xf32>
    %29 = vector.shape_cast %28 : vector<16xf32> to vector<16x1xf32>
    %30 = vector.broadcast %29 : vector<16x1xf32> to vector<16x16xf32>
    %31 = arith.subf %27, %30 : vector<16x16xf32>
    %32 = math.exp %31 : vector<16x16xf32>
    %cst_11 = arith.constant dense<0.000000e+00> : vector<16xf32>
    %33 = vector.multi_reduction <add>, %32, %cst_11 [1] : vector<16x16xf32> to vector<16xf32>
    %34 = vector.shape_cast %33 : vector<16xf32> to vector<16x1xf32>
    %35 = tpu.reciprocal %34 {approx = true} : vector<16x1xf32> -> vector<16x1xf32>
    %36 = vector.broadcast %35 : vector<16x1xf32> to vector<16x16xf32>
    %37 = arith.mulf %32, %36 : vector<16x16xf32>
    %38 = arith.truncf %37 : vector<16x16xf32> to vector<16x16xbf16>
    %cst_12 = arith.constant dense<0.000000e+00> : vector<16x64xf32>
    %39 = tpu.matmul %38, %25, %cst_12 {dimension_numbers = #tpu.dot_dimension_numbers<[1], [0], [0], [1], [0, 0, 1, 1], [], []>} : vector<16x16xbf16>, vector<16x64xbf16>, vector<16x64xf32> -> vector<16x64xf32>
    %40 = arith.truncf %39 : vector<16x64xf32> to vector<16x64xbf16>
    %41 = vector.extract_strided_slice %3 {offsets = [0, 128], sizes = [16, 64], strides = [1, 1]} : vector<32x1152xbf16> to vector<16x64xbf16>
    %42 = vector.extract_strided_slice %3 {offsets = [0, 512], sizes = [16, 64], strides = [1, 1]} : vector<32x1152xbf16> to vector<16x64xbf16>
    %43 = vector.extract_strided_slice %3 {offsets = [0, 896], sizes = [16, 64], strides = [1, 1]} : vector<32x1152xbf16> to vector<16x64xbf16>
    "tpu.trace_start"() <{level = 10 : i32, message = "td,sd->ts"}> : () -> ()
    %cst_13 = arith.constant dense<0.000000e+00> : vector<16x16xf32>
    %44 = tpu.matmul %41, %42, %cst_13 {dimension_numbers = #tpu.dot_dimension_numbers<[1], [1], [0], [0], [0, 0, 1, 0], [], []>} : vector<16x64xbf16>, vector<16x64xbf16>, vector<16x16xf32> -> vector<16x16xf32>
    "tpu.trace_stop"() : () -> ()
    %45 = arith.addf %44, %4 : vector<16x16xf32>
    %cst_14 = arith.constant dense<0xFF800000> : vector<16xf32>
    %46 = vector.multi_reduction <maximumf>, %45, %cst_14 [1] : vector<16x16xf32> to vector<16xf32>
    %47 = vector.shape_cast %46 : vector<16xf32> to vector<16x1xf32>
    %48 = vector.broadcast %47 : vector<16x1xf32> to vector<16x16xf32>
    %49 = arith.subf %45, %48 : vector<16x16xf32>
    %50 = math.exp %49 : vector<16x16xf32>
    %cst_15 = arith.constant dense<0.000000e+00> : vector<16xf32>
    %51 = vector.multi_reduction <add>, %50, %cst_15 [1] : vector<16x16xf32> to vector<16xf32>
    %52 = vector.shape_cast %51 : vector<16xf32> to vector<16x1xf32>
    %53 = tpu.reciprocal %52 {approx = true} : vector<16x1xf32> -> vector<16x1xf32>
    %54 = vector.broadcast %53 : vector<16x1xf32> to vector<16x16xf32>
    %55 = arith.mulf %50, %54 : vector<16x16xf32>
    %56 = arith.truncf %55 : vector<16x16xf32> to vector<16x16xbf16>
    %cst_16 = arith.constant dense<0.000000e+00> : vector<16x64xf32>
    %57 = tpu.matmul %56, %43, %cst_16 {dimension_numbers = #tpu.dot_dimension_numbers<[1], [0], [0], [1], [0, 0, 1, 1], [], []>} : vector<16x16xbf16>, vector<16x64xbf16>, vector<16x64xf32> -> vector<16x64xf32>
    %58 = arith.truncf %57 : vector<16x64xf32> to vector<16x64xbf16>
    %59 = vector.extract_strided_slice %3 {offsets = [0, 192], sizes = [16, 64], strides = [1, 1]} : vector<32x1152xbf16> to vector<16x64xbf16>
    %60 = vector.extract_strided_slice %3 {offsets = [0, 576], sizes = [16, 64], strides = [1, 1]} : vector<32x1152xbf16> to vector<16x64xbf16>
    %61 = vector.extract_strided_slice %3 {offsets = [0, 960], sizes = [16, 64], strides = [1, 1]} : vector<32x1152xbf16> to vector<16x64xbf16>
    "tpu.trace_start"() <{level = 10 : i32, message = "td,sd->ts"}> : () -> ()
    %cst_17 = arith.constant dense<0.000000e+00> : vector<16x16xf32>
    %62 = tpu.matmul %59, %60, %cst_17 {dimension_numbers = #tpu.dot_dimension_numbers<[1], [1], [0], [0], [0, 0, 1, 0], [], []>} : vector<16x64xbf16>, vector<16x64xbf16>, vector<16x16xf32> -> vector<16x16xf32>
    "tpu.trace_stop"() : () -> ()
    %63 = arith.addf %62, %4 : vector<16x16xf32>
    %cst_18 = arith.constant dense<0xFF800000> : vector<16xf32>
    %64 = vector.multi_reduction <maximumf>, %63, %cst_18 [1] : vector<16x16xf32> to vector<16xf32>
    %65 = vector.shape_cast %64 : vector<16xf32> to vector<16x1xf32>
    %66 = vector.broadcast %65 : vector<16x1xf32> to vector<16x16xf32>
    %67 = arith.subf %63, %66 : vector<16x16xf32>
    %68 = math.exp %67 : vector<16x16xf32>
    %cst_19 = arith.constant dense<0.000000e+00> : vector<16xf32>
    %69 = vector.multi_reduction <add>, %68, %cst_19 [1] : vector<16x16xf32> to vector<16xf32>
    %70 = vector.shape_cast %69 : vector<16xf32> to vector<16x1xf32>
    %71 = tpu.reciprocal %70 {approx = true} : vector<16x1xf32> -> vector<16x1xf32>
    %72 = vector.broadcast %71 : vector<16x1xf32> to vector<16x16xf32>
    %73 = arith.mulf %68, %72 : vector<16x16xf32>
    %74 = arith.truncf %73 : vector<16x16xf32> to vector<16x16xbf16>
    %cst_20 = arith.constant dense<0.000000e+00> : vector<16x64xf32>
    %75 = tpu.matmul %74, %61, %cst_20 {dimension_numbers = #tpu.dot_dimension_numbers<[1], [0], [0], [1], [0, 0, 1, 1], [], []>} : vector<16x16xbf16>, vector<16x64xbf16>, vector<16x64xf32> -> vector<16x64xf32>
    %76 = arith.truncf %75 : vector<16x64xf32> to vector<16x64xbf16>
    %77 = vector.extract_strided_slice %3 {offsets = [0, 256], sizes = [16, 64], strides = [1, 1]} : vector<32x1152xbf16> to vector<16x64xbf16>
    %78 = vector.extract_strided_slice %3 {offsets = [0, 640], sizes = [16, 64], strides = [1, 1]} : vector<32x1152xbf16> to vector<16x64xbf16>
    %79 = vector.extract_strided_slice %3 {offsets = [0, 1024], sizes = [16, 64], strides = [1, 1]} : vector<32x1152xbf16> to vector<16x64xbf16>
    "tpu.trace_start"() <{level = 10 : i32, message = "td,sd->ts"}> : () -> ()
    %cst_21 = arith.constant dense<0.000000e+00> : vector<16x16xf32>
    %80 = tpu.matmul %77, %78, %cst_21 {dimension_numbers = #tpu.dot_dimension_numbers<[1], [1], [0], [0], [0, 0, 1, 0], [], []>} : vector<16x64xbf16>, vector<16x64xbf16>, vector<16x16xf32> -> vector<16x16xf32>
    "tpu.trace_stop"() : () -> ()
    %81 = arith.addf %80, %4 : vector<16x16xf32>
    %cst_22 = arith.constant dense<0xFF800000> : vector<16xf32>
    %82 = vector.multi_reduction <maximumf>, %81, %cst_22 [1] : vector<16x16xf32> to vector<16xf32>
    %83 = vector.shape_cast %82 : vector<16xf32> to vector<16x1xf32>
    %84 = vector.broadcast %83 : vector<16x1xf32> to vector<16x16xf32>
    %85 = arith.subf %81, %84 : vector<16x16xf32>
    %86 = math.exp %85 : vector<16x16xf32>
    %cst_23 = arith.constant dense<0.000000e+00> : vector<16xf32>
    %87 = vector.multi_reduction <add>, %86, %cst_23 [1] : vector<16x16xf32> to vector<16xf32>
    %88 = vector.shape_cast %87 : vector<16xf32> to vector<16x1xf32>
    %89 = tpu.reciprocal %88 {approx = true} : vector<16x1xf32> -> vector<16x1xf32>
    %90 = vector.broadcast %89 : vector<16x1xf32> to vector<16x16xf32>
    %91 = arith.mulf %86, %90 : vector<16x16xf32>
    %92 = arith.truncf %91 : vector<16x16xf32> to vector<16x16xbf16>
    %cst_24 = arith.constant dense<0.000000e+00> : vector<16x64xf32>
    %93 = tpu.matmul %92, %79, %cst_24 {dimension_numbers = #tpu.dot_dimension_numbers<[1], [0], [0], [1], [0, 0, 1, 1], [], []>} : vector<16x16xbf16>, vector<16x64xbf16>, vector<16x64xf32> -> vector<16x64xf32>
    %94 = arith.truncf %93 : vector<16x64xf32> to vector<16x64xbf16>
    %95 = vector.extract_strided_slice %3 {offsets = [0, 320], sizes = [16, 64], strides = [1, 1]} : vector<32x1152xbf16> to vector<16x64xbf16>
    %96 = vector.extract_strided_slice %3 {offsets = [0, 704], sizes = [16, 64], strides = [1, 1]} : vector<32x1152xbf16> to vector<16x64xbf16>
    %97 = vector.extract_strided_slice %3 {offsets = [0, 1088], sizes = [16, 64], strides = [1, 1]} : vector<32x1152xbf16> to vector<16x64xbf16>
    "tpu.trace_start"() <{level = 10 : i32, message = "td,sd->ts"}> : () -> ()
    %cst_25 = arith.constant dense<0.000000e+00> : vector<16x16xf32>
    %98 = tpu.matmul %95, %96, %cst_25 {dimension_numbers = #tpu.dot_dimension_numbers<[1], [1], [0], [0], [0, 0, 1, 0], [], []>} : vector<16x64xbf16>, vector<16x64xbf16>, vector<16x16xf32> -> vector<16x16xf32>
    "tpu.trace_stop"() : () -> ()
    %99 = arith.addf %98, %4 : vector<16x16xf32>
    %cst_26 = arith.constant dense<0xFF800000> : vector<16xf32>
    %100 = vector.multi_reduction <maximumf>, %99, %cst_26 [1] : vector<16x16xf32> to vector<16xf32>
    %101 = vector.shape_cast %100 : vector<16xf32> to vector<16x1xf32>
    %102 = vector.broadcast %101 : vector<16x1xf32> to vector<16x16xf32>
    %103 = arith.subf %99, %102 : vector<16x16xf32>
    %104 = math.exp %103 : vector<16x16xf32>
    %cst_27 = arith.constant dense<0.000000e+00> : vector<16xf32>
    %105 = vector.multi_reduction <add>, %104, %cst_27 [1] : vector<16x16xf32> to vector<16xf32>
    %106 = vector.shape_cast %105 : vector<16xf32> to vector<16x1xf32>
    %107 = tpu.reciprocal %106 {approx = true} : vector<16x1xf32> -> vector<16x1xf32>
    %108 = vector.broadcast %107 : vector<16x1xf32> to vector<16x16xf32>
    %109 = arith.mulf %104, %108 : vector<16x16xf32>
    %110 = arith.truncf %109 : vector<16x16xf32> to vector<16x16xbf16>
    %cst_28 = arith.constant dense<0.000000e+00> : vector<16x64xf32>
    %111 = tpu.matmul %110, %97, %cst_28 {dimension_numbers = #tpu.dot_dimension_numbers<[1], [0], [0], [1], [0, 0, 1, 1], [], []>} : vector<16x16xbf16>, vector<16x64xbf16>, vector<16x64xf32> -> vector<16x64xf32>
    %112 = arith.truncf %111 : vector<16x64xf32> to vector<16x64xbf16>
    %113 = tpu.concatenate %22, %40, %58, %76, %94, %112 in 1 : vector<16x64xbf16>, vector<16x64xbf16>, vector<16x64xbf16>, vector<16x64xbf16>, vector<16x64xbf16>, vector<16x64xbf16> -> vector<16x384xbf16>
    %114 = vector.extract_strided_slice %3 {offsets = [16, 0], sizes = [16, 64], strides = [1, 1]} : vector<32x1152xbf16> to vector<16x64xbf16>
    %115 = vector.extract_strided_slice %3 {offsets = [16, 384], sizes = [16, 64], strides = [1, 1]} : vector<32x1152xbf16> to vector<16x64xbf16>
    %116 = vector.extract_strided_slice %3 {offsets = [16, 768], sizes = [16, 64], strides = [1, 1]} : vector<32x1152xbf16> to vector<16x64xbf16>
    "tpu.trace_start"() <{level = 10 : i32, message = "td,sd->ts"}> : () -> ()
    %cst_29 = arith.constant dense<0.000000e+00> : vector<16x16xf32>
    %117 = tpu.matmul %114, %115, %cst_29 {dimension_numbers = #tpu.dot_dimension_numbers<[1], [1], [0], [0], [0, 0, 1, 0], [], []>} : vector<16x64xbf16>, vector<16x64xbf16>, vector<16x16xf32> -> vector<16x16xf32>
    "tpu.trace_stop"() : () -> ()
    %118 = arith.addf %117, %4 : vector<16x16xf32>
    %cst_30 = arith.constant dense<0xFF800000> : vector<16xf32>
    %119 = vector.multi_reduction <maximumf>, %118, %cst_30 [1] : vector<16x16xf32> to vector<16xf32>
    %120 = vector.shape_cast %119 : vector<16xf32> to vector<16x1xf32>
    %121 = vector.broadcast %120 : vector<16x1xf32> to vector<16x16xf32>
    %122 = arith.subf %118, %121 : vector<16x16xf32>
    %123 = math.exp %122 : vector<16x16xf32>
    %cst_31 = arith.constant dense<0.000000e+00> : vector<16xf32>
    %124 = vector.multi_reduction <add>, %123, %cst_31 [1] : vector<16x16xf32> to vector<16xf32>
    %125 = vector.shape_cast %124 : vector<16xf32> to vector<16x1xf32>
    %126 = tpu.reciprocal %125 {approx = true} : vector<16x1xf32> -> vector<16x1xf32>
    %127 = vector.broadcast %126 : vector<16x1xf32> to vector<16x16xf32>
    %128 = arith.mulf %123, %127 : vector<16x16xf32>
    %129 = arith.truncf %128 : vector<16x16xf32> to vector<16x16xbf16>
    %cst_32 = arith.constant dense<0.000000e+00> : vector<16x64xf32>
    %130 = tpu.matmul %129, %116, %cst_32 {dimension_numbers = #tpu.dot_dimension_numbers<[1], [0], [0], [1], [0, 0, 1, 1], [], []>} : vector<16x16xbf16>, vector<16x64xbf16>, vector<16x64xf32> -> vector<16x64xf32>
    %131 = arith.truncf %130 : vector<16x64xf32> to vector<16x64xbf16>
    %132 = vector.extract_strided_slice %3 {offsets = [16, 64], sizes = [16, 64], strides = [1, 1]} : vector<32x1152xbf16> to vector<16x64xbf16>
    %133 = vector.extract_strided_slice %3 {offsets = [16, 448], sizes = [16, 64], strides = [1, 1]} : vector<32x1152xbf16> to vector<16x64xbf16>
    %134 = vector.extract_strided_slice %3 {offsets = [16, 832], sizes = [16, 64], strides = [1, 1]} : vector<32x1152xbf16> to vector<16x64xbf16>
    "tpu.trace_start"() <{level = 10 : i32, message = "td,sd->ts"}> : () -> ()
    %cst_33 = arith.constant dense<0.000000e+00> : vector<16x16xf32>
    %135 = tpu.matmul %132, %133, %cst_33 {dimension_numbers = #tpu.dot_dimension_numbers<[1], [1], [0], [0], [0, 0, 1, 0], [], []>} : vector<16x64xbf16>, vector<16x64xbf16>, vector<16x16xf32> -> vector<16x16xf32>
    "tpu.trace_stop"() : () -> ()
    %136 = arith.addf %135, %4 : vector<16x16xf32>
    %cst_34 = arith.constant dense<0xFF800000> : vector<16xf32>
    %137 = vector.multi_reduction <maximumf>, %136, %cst_34 [1] : vector<16x16xf32> to vector<16xf32>
    %138 = vector.shape_cast %137 : vector<16xf32> to vector<16x1xf32>
    %139 = vector.broadcast %138 : vector<16x1xf32> to vector<16x16xf32>
    %140 = arith.subf %136, %139 : vector<16x16xf32>
    %141 = math.exp %140 : vector<16x16xf32>
    %cst_35 = arith.constant dense<0.000000e+00> : vector<16xf32>
    %142 = vector.multi_reduction <add>, %141, %cst_35 [1] : vector<16x16xf32> to vector<16xf32>
    %143 = vector.shape_cast %142 : vector<16xf32> to vector<16x1xf32>
    %144 = tpu.reciprocal %143 {approx = true} : vector<16x1xf32> -> vector<16x1xf32>
    %145 = vector.broadcast %144 : vector<16x1xf32> to vector<16x16xf32>
    %146 = arith.mulf %141, %145 : vector<16x16xf32>
    %147 = arith.truncf %146 : vector<16x16xf32> to vector<16x16xbf16>
    %cst_36 = arith.constant dense<0.000000e+00> : vector<16x64xf32>
    %148 = tpu.matmul %147, %134, %cst_36 {dimension_numbers = #tpu.dot_dimension_numbers<[1], [0], [0], [1], [0, 0, 1, 1], [], []>} : vector<16x16xbf16>, vector<16x64xbf16>, vector<16x64xf32> -> vector<16x64xf32>
    %149 = arith.truncf %148 : vector<16x64xf32> to vector<16x64xbf16>
    %150 = vector.extract_strided_slice %3 {offsets = [16, 128], sizes = [16, 64], strides = [1, 1]} : vector<32x1152xbf16> to vector<16x64xbf16>
    %151 = vector.extract_strided_slice %3 {offsets = [16, 512], sizes = [16, 64], strides = [1, 1]} : vector<32x1152xbf16> to vector<16x64xbf16>
    %152 = vector.extract_strided_slice %3 {offsets = [16, 896], sizes = [16, 64], strides = [1, 1]} : vector<32x1152xbf16> to vector<16x64xbf16>
    "tpu.trace_start"() <{level = 10 : i32, message = "td,sd->ts"}> : () -> ()
    %cst_37 = arith.constant dense<0.000000e+00> : vector<16x16xf32>
    %153 = tpu.matmul %150, %151, %cst_37 {dimension_numbers = #tpu.dot_dimension_numbers<[1], [1], [0], [0], [0, 0, 1, 0], [], []>} : vector<16x64xbf16>, vector<16x64xbf16>, vector<16x16xf32> -> vector<16x16xf32>
    "tpu.trace_stop"() : () -> ()
    %154 = arith.addf %153, %4 : vector<16x16xf32>
    %cst_38 = arith.constant dense<0xFF800000> : vector<16xf32>
    %155 = vector.multi_reduction <maximumf>, %154, %cst_38 [1] : vector<16x16xf32> to vector<16xf32>
    %156 = vector.shape_cast %155 : vector<16xf32> to vector<16x1xf32>
    %157 = vector.broadcast %156 : vector<16x1xf32> to vector<16x16xf32>
    %158 = arith.subf %154, %157 : vector<16x16xf32>
    %159 = math.exp %158 : vector<16x16xf32>
    %cst_39 = arith.constant dense<0.000000e+00> : vector<16xf32>
    %160 = vector.multi_reduction <add>, %159, %cst_39 [1] : vector<16x16xf32> to vector<16xf32>
    %161 = vector.shape_cast %160 : vector<16xf32> to vector<16x1xf32>
    %162 = tpu.reciprocal %161 {approx = true} : vector<16x1xf32> -> vector<16x1xf32>
    %163 = vector.broadcast %162 : vector<16x1xf32> to vector<16x16xf32>
    %164 = arith.mulf %159, %163 : vector<16x16xf32>
    %165 = arith.truncf %164 : vector<16x16xf32> to vector<16x16xbf16>
    %cst_40 = arith.constant dense<0.000000e+00> : vector<16x64xf32>
    %166 = tpu.matmul %165, %152, %cst_40 {dimension_numbers = #tpu.dot_dimension_numbers<[1], [0], [0], [1], [0, 0, 1, 1], [], []>} : vector<16x16xbf16>, vector<16x64xbf16>, vector<16x64xf32> -> vector<16x64xf32>
    %167 = arith.truncf %166 : vector<16x64xf32> to vector<16x64xbf16>
    %168 = vector.extract_strided_slice %3 {offsets = [16, 192], sizes = [16, 64], strides = [1, 1]} : vector<32x1152xbf16> to vector<16x64xbf16>
    %169 = vector.extract_strided_slice %3 {offsets = [16, 576], sizes = [16, 64], strides = [1, 1]} : vector<32x1152xbf16> to vector<16x64xbf16>
    %170 = vector.extract_strided_slice %3 {offsets = [16, 960], sizes = [16, 64], strides = [1, 1]} : vector<32x1152xbf16> to vector<16x64xbf16>
    "tpu.trace_start"() <{level = 10 : i32, message = "td,sd->ts"}> : () -> ()
    %cst_41 = arith.constant dense<0.000000e+00> : vector<16x16xf32>
    %171 = tpu.matmul %168, %169, %cst_41 {dimension_numbers = #tpu.dot_dimension_numbers<[1], [1], [0], [0], [0, 0, 1, 0], [], []>} : vector<16x64xbf16>, vector<16x64xbf16>, vector<16x16xf32> -> vector<16x16xf32>
    "tpu.trace_stop"() : () -> ()
    %172 = arith.addf %171, %4 : vector<16x16xf32>
    %cst_42 = arith.constant dense<0xFF800000> : vector<16xf32>
    %173 = vector.multi_reduction <maximumf>, %172, %cst_42 [1] : vector<16x16xf32> to vector<16xf32>
    %174 = vector.shape_cast %173 : vector<16xf32> to vector<16x1xf32>
    %175 = vector.broadcast %174 : vector<16x1xf32> to vector<16x16xf32>
    %176 = arith.subf %172, %175 : vector<16x16xf32>
    %177 = math.exp %176 : vector<16x16xf32>
    %cst_43 = arith.constant dense<0.000000e+00> : vector<16xf32>
    %178 = vector.multi_reduction <add>, %177, %cst_43 [1] : vector<16x16xf32> to vector<16xf32>
    %179 = vector.shape_cast %178 : vector<16xf32> to vector<16x1xf32>
    %180 = tpu.reciprocal %179 {approx = true} : vector<16x1xf32> -> vector<16x1xf32>
    %181 = vector.broadcast %180 : vector<16x1xf32> to vector<16x16xf32>
    %182 = arith.mulf %177, %181 : vector<16x16xf32>
    %183 = arith.truncf %182 : vector<16x16xf32> to vector<16x16xbf16>
    %cst_44 = arith.constant dense<0.000000e+00> : vector<16x64xf32>
    %184 = tpu.matmul %183, %170, %cst_44 {dimension_numbers = #tpu.dot_dimension_numbers<[1], [0], [0], [1], [0, 0, 1, 1], [], []>} : vector<16x16xbf16>, vector<16x64xbf16>, vector<16x64xf32> -> vector<16x64xf32>
    %185 = arith.truncf %184 : vector<16x64xf32> to vector<16x64xbf16>
    %186 = vector.extract_strided_slice %3 {offsets = [16, 256], sizes = [16, 64], strides = [1, 1]} : vector<32x1152xbf16> to vector<16x64xbf16>
    %187 = vector.extract_strided_slice %3 {offsets = [16, 640], sizes = [16, 64], strides = [1, 1]} : vector<32x1152xbf16> to vector<16x64xbf16>
    %188 = vector.extract_strided_slice %3 {offsets = [16, 1024], sizes = [16, 64], strides = [1, 1]} : vector<32x1152xbf16> to vector<16x64xbf16>
    "tpu.trace_start"() <{level = 10 : i32, message = "td,sd->ts"}> : () -> ()
    %cst_45 = arith.constant dense<0.000000e+00> : vector<16x16xf32>
    %189 = tpu.matmul %186, %187, %cst_45 {dimension_numbers = #tpu.dot_dimension_numbers<[1], [1], [0], [0], [0, 0, 1, 0], [], []>} : vector<16x64xbf16>, vector<16x64xbf16>, vector<16x16xf32> -> vector<16x16xf32>
    "tpu.trace_stop"() : () -> ()
    %190 = arith.addf %189, %4 : vector<16x16xf32>
    %cst_46 = arith.constant dense<0xFF800000> : vector<16xf32>
    %191 = vector.multi_reduction <maximumf>, %190, %cst_46 [1] : vector<16x16xf32> to vector<16xf32>
    %192 = vector.shape_cast %191 : vector<16xf32> to vector<16x1xf32>
    %193 = vector.broadcast %192 : vector<16x1xf32> to vector<16x16xf32>
    %194 = arith.subf %190, %193 : vector<16x16xf32>
    %195 = math.exp %194 : vector<16x16xf32>
    %cst_47 = arith.constant dense<0.000000e+00> : vector<16xf32>
    %196 = vector.multi_reduction <add>, %195, %cst_47 [1] : vector<16x16xf32> to vector<16xf32>
    %197 = vector.shape_cast %196 : vector<16xf32> to vector<16x1xf32>
    %198 = tpu.reciprocal %197 {approx = true} : vector<16x1xf32> -> vector<16x1xf32>
    %199 = vector.broadcast %198 : vector<16x1xf32> to vector<16x16xf32>
    %200 = arith.mulf %195, %199 : vector<16x16xf32>
    %201 = arith.truncf %200 : vector<16x16xf32> to vector<16x16xbf16>
    %cst_48 = arith.constant dense<0.000000e+00> : vector<16x64xf32>
    %202 = tpu.matmul %201, %188, %cst_48 {dimension_numbers = #tpu.dot_dimension_numbers<[1], [0], [0], [1], [0, 0, 1, 1], [], []>} : vector<16x16xbf16>, vector<16x64xbf16>, vector<16x64xf32> -> vector<16x64xf32>
    %203 = arith.truncf %202 : vector<16x64xf32> to vector<16x64xbf16>
    %204 = vector.extract_strided_slice %3 {offsets = [16, 320], sizes = [16, 64], strides = [1, 1]} : vector<32x1152xbf16> to vector<16x64xbf16>
    %205 = vector.extract_strided_slice %3 {offsets = [16, 704], sizes = [16, 64], strides = [1, 1]} : vector<32x1152xbf16> to vector<16x64xbf16>
    %206 = vector.extract_strided_slice %3 {offsets = [16, 1088], sizes = [16, 64], strides = [1, 1]} : vector<32x1152xbf16> to vector<16x64xbf16>
    "tpu.trace_start"() <{level = 10 : i32, message = "td,sd->ts"}> : () -> ()
    %cst_49 = arith.constant dense<0.000000e+00> : vector<16x16xf32>
    %207 = tpu.matmul %204, %205, %cst_49 {dimension_numbers = #tpu.dot_dimension_numbers<[1], [1], [0], [0], [0, 0, 1, 0], [], []>} : vector<16x64xbf16>, vector<16x64xbf16>, vector<16x16xf32> -> vector<16x16xf32>
    "tpu.trace_stop"() : () -> ()
    %208 = arith.addf %207, %4 : vector<16x16xf32>
    %cst_50 = arith.constant dense<0xFF800000> : vector<16xf32>
    %209 = vector.multi_reduction <maximumf>, %208, %cst_50 [1] : vector<16x16xf32> to vector<16xf32>
    %210 = vector.shape_cast %209 : vector<16xf32> to vector<16x1xf32>
    %211 = vector.broadcast %210 : vector<16x1xf32> to vector<16x16xf32>
    %212 = arith.subf %208, %211 : vector<16x16xf32>
    %213 = math.exp %212 : vector<16x16xf32>
    %cst_51 = arith.constant dense<0.000000e+00> : vector<16xf32>
    %214 = vector.multi_reduction <add>, %213, %cst_51 [1] : vector<16x16xf32> to vector<16xf32>
    %215 = vector.shape_cast %214 : vector<16xf32> to vector<16x1xf32>
    %216 = tpu.reciprocal %215 {approx = true} : vector<16x1xf32> -> vector<16x1xf32>
    %217 = vector.broadcast %216 : vector<16x1xf32> to vector<16x16xf32>
    %218 = arith.mulf %213, %217 : vector<16x16xf32>
    %219 = arith.truncf %218 : vector<16x16xf32> to vector<16x16xbf16>
    %cst_52 = arith.constant dense<0.000000e+00> : vector<16x64xf32>
    %220 = tpu.matmul %219, %206, %cst_52 {dimension_numbers = #tpu.dot_dimension_numbers<[1], [0], [0], [1], [0, 0, 1, 1], [], []>} : vector<16x16xbf16>, vector<16x64xbf16>, vector<16x64xf32> -> vector<16x64xf32>
    %221 = arith.truncf %220 : vector<16x64xf32> to vector<16x64xbf16>
    %222 = tpu.concatenate %131, %149, %167, %185, %203, %221 in 1 : vector<16x64xbf16>, vector<16x64xbf16>, vector<16x64xbf16>, vector<16x64xbf16>, vector<16x64xbf16>, vector<16x64xbf16> -> vector<16x384xbf16>
    %223 = tpu.concatenate %113, %222 in 0 : vector<16x384xbf16>, vector<16x384xbf16> -> vector<32x384xbf16>
    %c0_53 = arith.constant 0 : index
    %c0_54 = arith.constant 0 : index
    %224 = vector.load %arg3[%c0_53, %c0_54] : memref<384x384xbf16, #tpu.memory_space<vmem>>, vector<384x384xbf16>
    %cst_55 = arith.constant dense<0.000000e+00> : vector<32x384xf32>
    %225 = tpu.matmul %223, %224, %cst_55 {dimension_numbers = #tpu.dot_dimension_numbers<[1], [0], [0], [1], [0, 0, 1, 1], [], []>} : vector<32x384xbf16>, vector<384x384xbf16>, vector<32x384xf32> -> vector<32x384xf32>
    %c0_56 = arith.constant 0 : index
    %c0_57 = arith.constant 0 : index
    %226 = vector.load %arg4[%c0_56, %c0_57] : memref<1x384xf32, #tpu.memory_space<vmem>>, vector<1x384xf32>
    %227 = vector.broadcast %226 : vector<1x384xf32> to vector<32x384xf32>
    %228 = arith.addf %225, %227 : vector<32x384xf32>
    %c0_58 = arith.constant 0 : index
    %c0_59 = arith.constant 0 : index
    %229 = vector.load %arg6[%c0_58, %c0_59] : memref<32x384xf32, #tpu.memory_space<vmem>>, vector<32x384xf32>
    tpu.vector_store %arg6[%c0_58, %c0_59], %228 {strides = array<i32>} : memref<32x384xf32, #tpu.memory_space<vmem>>, vector<32x384xf32>,
    return
  }
  func.func @transform_0(%arg0: i32) -> (i32, i32) {
    %c0_i32 = arith.constant 0 : i32
    %c0_i32_0 = arith.constant 0 : i32
    %c0_i32_1 = arith.constant 0 : i32
    return %c0_i32, %c0_i32_0 : i32, i32
  }
  func.func @transform_1(%arg0: i32) -> (i32, i32) {
    %c0_i32 = arith.constant 0 : i32
    %c0_i32_0 = arith.constant 0 : i32
    %c0_i32_1 = arith.constant 0 : i32
    return %c0_i32, %c0_i32_0 : i32, i32
  }
  func.func @transform_2(%arg0: i32) -> (i32, i32) {
    %c0_i32 = arith.constant 0 : i32
    %c0_i32_0 = arith.constant 0 : i32
    %c0_i32_1 = arith.constant 0 : i32
    return %c0_i32, %c0_i32_0 : i32, i32
  }
  func.func @transform_3(%arg0: i32) -> (i32, i32) {
    %c0_i32 = arith.constant 0 : i32
    %c0_i32_0 = arith.constant 0 : i32
    %c0_i32_1 = arith.constant 0 : i32
    return %c0_i32, %c0_i32_0 : i32, i32
  }
  func.func @transform_4(%arg0: i32) -> (i32, i32) {
    %c0_i32 = arith.constant 0 : i32
    %c0_i32_0 = arith.constant 0 : i32
    %c0_i32_1 = arith.constant 0 : i32
    return %c0_i32, %c0_i32_0 : i32, i32
  }
  func.func @transform_5(%arg0: i32) -> (i32, i32) {
    %c0_i32 = arith.constant 0 : i32
    %c0_i32_0 = arith.constant 0 : i32
    %c0_i32_1 = arith.constant 0 : i32
    return %c0_i32, %c0_i32_0 : i32, i32
  }
}

</mosaic_0001>

<llo_original>
// kernel: tpu_custom_call.1
$region0: #{tpu_custom_call.1}
  #allocation0 [shape = 'u32[]', space=smem, size = 0x4, offset = 0x4, fixed_abs, tag = 'smem constant byte address 0x4 - core index']
  #allocation1 [shape = 'u32[144,128]{1,0:T(1,128)}', space=vmem, size = 0x12000, scoped, tag = 'internal scratch']
  %s0 = inlined_call_operand.hbm [shape: bf16[32,384], index: 0, kind: input, shape index: {}]
  %s1 = inlined_call_operand.hbm [shape: bf16[384,1152], index: 1, kind: input, shape index: {}]
  %s2 = inlined_call_operand.hbm [shape: bf16[384,384], index: 2, kind: input, shape index: {}]
  %s3 = inlined_call_operand.vmem [shape: f32[1,384], index: 3, kind: input, shape index: {}]
  %s4 = inlined_call_operand.hbm [shape: f32[16,16], index: 4, kind: input, shape index: {}]
  %s5 = inlined_call_operand.hbm [shape: f32[32,384], index: 5, kind: output, shape index: {}]
  %s6 = sld [smem:[#allocation0]]
  $region46: #{tpu_custom_call.1} parent=0
    _
  %s8 = ssub.s32 1, %s6
  %s9 = scalar_select 0, %s8, %s6
  $region1: #{tpu_custom_call.1} parent=0
    #allocation2 [shape = 'u8[24576]{0}', space=vmem, size = 0x6000, scoped, tag = 'input window, operand 0, single buffered']
    #allocation3 [shape = 's32[1]{0}', space=sflag, size = 0x4, scoped, tag = 'scoped memory for tpu_custom_call.1']
    #allocation4 [shape = 's32[1]{0}', space=sflag, size = 0x4, scoped, tag = 'scoped memory for tpu_custom_call.1']
    #allocation5 [shape = 'u8[884736]{0}', space=vmem, size = 0xd8000, scoped, tag = 'input window, operand 1, single buffered']
    #allocation6 [shape = 's32[1]{0}', space=sflag, size = 0x4, scoped, tag = 'scoped memory for tpu_custom_call.1']
    #allocation7 [shape = 'u8[294912]{0}', space=vmem, size = 0x48000, scoped, tag = 'input window, operand 2, single buffered']
    #allocation8 [shape = 'u8[8192]{0}', space=vmem, size = 0x2000, scoped, tag = 'input window, operand 4, single buffered']
    #allocation9 [shape = 's32[1]{0}', space=sflag, size = 0x4, scoped, tag = 'scoped memory for tpu_custom_call.1']
    #allocation10 [shape = 'u8[49152]{0}', space=vmem, size = 0xc000, scoped, tag = 'output window, operand 0, single buffered']
    %10 = vsyncpa [#allocation3], 0
    %11 = vsyncpa [#allocation6], 0
    %12 = vsyncpa [#allocation9], 0
    %13 = vsyncpa [#allocation4], 0
    // Predicated region
    $region2: #{tpu_custom_call.1} parent=1 // pred_check
      _
    $region3: #{tpu_custom_call.1} parent=1 // pred_check_branch
      %15 = sbr.rel (0) target = $region5
    $region4: #{tpu_custom_call.1} parent=1 // pred_region
      %s17 = ssub.s32 768, 768
      %18 = vsyncadd [#allocation3], %s17
      %s19 = sshll.u32 [#allocation2], 4
      %s20 = int_to_ptr.vmem [resolvable:$true] %s19
      %25 = dma.hbm_to_vmem [thread:$0]  %s0, 768, %s20, [#allocation3], 192, 192, 12
    $region5: #{tpu_custom_call.1} parent=1 // pred_fallthru
      _
    // Predicated region
    $region6: #{tpu_custom_call.1} parent=1 // pred_check
      _
    $region7: #{tpu_custom_call.1} parent=1 // pred_check_branch
      %27 = sbr.rel (0) target = $region9
    $region8: #{tpu_custom_call.1} parent=1 // pred_region
      %s29 = ssub.s32 27648, 27648
      %30 = vsyncadd [#allocation6], %s29
      %s31 = sshll.u32 [#allocation5], 4
      %s32 = int_to_ptr.vmem [resolvable:$true] %s31
      %37 = dma.hbm_to_vmem [thread:$0]  %s1, 27648, %s32, [#allocation6], 576, 576, 36
    $region9: #{tpu_custom_call.1} parent=1 // pred_fallthru
      _
    // Predicated region
    $region10: #{tpu_custom_call.1} parent=1 // pred_check
      _
    $region11: #{tpu_custom_call.1} parent=1 // pred_check_branch
      %39 = sbr.rel (0) target = $region13
    $region12: #{tpu_custom_call.1} parent=1 // pred_region
      %s41 = ssub.s32 9216, 9216
      %42 = vsyncadd [#allocation6], %s41
      %s43 = sshll.u32 [#allocation7], 4
      %s44 = int_to_ptr.vmem [resolvable:$true] %s43
      %49 = dma.hbm_to_vmem [thread:$0]  %s2, 9216, %s44, [#allocation6], 192, 192, 12
    $region13: #{tpu_custom_call.1} parent=1 // pred_fallthru
      _
    // Predicated region
    $region14: #{tpu_custom_call.1} parent=1 // pred_check
      _
    $region15: #{tpu_custom_call.1} parent=1 // pred_check_branch
      %51 = sbr.rel (0) target = $region17
    $region16: #{tpu_custom_call.1} parent=1 // pred_region
      _
    $region17: #{tpu_custom_call.1} parent=1 // pred_fallthru
      _
    // Predicated region
    $region18: #{tpu_custom_call.1} parent=1 // pred_check
      _
    $region19: #{tpu_custom_call.1} parent=1 // pred_check_branch
      %53 = sbr.rel (0) target = $region21
    $region20: #{tpu_custom_call.1} parent=1 // pred_region
      %s55 = ssub.s32 256, 256
      %56 = vsyncadd [#allocation9], %s55
      %s57 = sshll.u32 [#allocation8], 4
      %s58 = int_to_ptr.vmem [resolvable:$true] %s57
      %63 = dma.hbm_to_vmem [thread:$0]  %s4, 256, %s58, [#allocation9], 128, 128, 8
    $region21: #{tpu_custom_call.1} parent=1 // pred_fallthru
      _
    // Predicated region
    $region22: #{tpu_custom_call.1} parent=1 // pred_check
      _
    $region23: #{tpu_custom_call.1} parent=1 // pred_check_branch
      %65 = sbr.rel (0) target = $region25
    $region24: #{tpu_custom_call.1} parent=1 // pred_region
      %66 = dma.done [#allocation3], 768
    $region25: #{tpu_custom_call.1} parent=1 // pred_fallthru
      _
    // Predicated region
    $region26: #{tpu_custom_call.1} parent=1 // pred_check
      _
    $region27: #{tpu_custom_call.1} parent=1 // pred_check_branch
      %68 = sbr.rel (0) target = $region29
    $region28: #{tpu_custom_call.1} parent=1 // pred_region
      %69 = dma.done [#allocation6], 27648
    $region29: #{tpu_custom_call.1} parent=1 // pred_fallthru
      _
    // Predicated region
    $region30: #{tpu_custom_call.1} parent=1 // pred_check
      _
    $region31: #{tpu_custom_call.1} parent=1 // pred_check_branch
      %71 = sbr.rel (0) target = $region33
    $region32: #{tpu_custom_call.1} parent=1 // pred_region
      %72 = dma.done [#allocation6], 9216
    $region33: #{tpu_custom_call.1} parent=1 // pred_fallthru
      _
    // Predicated region
    $region34: #{tpu_custom_call.1} parent=1 // pred_check
      _
    $region35: #{tpu_custom_call.1} parent=1 // pred_check_branch
      %74 = sbr.rel (0) target = $region37
    $region36: #{tpu_custom_call.1} parent=1 // pred_region
      %75 = dma.done [#allocation9], 256
    $region37: #{tpu_custom_call.1} parent=1 // pred_fallthru
      _
    %v77 = vld [vmem:[#allocation2] sm:$0xff]
    %v78 = vld [vmem:[#allocation2 + $0x8] sm:$0xf]
    %v79 = vld [vmem:[#allocation2 + $0xc] sm:$0xff]
    %v80 = vld [vmem:[#allocation2 + $0x14] sm:$0xf]
    %v81 = vld [vmem:[#allocation2 + $0x18] sm:$0xff]
    %v82 = vld [vmem:[#allocation2 + $0x20] sm:$0xf]
    %v83 = vld [vmem:[#allocation2 + $0x24] sm:$0xff]
    %v84 = vld [vmem:[#allocation2 + $0x2c] sm:$0xf]
    %v85 = vld [vmem:[#allocation5] sm:$0xff]
    %v86 = vld [vmem:[#allocation5 + $0x8] sm:$0xff]
    %v87 = vld [vmem:[#allocation5 + $0x10] sm:$0xff]
    %v88 = vld [vmem:[#allocation5 + $0x18] sm:$0xff]
    %v89 = vld [vmem:[#allocation5 + $0x20] sm:$0xf]
    %v90 = vld [vmem:[#allocation5 + $0x24] sm:$0xff]
    %v91 = vld [vmem:[#allocation5 + $0x2c] sm:$0xff]
    %v92 = vld [vmem:[#allocation5 + $0x34] sm:$0xff]
    %v93 = vld [vmem:[#allocation5 + $0x3c] sm:$0xff]
    %v94 = vld [vmem:[#allocation5 + $0x44] sm:$0xf]
    %v95 = vld [vmem:[#allocation5 + $0x48] sm:$0xff]
    %v96 = vld [vmem:[#allocation5 + $0x50] sm:$0xff]
    %v97 = vld [vmem:[#allocation5 + $0x58] sm:$0xff]
    %v98 = vld [vmem:[#allocation5 + $0x60] sm:$0xff]
    %v99 = vld [vmem:[#allocation5 + $0x68] sm:$0xf]
    %v100 = vld [vmem:[#allocation5 + $0x6c] sm:$0xff]
    %v101 = vld [vmem:[#allocation5 + $0x74] sm:$0xff]
    %v102 = vld [vmem:[#allocation5 + $0x7c] sm:$0xff]
    %v103 = vld [vmem:[#allocation5 + $0x84] sm:$0xff]
    %v104 = vld [vmem:[#allocation5 + $0x8c] sm:$0xf]
    %v105 = vld [vmem:[#allocation5 + $0x90] sm:$0xff]
    %v106 = vld [vmem:[#allocation5 + $0x98] sm:$0xff]
    %v107 = vld [vmem:[#allocation5 + $0xa0] sm:$0xff]
    %v108 = vld [vmem:[#allocation5 + $0xa8] sm:$0xff]
    %v109 = vld [vmem:[#allocation5 + $0xb0] sm:$0xf]
    %v110 = vld [vmem:[#allocation5 + $0xb4] sm:$0xff]
    %v111 = vld [vmem:[#allocation5 + $0xbc] sm:$0xff]
    %v112 = vld [vmem:[#allocation5 + $0xc4] sm:$0xff]
    %v113 = vld [vmem:[#allocation5 + $0xcc] sm:$0xff]
    %v114 = vld [vmem:[#allocation5 + $0xd4] sm:$0xf]
    %v115 = vld [vmem:[#allocation5 + $0xd8] sm:$0xff]
    %v116 = vld [vmem:[#allocation5 + $0xe0] sm:$0xff]
    %v117 = vld [vmem:[#allocation5 + $0xe8] sm:$0xff]
    %v118 = vld [vmem:[#allocation5 + $0xf0] sm:$0xff]
    %v119 = vld [vmem:[#allocation5 + $0xf8] sm:$0xf]
    %v120 = vld [vmem:[#allocation5 + $0xfc] sm:$0xff]
    %v121 = vld [vmem:[#allocation5 + $0x104] sm:$0xff]
    %v122 = vld [vmem:[#allocation5 + $0x10c] sm:$0xff]
    %v123 = vld [vmem:[#allocation5 + $0x114] sm:$0xff]
    %v124 = vld [vmem:[#allocation5 + $0x11c] sm:$0xf]
    %v125 = vld [vmem:[#allocation5 + $0x120] sm:$0xff]
    %v126 = vld [vmem:[#allocation5 + $0x128] sm:$0xff]
    %v127 = vld [vmem:[#allocation5 + $0x130] sm:$0xff]
    %v128 = vld [vmem:[#allocation5 + $0x138] sm:$0xff]
    %v129 = vld [vmem:[#allocation5 + $0x140] sm:$0xf]
    %v130 = vld [vmem:[#allocation5 + $0x144] sm:$0xff]
    %v131 = vld [vmem:[#allocation5 + $0x14c] sm:$0xff]
    %v132 = vld [vmem:[#allocation5 + $0x154] sm:$0xff]
    %v133 = vld [vmem:[#allocation5 + $0x15c] sm:$0xff]
    %v134 = vld [vmem:[#allocation5 + $0x164] sm:$0xf]
    %v135 = vld [vmem:[#allocation5 + $0x168] sm:$0xff]
    %v136 = vld [vmem:[#allocation5 + $0x170] sm:$0xff]
    %v137 = vld [vmem:[#allocation5 + $0x178] sm:$0xff]
    %v138 = vld [vmem:[#allocation5 + $0x180] sm:$0xff]
    %v139 = vld [vmem:[#allocation5 + $0x188] sm:$0xf]
    %v140 = vld [vmem:[#allocation5 + $0x18c] sm:$0xff]
    %v141 = vld [vmem:[#allocation5 + $0x194] sm:$0xff]
    %v142 = vld [vmem:[#allocation5 + $0x19c] sm:$0xff]
    %v143 = vld [vmem:[#allocation5 + $0x1a4] sm:$0xff]
    %v144 = vld [vmem:[#allocation5 + $0x1ac] sm:$0xf]
    %v145 = vld [vmem:[#allocation5 + $0x1b0] sm:$0xff]
    %v146 = vld [vmem:[#allocation5 + $0x1b8] sm:$0xff]
    %v147 = vld [vmem:[#allocation5 + $0x1c0] sm:$0xff]
    %v148 = vld [vmem:[#allocation5 + $0x1c8] sm:$0xff]
    %v149 = vld [vmem:[#allocation5 + $0x1d0] sm:$0xf]
    %v150 = vld [vmem:[#allocation5 + $0x1d4] sm:$0xff]
    %v151 = vld [vmem:[#allocation5 + $0x1dc] sm:$0xff]
    %v152 = vld [vmem:[#allocation5 + $0x1e4] sm:$0xff]
    %v153 = vld [vmem:[#allocation5 + $0x1ec] sm:$0xff]
    %v154 = vld [vmem:[#allocation5 + $0x1f4] sm:$0xf]
    %v155 = vld [vmem:[#allocation5 + $0x1f8] sm:$0xff]
    %v156 = vld [vmem:[#allocation5 + $0x200] sm:$0xff]
    %v157 = vld [vmem:[#allocation5 + $0x208] sm:$0xff]
    %v158 = vld [vmem:[#allocation5 + $0x210] sm:$0xff]
    %v159 = vld [vmem:[#allocation5 + $0x218] sm:$0xf]
    %v160 = vld [vmem:[#allocation5 + $0x21c] sm:$0xff]
    %v161 = vld [vmem:[#allocation5 + $0x224] sm:$0xff]
    %v162 = vld [vmem:[#allocation5 + $0x22c] sm:$0xff]
    %v163 = vld [vmem:[#allocation5 + $0x234] sm:$0xff]
    %v164 = vld [vmem:[#allocation5 + $0x23c] sm:$0xf]
    %v165 = vld [vmem:[#allocation5 + $0x240] sm:$0xff]
    %v166 = vld [vmem:[#allocation5 + $0x248] sm:$0xff]
    %v167 = vld [vmem:[#allocation5 + $0x250] sm:$0xff]
    %v168 = vld [vmem:[#allocation5 + $0x258] sm:$0xff]
    %v169 = vld [vmem:[#allocation5 + $0x260] sm:$0xf]
    %v170 = vld [vmem:[#allocation5 + $0x264] sm:$0xff]
    %v171 = vld [vmem:[#allocation5 + $0x26c] sm:$0xff]
    %v172 = vld [vmem:[#allocation5 + $0x274] sm:$0xff]
    %v173 = vld [vmem:[#allocation5 + $0x27c] sm:$0xff]
    %v174 = vld [vmem:[#allocation5 + $0x284] sm:$0xf]
    %v175 = vld [vmem:[#allocation5 + $0x288] sm:$0xff]
    %v176 = vld [vmem:[#allocation5 + $0x290] sm:$0xff]
    %v177 = vld [vmem:[#allocation5 + $0x298] sm:$0xff]
    %v178 = vld [vmem:[#allocation5 + $0x2a0] sm:$0xff]
    %v179 = vld [vmem:[#allocation5 + $0x2a8] sm:$0xf]
    %v180 = vld [vmem:[#allocation5 + $0x2ac] sm:$0xff]
    %v181 = vld [vmem:[#allocation5 + $0x2b4] sm:$0xff]
    %v182 = vld [vmem:[#allocation5 + $0x2bc] sm:$0xff]
    %v183 = vld [vmem:[#allocation5 + $0x2c4] sm:$0xff]
    %v184 = vld [vmem:[#allocation5 + $0x2cc] sm:$0xf]
    %v185 = vld [vmem:[#allocation5 + $0x2d0] sm:$0xff]
    %v186 = vld [vmem:[#allocation5 + $0x2d8] sm:$0xff]
    %v187 = vld [vmem:[#allocation5 + $0x2e0] sm:$0xff]
    %v188 = vld [vmem:[#allocation5 + $0x2e8] sm:$0xff]
    %v189 = vld [vmem:[#allocation5 + $0x2f0] sm:$0xf]
    %v190 = vld [vmem:[#allocation5 + $0x2f4] sm:$0xff]
    %v191 = vld [vmem:[#allocation5 + $0x2fc] sm:$0xff]
    %v192 = vld [vmem:[#allocation5 + $0x304] sm:$0xff]
    %v193 = vld [vmem:[#allocation5 + $0x30c] sm:$0xff]
    %v194 = vld [vmem:[#allocation5 + $0x314] sm:$0xf]
    %v195 = vld [vmem:[#allocation5 + $0x318] sm:$0xff]
    %v196 = vld [vmem:[#allocation5 + $0x320] sm:$0xff]
    %v197 = vld [vmem:[#allocation5 + $0x328] sm:$0xff]
    %v198 = vld [vmem:[#allocation5 + $0x330] sm:$0xff]
    %v199 = vld [vmem:[#allocation5 + $0x338] sm:$0xf]
    %v200 = vld [vmem:[#allocation5 + $0x33c] sm:$0xff]
    %v201 = vld [vmem:[#allocation5 + $0x344] sm:$0xff]
    %v202 = vld [vmem:[#allocation5 + $0x34c] sm:$0xff]
    %v203 = vld [vmem:[#allocation5 + $0x354] sm:$0xff]
    %v204 = vld [vmem:[#allocation5 + $0x35c] sm:$0xf]
    %v205 = vld [vmem:[#allocation5 + $0x360] sm:$0xff]
    %v206 = vld [vmem:[#allocation5 + $0x368] sm:$0xff]
    %v207 = vld [vmem:[#allocation5 + $0x370] sm:$0xff]
    %v208 = vld [vmem:[#allocation5 + $0x378] sm:$0xff]
    %v209 = vld [vmem:[#allocation5 + $0x380] sm:$0xf]
    %v210 = vld [vmem:[#allocation5 + $0x384] sm:$0xff]
    %v211 = vld [vmem:[#allocation5 + $0x38c] sm:$0xff]
    %v212 = vld [vmem:[#allocation5 + $0x394] sm:$0xff]
    %v213 = vld [vmem:[#allocation5 + $0x39c] sm:$0xff]
    %v214 = vld [vmem:[#allocation5 + $0x3a4] sm:$0xf]
    %v215 = vld [vmem:[#allocation5 + $0x3a8] sm:$0xff]
    %v216 = vld [vmem:[#allocation5 + $0x3b0] sm:$0xff]
    %v217 = vld [vmem:[#allocation5 + $0x3b8] sm:$0xff]
    %v218 = vld [vmem:[#allocation5 + $0x3c0] sm:$0xff]
    %v219 = vld [vmem:[#allocation5 + $0x3c8] sm:$0xf]
    %v220 = vld [vmem:[#allocation5 + $0x3cc] sm:$0xff]
    %v221 = vld [vmem:[#allocation5 + $0x3d4] sm:$0xff]
    %v222 = vld [vmem:[#allocation5 + $0x3dc] sm:$0xff]
    %v223 = vld [vmem:[#allocation5 + $0x3e4] sm:$0xff]
    %v224 = vld [vmem:[#allocation5 + $0x3ec] sm:$0xf]
    %v225 = vld [vmem:[#allocation5 + $0x3f0] sm:$0xff]
    %v226 = vld [vmem:[#allocation5 + $0x3f8] sm:$0xff]
    %v227 = vld [vmem:[#allocation5 + $0x400] sm:$0xff]
    %v228 = vld [vmem:[#allocation5 + $0x408] sm:$0xff]
    %v229 = vld [vmem:[#allocation5 + $0x410] sm:$0xf]
    %v230 = vld [vmem:[#allocation5 + $0x414] sm:$0xff]
    %v231 = vld [vmem:[#allocation5 + $0x41c] sm:$0xff]
    %v232 = vld [vmem:[#allocation5 + $0x424] sm:$0xff]
    %v233 = vld [vmem:[#allocation5 + $0x42c] sm:$0xff]
    %v234 = vld [vmem:[#allocation5 + $0x434] sm:$0xf]
    %v235 = vld [vmem:[#allocation5 + $0x438] sm:$0xff]
    %v236 = vld [vmem:[#allocation5 + $0x440] sm:$0xff]
    %v237 = vld [vmem:[#allocation5 + $0x448] sm:$0xff]
    %v238 = vld [vmem:[#allocation5 + $0x450] sm:$0xff]
    %v239 = vld [vmem:[#allocation5 + $0x458] sm:$0xf]
    %v240 = vld [vmem:[#allocation5 + $0x45c] sm:$0xff]
    %v241 = vld [vmem:[#allocation5 + $0x464] sm:$0xff]
    %v242 = vld [vmem:[#allocation5 + $0x46c] sm:$0xff]
    %v243 = vld [vmem:[#allocation5 + $0x474] sm:$0xff]
    %v244 = vld [vmem:[#allocation5 + $0x47c] sm:$0xf]
    %v245 = vld [vmem:[#allocation5 + $0x480] sm:$0xff]
    %v246 = vld [vmem:[#allocation5 + $0x488] sm:$0xff]
    %v247 = vld [vmem:[#allocation5 + $0x490] sm:$0xff]
    %v248 = vld [vmem:[#allocation5 + $0x498] sm:$0xff]
    %v249 = vld [vmem:[#allocation5 + $0x4a0] sm:$0xf]
    %v250 = vld [vmem:[#allocation5 + $0x4a4] sm:$0xff]
    %v251 = vld [vmem:[#allocation5 + $0x4ac] sm:$0xff]
    %v252 = vld [vmem:[#allocation5 + $0x4b4] sm:$0xff]
    %v253 = vld [vmem:[#allocation5 + $0x4bc] sm:$0xff]
    %v254 = vld [vmem:[#allocation5 + $0x4c4] sm:$0xf]
    %v255 = vld [vmem:[#allocation5 + $0x4c8] sm:$0xff]
    %v256 = vld [vmem:[#allocation5 + $0x4d0] sm:$0xff]
    %v257 = vld [vmem:[#allocation5 + $0x4d8] sm:$0xff]
    %v258 = vld [vmem:[#allocation5 + $0x4e0] sm:$0xff]
    %v259 = vld [vmem:[#allocation5 + $0x4e8] sm:$0xf]
    %v260 = vld [vmem:[#allocation5 + $0x4ec] sm:$0xff]
    %v261 = vld [vmem:[#allocation5 + $0x4f4] sm:$0xff]
    %v262 = vld [vmem:[#allocation5 + $0x4fc] sm:$0xff]
    %v263 = vld [vmem:[#allocation5 + $0x504] sm:$0xff]
    %v264 = vld [vmem:[#allocation5 + $0x50c] sm:$0xf]
    %v265 = vld [vmem:[#allocation5 + $0x510] sm:$0xff]
    %v266 = vld [vmem:[#allocation5 + $0x518] sm:$0xff]
    %v267 = vld [vmem:[#allocation5 + $0x520] sm:$0xff]
    %v268 = vld [vmem:[#allocation5 + $0x528] sm:$0xff]
    %v269 = vld [vmem:[#allocation5 + $0x530] sm:$0xf]
    %v270 = vld [vmem:[#allocation5 + $0x534] sm:$0xff]
    %v271 = vld [vmem:[#allocation5 + $0x53c] sm:$0xff]
    %v272 = vld [vmem:[#allocation5 + $0x544] sm:$0xff]
    %v273 = vld [vmem:[#allocation5 + $0x54c] sm:$0xff]
    %v274 = vld [vmem:[#allocation5 + $0x554] sm:$0xf]
    %v275 = vld [vmem:[#allocation5 + $0x558] sm:$0xff]
    %v276 = vld [vmem:[#allocation5 + $0x560] sm:$0xff]
    %v277 = vld [vmem:[#allocation5 + $0x568] sm:$0xff]
    %v278 = vld [vmem:[#allocation5 + $0x570] sm:$0xff]
    %v279 = vld [vmem:[#allocation5 + $0x578] sm:$0xf]
    %v280 = vld [vmem:[#allocation5 + $0x57c] sm:$0xff]
    %v281 = vld [vmem:[#allocation5 + $0x584] sm:$0xff]
    %v282 = vld [vmem:[#allocation5 + $0x58c] sm:$0xff]
    %v283 = vld [vmem:[#allocation5 + $0x594] sm:$0xff]
    %v284 = vld [vmem:[#allocation5 + $0x59c] sm:$0xf]
    %v285 = vld [vmem:[#allocation5 + $0x5a0] sm:$0xff]
    %v286 = vld [vmem:[#allocation5 + $0x5a8] sm:$0xff]
    %v287 = vld [vmem:[#allocation5 + $0x5b0] sm:$0xff]
    %v288 = vld [vmem:[#allocation5 + $0x5b8] sm:$0xff]
    %v289 = vld [vmem:[#allocation5 + $0x5c0] sm:$0xf]
    %v290 = vld [vmem:[#allocation5 + $0x5c4] sm:$0xff]
    %v291 = vld [vmem:[#allocation5 + $0x5cc] sm:$0xff]
    %v292 = vld [vmem:[#allocation5 + $0x5d4] sm:$0xff]
    %v293 = vld [vmem:[#allocation5 + $0x5dc] sm:$0xff]
    %v294 = vld [vmem:[#allocation5 + $0x5e4] sm:$0xf]
    %v295 = vld [vmem:[#allocation5 + $0x5e8] sm:$0xff]
    %v296 = vld [vmem:[#allocation5 + $0x5f0] sm:$0xff]
    %v297 = vld [vmem:[#allocation5 + $0x5f8] sm:$0xff]
    %v298 = vld [vmem:[#allocation5 + $0x600] sm:$0xff]
    %v299 = vld [vmem:[#allocation5 + $0x608] sm:$0xf]
    %v300 = vld [vmem:[#allocation5 + $0x60c] sm:$0xff]
    %v301 = vld [vmem:[#allocation5 + $0x614] sm:$0xff]
    %v302 = vld [vmem:[#allocation5 + $0x61c] sm:$0xff]
    %v303 = vld [vmem:[#allocation5 + $0x624] sm:$0xff]
    %v304 = vld [vmem:[#allocation5 + $0x62c] sm:$0xf]
    %v305 = vld [vmem:[#allocation5 + $0x630] sm:$0xff]
    %v306 = vld [vmem:[#allocation5 + $0x638] sm:$0xff]
    %v307 = vld [vmem:[#allocation5 + $0x640] sm:$0xff]
    %v308 = vld [vmem:[#allocation5 + $0x648] sm:$0xff]
    %v309 = vld [vmem:[#allocation5 + $0x650] sm:$0xf]
    %v310 = vld [vmem:[#allocation5 + $0x654] sm:$0xff]
    %v311 = vld [vmem:[#allocation5 + $0x65c] sm:$0xff]
    %v312 = vld [vmem:[#allocation5 + $0x664] sm:$0xff]
    %v313 = vld [vmem:[#allocation5 + $0x66c] sm:$0xff]
    %v314 = vld [vmem:[#allocation5 + $0x674] sm:$0xf]
    %v315 = vld [vmem:[#allocation5 + $0x678] sm:$0xff]
    %v316 = vld [vmem:[#allocation5 + $0x680] sm:$0xff]
    %v317 = vld [vmem:[#allocation5 + $0x688] sm:$0xff]
    %v318 = vld [vmem:[#allocation5 + $0x690] sm:$0xff]
    %v319 = vld [vmem:[#allocation5 + $0x698] sm:$0xf]
    %v320 = vld [vmem:[#allocation5 + $0x69c] sm:$0xff]
    %v321 = vld [vmem:[#allocation5 + $0x6a4] sm:$0xff]
    %v322 = vld [vmem:[#allocation5 + $0x6ac] sm:$0xff]
    %v323 = vld [vmem:[#allocation5 + $0x6b4] sm:$0xff]
    %v324 = vld [vmem:[#allocation5 + $0x6bc] sm:$0xf]
    %v333 = vunpack.c.l.b16 %v77
    %v334 = vunpack.c.h.b16 %v77
    %v335 = vunpack.c.l.b16 %v78
    %v336 = vunpack.c.l.b16 %v79
    %v337 = vunpack.c.h.b16 %v79
    %v338 = vunpack.c.l.b16 %v80
    %v339 = vunpack.c.l.b16 %v81
    %v340 = vunpack.c.h.b16 %v81
    %v341 = vunpack.c.l.b16 %v82
    %v342 = vunpack.c.l.b16 %v83
    %v343 = vunpack.c.h.b16 %v83
    %v344 = vunpack.c.l.b16 %v84
    %v345 = vpack.c.b16 %v336, %v333
    %v346 = vpack.c.b16 %v337, %v334
    %v347 = vpack.c.b16 %v338, %v335
    %v348 = vpack.c.b16 %v342, %v339
    %v349 = vpack.c.b16 %v343, %v340
    %v350 = vpack.c.b16 %v344, %v341
    %v597 = vunpack.c.l.b16 %v85
    %v598 = vunpack.c.h.b16 %v85
    %v599 = vunpack.c.l.b16 %v86
    %v600 = vunpack.c.h.b16 %v86
    %v601 = vunpack.c.l.b16 %v87
    %v602 = vunpack.c.h.b16 %v87
    %v603 = vunpack.c.l.b16 %v88
    %v604 = vunpack.c.h.b16 %v88
    %v605 = vunpack.c.l.b16 %v89
    %v606 = vunpack.c.l.b16 %v90
    %v607 = vunpack.c.h.b16 %v90
    %v608 = vunpack.c.l.b16 %v91
    %v609 = vunpack.c.h.b16 %v91
    %v610 = vunpack.c.l.b16 %v92
    %v611 = vunpack.c.h.b16 %v92
    %v612 = vunpack.c.l.b16 %v93
    %v613 = vunpack.c.h.b16 %v93
    %v614 = vunpack.c.l.b16 %v94
    %v615 = vunpack.c.l.b16 %v95
    %v616 = vunpack.c.h.b16 %v95
    %v617 = vunpack.c.l.b16 %v96
    %v618 = vunpack.c.h.b16 %v96
    %v619 = vunpack.c.l.b16 %v97
    %v620 = vunpack.c.h.b16 %v97
    %v621 = vunpack.c.l.b16 %v98
    %v622 = vunpack.c.h.b16 %v98
    %v623 = vunpack.c.l.b16 %v99
    %v624 = vunpack.c.l.b16 %v100
    %v625 = vunpack.c.h.b16 %v100
    %v626 = vunpack.c.l.b16 %v101
    %v627 = vunpack.c.h.b16 %v101
    %v628 = vunpack.c.l.b16 %v102
    %v629 = vunpack.c.h.b16 %v102
    %v630 = vunpack.c.l.b16 %v103
    %v631 = vunpack.c.h.b16 %v103
    %v632 = vunpack.c.l.b16 %v104
    %v633 = vunpack.c.l.b16 %v105
    %v634 = vunpack.c.h.b16 %v105
    %v635 = vunpack.c.l.b16 %v106
    %v636 = vunpack.c.h.b16 %v106
    %v637 = vunpack.c.l.b16 %v107
    %v638 = vunpack.c.h.b16 %v107
    %v639 = vunpack.c.l.b16 %v108
    %v640 = vunpack.c.h.b16 %v108
    %v641 = vunpack.c.l.b16 %v109
    %v642 = vunpack.c.l.b16 %v110
    %v643 = vunpack.c.h.b16 %v110
    %v644 = vunpack.c.l.b16 %v111
    %v645 = vunpack.c.h.b16 %v111
    %v646 = vunpack.c.l.b16 %v112
    %v647 = vunpack.c.h.b16 %v112
    %v648 = vunpack.c.l.b16 %v113
    %v649 = vunpack.c.h.b16 %v113
    %v650 = vunpack.c.l.b16 %v114
    %v651 = vunpack.c.l.b16 %v115
    %v652 = vunpack.c.h.b16 %v115
    %v653 = vunpack.c.l.b16 %v116
    %v654 = vunpack.c.h.b16 %v116
    %v655 = vunpack.c.l.b16 %v117
    %v656 = vunpack.c.h.b16 %v117
    %v657 = vunpack.c.l.b16 %v118
    %v658 = vunpack.c.h.b16 %v118
    %v659 = vunpack.c.l.b16 %v119
    %v660 = vunpack.c.l.b16 %v120
    %v661 = vunpack.c.h.b16 %v120
    %v662 = vunpack.c.l.b16 %v121
    %v663 = vunpack.c.h.b16 %v121
    %v664 = vunpack.c.l.b16 %v122
    %v665 = vunpack.c.h.b16 %v122
    %v666 = vunpack.c.l.b16 %v123
    %v667 = vunpack.c.h.b16 %v123
    %v668 = vunpack.c.l.b16 %v124
    %v669 = vunpack.c.l.b16 %v125
    %v670 = vunpack.c.h.b16 %v125
    %v671 = vunpack.c.l.b16 %v126
    %v672 = vunpack.c.h.b16 %v126
    %v673 = vunpack.c.l.b16 %v127
    %v674 = vunpack.c.h.b16 %v127
    %v675 = vunpack.c.l.b16 %v128
    %v676 = vunpack.c.h.b16 %v128
    %v677 = vunpack.c.l.b16 %v129
    %v678 = vunpack.c.l.b16 %v130
    %v679 = vunpack.c.h.b16 %v130
    %v680 = vunpack.c.l.b16 %v131
    %v681 = vunpack.c.h.b16 %v131
    %v682 = vunpack.c.l.b16 %v132
    %v683 = vunpack.c.h.b16 %v132
    %v684 = vunpack.c.l.b16 %v133
    %v685 = vunpack.c.h.b16 %v133
    %v686 = vunpack.c.l.b16 %v134
    %v687 = vunpack.c.l.b16 %v135
    %v688 = vunpack.c.h.b16 %v135
    %v689 = vunpack.c.l.b16 %v136
    %v690 = vunpack.c.h.b16 %v136
    %v691 = vunpack.c.l.b16 %v137
    %v692 = vunpack.c.h.b16 %v137
    %v693 = vunpack.c.l.b16 %v138
    %v694 = vunpack.c.h.b16 %v138
    %v695 = vunpack.c.l.b16 %v139
    %v696 = vunpack.c.l.b16 %v140
    %v697 = vunpack.c.h.b16 %v140
    %v698 = vunpack.c.l.b16 %v141
    %v699 = vunpack.c.h.b16 %v141
    %v700 = vunpack.c.l.b16 %v142
    %v701 = vunpack.c.h.b16 %v142
    %v702 = vunpack.c.l.b16 %v143
    %v703 = vunpack.c.h.b16 %v143
    %v704 = vunpack.c.l.b16 %v144
    %v705 = vunpack.c.l.b16 %v145
    %v706 = vunpack.c.h.b16 %v145
    %v707 = vunpack.c.l.b16 %v146
    %v708 = vunpack.c.h.b16 %v146
    %v709 = vunpack.c.l.b16 %v147
    %v710 = vunpack.c.h.b16 %v147
    %v711 = vunpack.c.l.b16 %v148
    %v712 = vunpack.c.h.b16 %v148
    %v713 = vunpack.c.l.b16 %v149
    %v714 = vunpack.c.l.b16 %v150
    %v715 = vunpack.c.h.b16 %v150
    %v716 = vunpack.c.l.b16 %v151
    %v717 = vunpack.c.h.b16 %v151
    %v718 = vunpack.c.l.b16 %v152
    %v719 = vunpack.c.h.b16 %v152
    %v720 = vunpack.c.l.b16 %v153
    %v721 = vunpack.c.h.b16 %v153
    %v722 = vunpack.c.l.b16 %v154
    %v723 = vunpack.c.l.b16 %v155
    %v724 = vunpack.c.h.b16 %v155
    %v725 = vunpack.c.l.b16 %v156
    %v726 = vunpack.c.h.b16 %v156
    %v727 = vunpack.c.l.b16 %v157
    %v728 = vunpack.c.h.b16 %v157
    %v729 = vunpack.c.l.b16 %v158
    %v730 = vunpack.c.h.b16 %v158
    %v731 = vunpack.c.l.b16 %v159
    %v732 = vunpack.c.l.b16 %v160
    %v733 = vunpack.c.h.b16 %v160
    %v734 = vunpack.c.l.b16 %v161
    %v735 = vunpack.c.h.b16 %v161
    %v736 = vunpack.c.l.b16 %v162
    %v737 = vunpack.c.h.b16 %v162
    %v738 = vunpack.c.l.b16 %v163
    %v739 = vunpack.c.h.b16 %v163
    %v740 = vunpack.c.l.b16 %v164
    %v741 = vunpack.c.l.b16 %v165
    %v742 = vunpack.c.h.b16 %v165
    %v743 = vunpack.c.l.b16 %v166
    %v744 = vunpack.c.h.b16 %v166
    %v745 = vunpack.c.l.b16 %v167
    %v746 = vunpack.c.h.b16 %v167
    %v747 = vunpack.c.l.b16 %v168
    %v748 = vunpack.c.h.b16 %v168
    %v749 = vunpack.c.l.b16 %v169
    %v750 = vunpack.c.l.b16 %v170
    %v751 = vunpack.c.h.b16 %v170
    %v752 = vunpack.c.l.b16 %v171
    %v753 = vunpack.c.h.b16 %v171
    %v754 = vunpack.c.l.b16 %v172
    %v755 = vunpack.c.h.b16 %v172
    %v756 = vunpack.c.l.b16 %v173
    %v757 = vunpack.c.h.b16 %v173
    %v758 = vunpack.c.l.b16 %v174
    %v759 = vunpack.c.l.b16 %v175
    %v760 = vunpack.c.h.b16 %v175
    %v761 = vunpack.c.l.b16 %v176
    %v762 = vunpack.c.h.b16 %v176
    %v763 = vunpack.c.l.b16 %v177
    %v764 = vunpack.c.h.b16 %v177
    %v765 = vunpack.c.l.b16 %v178
    %v766 = vunpack.c.h.b16 %v178
    %v767 = vunpack.c.l.b16 %v179
    %v768 = vunpack.c.l.b16 %v180
    %v769 = vunpack.c.h.b16 %v180
    %v770 = vunpack.c.l.b16 %v181
    %v771 = vunpack.c.h.b16 %v181
    %v772 = vunpack.c.l.b16 %v182
    %v773 = vunpack.c.h.b16 %v182
    %v774 = vunpack.c.l.b16 %v183
    %v775 = vunpack.c.h.b16 %v183
    %v776 = vunpack.c.l.b16 %v184
    %v777 = vunpack.c.l.b16 %v185
    %v778 = vunpack.c.h.b16 %v185
    %v779 = vunpack.c.l.b16 %v186
    %v780 = vunpack.c.h.b16 %v186
    %v781 = vunpack.c.l.b16 %v187
    %v782 = vunpack.c.h.b16 %v187
    %v783 = vunpack.c.l.b16 %v188
    %v784 = vunpack.c.h.b16 %v188
    %v785 = vunpack.c.l.b16 %v189
    %v786 = vunpack.c.l.b16 %v190
    %v787 = vunpack.c.h.b16 %v190
    %v788 = vunpack.c.l.b16 %v191
    %v789 = vunpack.c.h.b16 %v191
    %v790 = vunpack.c.l.b16 %v192
    %v791 = vunpack.c.h.b16 %v192
    %v792 = vunpack.c.l.b16 %v193
    %v793 = vunpack.c.h.b16 %v193
    %v794 = vunpack.c.l.b16 %v194
    %v795 = vunpack.c.l.b16 %v195
    %v796 = vunpack.c.h.b16 %v195
    %v797 = vunpack.c.l.b16 %v196
    %v798 = vunpack.c.h.b16 %v196
    %v799 = vunpack.c.l.b16 %v197
    %v800 = vunpack.c.h.b16 %v197
    %v801 = vunpack.c.l.b16 %v198
    %v802 = vunpack.c.h.b16 %v198
    %v803 = vunpack.c.l.b16 %v199
    %v804 = vunpack.c.l.b16 %v200
    %v805 = vunpack.c.h.b16 %v200
    %v806 = vunpack.c.l.b16 %v201
    %v807 = vunpack.c.h.b16 %v201
    %v808 = vunpack.c.l.b16 %v202
    %v809 = vunpack.c.h.b16 %v202
    %v810 = vunpack.c.l.b16 %v203
    %v811 = vunpack.c.h.b16 %v203
    %v812 = vunpack.c.l.b16 %v204
    %v813 = vunpack.c.l.b16 %v205
    %v814 = vunpack.c.h.b16 %v205
    %v815 = vunpack.c.l.b16 %v206
    %v816 = vunpack.c.h.b16 %v206
    %v817 = vunpack.c.l.b16 %v207
    %v818 = vunpack.c.h.b16 %v207
    %v819 = vunpack.c.l.b16 %v208
    %v820 = vunpack.c.h.b16 %v208
    %v821 = vunpack.c.l.b16 %v209
    %v822 = vunpack.c.l.b16 %v210
    %v823 = vunpack.c.h.b16 %v210
    %v824 = vunpack.c.l.b16 %v211
    %v825 = vunpack.c.h.b16 %v211
    %v826 = vunpack.c.l.b16 %v212
    %v827 = vunpack.c.h.b16 %v212
    %v828 = vunpack.c.l.b16 %v213
    %v829 = vunpack.c.h.b16 %v213
    %v830 = vunpack.c.l.b16 %v214
    %v831 = vunpack.c.l.b16 %v215
    %v832 = vunpack.c.h.b16 %v215
    %v833 = vunpack.c.l.b16 %v216
    %v834 = vunpack.c.h.b16 %v216
    %v835 = vunpack.c.l.b16 %v217
    %v836 = vunpack.c.h.b16 %v217
    %v837 = vunpack.c.l.b16 %v218
    %v838 = vunpack.c.h.b16 %v218
    %v839 = vunpack.c.l.b16 %v219
    %v840 = vunpack.c.l.b16 %v220
    %v841 = vunpack.c.h.b16 %v220
    %v842 = vunpack.c.l.b16 %v221
    %v843 = vunpack.c.h.b16 %v221
    %v844 = vunpack.c.l.b16 %v222
    %v845 = vunpack.c.h.b16 %v222
    %v846 = vunpack.c.l.b16 %v223
    %v847 = vunpack.c.h.b16 %v223
    %v848 = vunpack.c.l.b16 %v224
    %v849 = vunpack.c.l.b16 %v225
    %v850 = vunpack.c.h.b16 %v225
    %v851 = vunpack.c.l.b16 %v226
    %v852 = vunpack.c.h.b16 %v226
    %v853 = vunpack.c.l.b16 %v227
    %v854 = vunpack.c.h.b16 %v227
    %v855 = vunpack.c.l.b16 %v228
    %v856 = vunpack.c.h.b16 %v228
    %v857 = vunpack.c.l.b16 %v229
    %v858 = vunpack.c.l.b16 %v230
    %v859 = vunpack.c.h.b16 %v230
    %v860 = vunpack.c.l.b16 %v231
    %v861 = vunpack.c.h.b16 %v231
    %v862 = vunpack.c.l.b16 %v232
    %v863 = vunpack.c.h.b16 %v232
    %v864 = vunpack.c.l.b16 %v233
    %v865 = vunpack.c.h.b16 %v233
    %v866 = vunpack.c.l.b16 %v234
    %v867 = vunpack.c.l.b16 %v235
    %v868 = vunpack.c.h.b16 %v235
    %v869 = vunpack.c.l.b16 %v236
    %v870 = vunpack.c.h.b16 %v236
    %v871 = vunpack.c.l.b16 %v237
    %v872 = vunpack.c.h.b16 %v237
    %v873 = vunpack.c.l.b16 %v238
    %v874 = vunpack.c.h.b16 %v238
    %v875 = vunpack.c.l.b16 %v239
    %v876 = vunpack.c.l.b16 %v240
    %v877 = vunpack.c.h.b16 %v240
    %v878 = vunpack.c.l.b16 %v241
    %v879 = vunpack.c.h.b16 %v241
    %v880 = vunpack.c.l.b16 %v242
    %v881 = vunpack.c.h.b16 %v242
    %v882 = vunpack.c.l.b16 %v243
    %v883 = vunpack.c.h.b16 %v243
    %v884 = vunpack.c.l.b16 %v244
    %v885 = vunpack.c.l.b16 %v245
    %v886 = vunpack.c.h.b16 %v245
    %v887 = vunpack.c.l.b16 %v246
    %v888 = vunpack.c.h.b16 %v246
    %v889 = vunpack.c.l.b16 %v247
    %v890 = vunpack.c.h.b16 %v247
    %v891 = vunpack.c.l.b16 %v248
    %v892 = vunpack.c.h.b16 %v248
    %v893 = vunpack.c.l.b16 %v249
    %v894 = vunpack.c.l.b16 %v250
    %v895 = vunpack.c.h.b16 %v250
    %v896 = vunpack.c.l.b16 %v251
    %v897 = vunpack.c.h.b16 %v251
    %v898 = vunpack.c.l.b16 %v252
    %v899 = vunpack.c.h.b16 %v252
    %v900 = vunpack.c.l.b16 %v253
    %v901 = vunpack.c.h.b16 %v253
    %v902 = vunpack.c.l.b16 %v254
    %v903 = vunpack.c.l.b16 %v255
    %v904 = vunpack.c.h.b16 %v255
    %v905 = vunpack.c.l.b16 %v256
    %v906 = vunpack.c.h.b16 %v256
    %v907 = vunpack.c.l.b16 %v257
    %v908 = vunpack.c.h.b16 %v257
    %v909 = vunpack.c.l.b16 %v258
    %v910 = vunpack.c.h.b16 %v258
    %v911 = vunpack.c.l.b16 %v259
    %v912 = vunpack.c.l.b16 %v260
    %v913 = vunpack.c.h.b16 %v260
    %v914 = vunpack.c.l.b16 %v261
    %v915 = vunpack.c.h.b16 %v261
    %v916 = vunpack.c.l.b16 %v262
    %v917 = vunpack.c.h.b16 %v262
    %v918 = vunpack.c.l.b16 %v263
    %v919 = vunpack.c.h.b16 %v263
    %v920 = vunpack.c.l.b16 %v264
    %v921 = vunpack.c.l.b16 %v265
    %v922 = vunpack.c.h.b16 %v265
    %v923 = vunpack.c.l.b16 %v266
    %v924 = vunpack.c.h.b16 %v266
    %v925 = vunpack.c.l.b16 %v267
    %v926 = vunpack.c.h.b16 %v267
    %v927 = vunpack.c.l.b16 %v268
    %v928 = vunpack.c.h.b16 %v268
    %v929 = vunpack.c.l.b16 %v269
    %v930 = vunpack.c.l.b16 %v270
    %v931 = vunpack.c.h.b16 %v270
    %v932 = vunpack.c.l.b16 %v271
    %v933 = vunpack.c.h.b16 %v271
    %v934 = vunpack.c.l.b16 %v272
    %v935 = vunpack.c.h.b16 %v272
    %v936 = vunpack.c.l.b16 %v273
    %v937 = vunpack.c.h.b16 %v273
    %v938 = vunpack.c.l.b16 %v274
    %v939 = vunpack.c.l.b16 %v275
    %v940 = vunpack.c.h.b16 %v275
    %v941 = vunpack.c.l.b16 %v276
    %v942 = vunpack.c.h.b16 %v276
    %v943 = vunpack.c.l.b16 %v277
    %v944 = vunpack.c.h.b16 %v277
    %v945 = vunpack.c.l.b16 %v278
    %v946 = vunpack.c.h.b16 %v278
    %v947 = vunpack.c.l.b16 %v279
    %v948 = vunpack.c.l.b16 %v280
    %v949 = vunpack.c.h.b16 %v280
    %v950 = vunpack.c.l.b16 %v281
    %v951 = vunpack.c.h.b16 %v281
    %v952 = vunpack.c.l.b16 %v282
    %v953 = vunpack.c.h.b16 %v282
    %v954 = vunpack.c.l.b16 %v283
    %v955 = vunpack.c.h.b16 %v283
    %v956 = vunpack.c.l.b16 %v284
    %v957 = vunpack.c.l.b16 %v285
    %v958 = vunpack.c.h.b16 %v285
    %v959 = vunpack.c.l.b16 %v286
    %v960 = vunpack.c.h.b16 %v286
    %v961 = vunpack.c.l.b16 %v287
    %v962 = vunpack.c.h.b16 %v287
    %v963 = vunpack.c.l.b16 %v288
    %v964 = vunpack.c.h.b16 %v288
    %v965 = vunpack.c.l.b16 %v289
    %v966 = vunpack.c.l.b16 %v290
    %v967 = vunpack.c.h.b16 %v290
    %v968 = vunpack.c.l.b16 %v291
    %v969 = vunpack.c.h.b16 %v291
    %v970 = vunpack.c.l.b16 %v292
    %v971 = vunpack.c.h.b16 %v292
    %v972 = vunpack.c.l.b16 %v293
    %v973 = vunpack.c.h.b16 %v293
    %v974 = vunpack.c.l.b16 %v294
    %v975 = vunpack.c.l.b16 %v295
    %v976 = vunpack.c.h.b16 %v295
    %v977 = vunpack.c.l.b16 %v296
    %v978 = vunpack.c.h.b16 %v296
    %v979 = vunpack.c.l.b16 %v297
    %v980 = vunpack.c.h.b16 %v297
    %v981 = vunpack.c.l.b16 %v298
    %v982 = vunpack.c.h.b16 %v298
    %v983 = vunpack.c.l.b16 %v299
    %v984 = vunpack.c.l.b16 %v300
    %v985 = vunpack.c.h.b16 %v300
    %v986 = vunpack.c.l.b16 %v301
    %v987 = vunpack.c.h.b16 %v301
    %v988 = vunpack.c.l.b16 %v302
    %v989 = vunpack.c.h.b16 %v302
    %v990 = vunpack.c.l.b16 %v303
    %v991 = vunpack.c.h.b16 %v303
    %v992 = vunpack.c.l.b16 %v304
    %v993 = vunpack.c.l.b16 %v305
    %v994 = vunpack.c.h.b16 %v305
    %v995 = vunpack.c.l.b16 %v306
    %v996 = vunpack.c.h.b16 %v306
    %v997 = vunpack.c.l.b16 %v307
    %v998 = vunpack.c.h.b16 %v307
    %v999 = vunpack.c.l.b16 %v308
    %v1000 = vunpack.c.h.b16 %v308
    %v1001 = vunpack.c.l.b16 %v309
    %v1002 = vunpack.c.l.b16 %v310
    %v1003 = vunpack.c.h.b16 %v310
    %v1004 = vunpack.c.l.b16 %v311
    %v1005 = vunpack.c.h.b16 %v311
    %v1006 = vunpack.c.l.b16 %v312
    %v1007 = vunpack.c.h.b16 %v312
    %v1008 = vunpack.c.l.b16 %v313
    %v1009 = vunpack.c.h.b16 %v313
    %v1010 = vunpack.c.l.b16 %v314
    %v1011 = vunpack.c.l.b16 %v315
    %v1012 = vunpack.c.h.b16 %v315
    %v1013 = vunpack.c.l.b16 %v316
    %v1014 = vunpack.c.h.b16 %v316
    %v1015 = vunpack.c.l.b16 %v317
    %v1016 = vunpack.c.h.b16 %v317
    %v1017 = vunpack.c.l.b16 %v318
    %v1018 = vunpack.c.h.b16 %v318
    %v1019 = vunpack.c.l.b16 %v319
    %v1020 = vunpack.c.l.b16 %v320
    %v1021 = vunpack.c.h.b16 %v320
    %v1022 = vunpack.c.l.b16 %v321
    %v1023 = vunpack.c.h.b16 %v321
    %v1024 = vunpack.c.l.b16 %v322
    %v1025 = vunpack.c.h.b16 %v322
    %v1026 = vunpack.c.l.b16 %v323
    %v1027 = vunpack.c.h.b16 %v323
    %v1028 = vunpack.c.l.b16 %v324
    %v1029 = vpack.c.b16 %v606, %v597
    %v1030 = vpack.c.b16 %v607, %v598
    %v1031 = vpack.c.b16 %v608, %v599
    %v1032 = vpack.c.b16 %v609, %v600
    %v1033 = vpack.c.b16 %v610, %v601
    %v1034 = vpack.c.b16 %v611, %v602
    %v1035 = vpack.c.b16 %v612, %v603
    %v1036 = vpack.c.b16 %v613, %v604
    %v1037 = vpack.c.b16 %v614, %v605
    %v1038 = vpack.c.b16 %v624, %v615
    %v1039 = vpack.c.b16 %v625, %v616
    %v1040 = vpack.c.b16 %v626, %v617
    %v1041 = vpack.c.b16 %v627, %v618
    %v1042 = vpack.c.b16 %v628, %v619
    %v1043 = vpack.c.b16 %v629, %v620
    %v1044 = vpack.c.b16 %v630, %v621
    %v1045 = vpack.c.b16 %v631, %v622
    %v1046 = vpack.c.b16 %v632, %v623
    %v1047 = vpack.c.b16 %v642, %v633
    %v1048 = vpack.c.b16 %v643, %v634
    %v1049 = vpack.c.b16 %v644, %v635
    %v1050 = vpack.c.b16 %v645, %v636
    %v1051 = vpack.c.b16 %v646, %v637
    %v1052 = vpack.c.b16 %v647, %v638
    %v1053 = vpack.c.b16 %v648, %v639
    %v1054 = vpack.c.b16 %v649, %v640
    %v1055 = vpack.c.b16 %v650, %v641
    %v1056 = vpack.c.b16 %v660, %v651
    %v1057 = vpack.c.b16 %v661, %v652
    %v1058 = vpack.c.b16 %v662, %v653
    %v1059 = vpack.c.b16 %v663, %v654
    %v1060 = vpack.c.b16 %v664, %v655
    %v1061 = vpack.c.b16 %v665, %v656
    %v1062 = vpack.c.b16 %v666, %v657
    %v1063 = vpack.c.b16 %v667, %v658
    %v1064 = vpack.c.b16 %v668, %v659
    %v1065 = vpack.c.b16 %v678, %v669
    %v1066 = vpack.c.b16 %v679, %v670
    %v1067 = vpack.c.b16 %v680, %v671
    %v1068 = vpack.c.b16 %v681, %v672
    %v1069 = vpack.c.b16 %v682, %v673
    %v1070 = vpack.c.b16 %v683, %v674
    %v1071 = vpack.c.b16 %v684, %v675
    %v1072 = vpack.c.b16 %v685, %v676
    %v1073 = vpack.c.b16 %v686, %v677
    %v1074 = vpack.c.b16 %v696, %v687
    %v1075 = vpack.c.b16 %v697, %v688
    %v1076 = vpack.c.b16 %v698, %v689
    %v1077 = vpack.c.b16 %v699, %v690
    %v1078 = vpack.c.b16 %v700, %v691
    %v1079 = vpack.c.b16 %v701, %v692
    %v1080 = vpack.c.b16 %v702, %v693
    %v1081 = vpack.c.b16 %v703, %v694
    %v1082 = vpack.c.b16 %v704, %v695
    %v1083 = vpack.c.b16 %v714, %v705
    %v1084 = vpack.c.b16 %v715, %v706
    %v1085 = vpack.c.b16 %v716, %v707
    %v1086 = vpack.c.b16 %v717, %v708
    %v1087 = vpack.c.b16 %v718, %v709
    %v1088 = vpack.c.b16 %v719, %v710
    %v1089 = vpack.c.b16 %v720, %v711
    %v1090 = vpack.c.b16 %v721, %v712
    %v1091 = vpack.c.b16 %v722, %v713
    %v1092 = vpack.c.b16 %v732, %v723
    %v1093 = vpack.c.b16 %v733, %v724
    %v1094 = vpack.c.b16 %v734, %v725
    %v1095 = vpack.c.b16 %v735, %v726
    %v1096 = vpack.c.b16 %v736, %v727
    %v1097 = vpack.c.b16 %v737, %v728
    %v1098 = vpack.c.b16 %v738, %v729
    %v1099 = vpack.c.b16 %v739, %v730
    %v1100 = vpack.c.b16 %v740, %v731
    %v1101 = vpack.c.b16 %v750, %v741
    %v1102 = vpack.c.b16 %v751, %v742
    %v1103 = vpack.c.b16 %v752, %v743
    %v1104 = vpack.c.b16 %v753, %v744
    %v1105 = vpack.c.b16 %v754, %v745
    %v1106 = vpack.c.b16 %v755, %v746
    %v1107 = vpack.c.b16 %v756, %v747
    %v1108 = vpack.c.b16 %v757, %v748
    %v1109 = vpack.c.b16 %v758, %v749
    %v1110 = vpack.c.b16 %v768, %v759
    %v1111 = vpack.c.b16 %v769, %v760
    %v1112 = vpack.c.b16 %v770, %v761
    %v1113 = vpack.c.b16 %v771, %v762
    %v1114 = vpack.c.b16 %v772, %v763
    %v1115 = vpack.c.b16 %v773, %v764
    %v1116 = vpack.c.b16 %v774, %v765
    %v1117 = vpack.c.b16 %v775, %v766
    %v1118 = vpack.c.b16 %v776, %v767
    %v1119 = vpack.c.b16 %v786, %v777
    %v1120 = vpack.c.b16 %v787, %v778
    %v1121 = vpack.c.b16 %v788, %v779
    %v1122 = vpack.c.b16 %v789, %v780
    %v1123 = vpack.c.b16 %v790, %v781
    %v1124 = vpack.c.b16 %v791, %v782
    %v1125 = vpack.c.b16 %v792, %v783
    %v1126 = vpack.c.b16 %v793, %v784
    %v1127 = vpack.c.b16 %v794, %v785
    %v1128 = vpack.c.b16 %v804, %v795
    %v1129 = vpack.c.b16 %v805, %v796
    %v1130 = vpack.c.b16 %v806, %v797
    %v1131 = vpack.c.b16 %v807, %v798
    %v1132 = vpack.c.b16 %v808, %v799
    %v1133 = vpack.c.b16 %v809, %v800
    %v1134 = vpack.c.b16 %v810, %v801
    %v1135 = vpack.c.b16 %v811, %v802
    %v1136 = vpack.c.b16 %v812, %v803
    %v1137 = vpack.c.b16 %v822, %v813
    %v1138 = vpack.c.b16 %v823, %v814
    %v1139 = vpack.c.b16 %v824, %v815
    %v1140 = vpack.c.b16 %v825, %v816
    %v1141 = vpack.c.b16 %v826, %v817
    %v1142 = vpack.c.b16 %v827, %v818
    %v1143 = vpack.c.b16 %v828, %v819
    %v1144 = vpack.c.b16 %v829, %v820
    %v1145 = vpack.c.b16 %v830, %v821
    %v1146 = vpack.c.b16 %v840, %v831
    %v1147 = vpack.c.b16 %v841, %v832
    %v1148 = vpack.c.b16 %v842, %v833
    %v1149 = vpack.c.b16 %v843, %v834
    %v1150 = vpack.c.b16 %v844, %v835
    %v1151 = vpack.c.b16 %v845, %v836
    %v1152 = vpack.c.b16 %v846, %v837
    %v1153 = vpack.c.b16 %v847, %v838
    %v1154 = vpack.c.b16 %v848, %v839
    %v1155 = vpack.c.b16 %v858, %v849
    %v1156 = vpack.c.b16 %v859, %v850
    %v1157 = vpack.c.b16 %v860, %v851
    %v1158 = vpack.c.b16 %v861, %v852
    %v1159 = vpack.c.b16 %v862, %v853
    %v1160 = vpack.c.b16 %v863, %v854
    %v1161 = vpack.c.b16 %v864, %v855
    %v1162 = vpack.c.b16 %v865, %v856
    %v1163 = vpack.c.b16 %v866, %v857
    %v1164 = vpack.c.b16 %v876, %v867
    %v1165 = vpack.c.b16 %v877, %v868
    %v1166 = vpack.c.b16 %v878, %v869
    %v1167 = vpack.c.b16 %v879, %v870
    %v1168 = vpack.c.b16 %v880, %v871
    %v1169 = vpack.c.b16 %v881, %v872
    %v1170 = vpack.c.b16 %v882, %v873
    %v1171 = vpack.c.b16 %v883, %v874
    %v1172 = vpack.c.b16 %v884, %v875
    %v1173 = vpack.c.b16 %v894, %v885
    %v1174 = vpack.c.b16 %v895, %v886
    %v1175 = vpack.c.b16 %v896, %v887
    %v1176 = vpack.c.b16 %v897, %v888
    %v1177 = vpack.c.b16 %v898, %v889
    %v1178 = vpack.c.b16 %v899, %v890
    %v1179 = vpack.c.b16 %v900, %v891
    %v1180 = vpack.c.b16 %v901, %v892
    %v1181 = vpack.c.b16 %v902, %v893
    %v1182 = vpack.c.b16 %v912, %v903
    %v1183 = vpack.c.b16 %v913, %v904
    %v1184 = vpack.c.b16 %v914, %v905
    %v1185 = vpack.c.b16 %v915, %v906
    %v1186 = vpack.c.b16 %v916, %v907
    %v1187 = vpack.c.b16 %v917, %v908
    %v1188 = vpack.c.b16 %v918, %v909
    %v1189 = vpack.c.b16 %v919, %v910
    %v1190 = vpack.c.b16 %v920, %v911
    %v1191 = vpack.c.b16 %v930, %v921
    %v1192 = vpack.c.b16 %v931, %v922
    %v1193 = vpack.c.b16 %v932, %v923
    %v1194 = vpack.c.b16 %v933, %v924
    %v1195 = vpack.c.b16 %v934, %v925
    %v1196 = vpack.c.b16 %v935, %v926
    %v1197 = vpack.c.b16 %v936, %v927
    %v1198 = vpack.c.b16 %v937, %v928
    %v1199 = vpack.c.b16 %v938, %v929
    %v1200 = vpack.c.b16 %v948, %v939
    %v1201 = vpack.c.b16 %v949, %v940
    %v1202 = vpack.c.b16 %v950, %v941
    %v1203 = vpack.c.b16 %v951, %v942
    %v1204 = vpack.c.b16 %v952, %v943
    %v1205 = vpack.c.b16 %v953, %v944
    %v1206 = vpack.c.b16 %v954, %v945
    %v1207 = vpack.c.b16 %v955, %v946
    %v1208 = vpack.c.b16 %v956, %v947
    %v1209 = vpack.c.b16 %v966, %v957
    %v1210 = vpack.c.b16 %v967, %v958
    %v1211 = vpack.c.b16 %v968, %v959
    %v1212 = vpack.c.b16 %v969, %v960
    %v1213 = vpack.c.b16 %v970, %v961
    %v1214 = vpack.c.b16 %v971, %v962
    %v1215 = vpack.c.b16 %v972, %v963
    %v1216 = vpack.c.b16 %v973, %v964
    %v1217 = vpack.c.b16 %v974, %v965
    %v1218 = vpack.c.b16 %v984, %v975
    %v1219 = vpack.c.b16 %v985, %v976
    %v1220 = vpack.c.b16 %v986, %v977
    %v1221 = vpack.c.b16 %v987, %v978
    %v1222 = vpack.c.b16 %v988, %v979
    %v1223 = vpack.c.b16 %v989, %v980
    %v1224 = vpack.c.b16 %v990, %v981
    %v1225 = vpack.c.b16 %v991, %v982
    %v1226 = vpack.c.b16 %v992, %v983
    %v1227 = vpack.c.b16 %v1002, %v993
    %v1228 = vpack.c.b16 %v1003, %v994
    %v1229 = vpack.c.b16 %v1004, %v995
    %v1230 = vpack.c.b16 %v1005, %v996
    %v1231 = vpack.c.b16 %v1006, %v997
    %v1232 = vpack.c.b16 %v1007, %v998
    %v1233 = vpack.c.b16 %v1008, %v999
    %v1234 = vpack.c.b16 %v1009, %v1000
    %v1235 = vpack.c.b16 %v1010, %v1001
    %v1236 = vpack.c.b16 %v1020, %v1011
    %v1237 = vpack.c.b16 %v1021, %v1012
    %v1238 = vpack.c.b16 %v1022, %v1013
    %v1239 = vpack.c.b16 %v1023, %v1014
    %v1240 = vpack.c.b16 %v1024, %v1015
    %v1241 = vpack.c.b16 %v1025, %v1016
    %v1242 = vpack.c.b16 %v1026, %v1017
    %v1243 = vpack.c.b16 %v1027, %v1018
    %v1244 = vpack.c.b16 %v1028, %v1019
    %1461 = vmatprep.subr.bf16.mxu0 %v1093
    %1462 = vmatpush1.bf16.msra.mxu0 %v1092
    %1463 = vmatprep.subr.bf16.mxu0 %v1084
    %1464 = vmatpush1.bf16.msra.mxu0 %v1083
    %1465 = vmatprep.subr.bf16.mxu0 %v1075
    %1466 = vmatpush1.bf16.msra.mxu0 %v1074
    %1467 = vmatprep.subr.bf16.mxu0 %v1066
    %1468 = vmatpush1.bf16.msra.mxu0 %v1065
    %1469 = vmatprep.subr.bf16.mxu0 %v1057
    %1470 = vmatpush1.bf16.msra.mxu0 %v1056
    %1471 = vmatprep.subr.bf16.mxu0 %v1048
    %1472 = vmatpush1.bf16.msra.mxu0 %v1047
    %1473 = vmatprep.subr.bf16.mxu0 %v1039
    %1474 = vmatpush1.bf16.msra.mxu0 %v1038
    %1475 = vmatprep.subr.bf16.mxu0 %v1030
    %1476 = vmatpush1.bf16.msra.mxu0 %v1029
    %1477 = vmatprep.subr.bf16.mxu0 %v1165
    %1478 = vmatpush2.bf16.msra.mxu0 %v1164
    %1479 = vmatprep.subr.bf16.mxu0 %v1156
    %1480 = vmatpush2.bf16.msra.mxu0 %v1155
    %1481 = vmatprep.subr.bf16.mxu0 %v1147
    %1482 = vmatpush2.bf16.msra.mxu0 %v1146
    %1483 = vmatprep.subr.bf16.mxu0 %v1138
    %1484 = vmatpush2.bf16.msra.mxu0 %v1137
    %1485 = vmatprep.subr.bf16.mxu0 %v1129
    %1486 = vmatpush2.bf16.msra.mxu0 %v1128
    %1487 = vmatprep.subr.bf16.mxu0 %v1120
    %1488 = vmatpush2.bf16.msra.mxu0 %v1119
    %1489 = vmatprep.subr.bf16.mxu0 %v1111
    %1490 = vmatpush2.bf16.msra.mxu0 %v1110
    %1491 = vmatprep.subr.bf16.mxu0 %v1102
    %1492 = vmatpush2.bf16.msra.mxu0 %v1101
    %1493 = vmatprep.mubr.bf16.mxu0 %v346
    %1494 = vmatmul.mubr.bf16.gmra.mxu0 %v345
    %v1495 = vpop.f32.mrf.mxu0
    %v1496 = vadd.f32 0.0, %v1495
    %v1497 = vpop.f32.mrf.mxu0
    %v1498 = vadd.f32 0.0, %v1497
    %v1499 = vpop.f32.mrf.mxu0
    %v1500 = vadd.f32 0.0, %v1499
    %v1501 = vpop.f32.mrf.mxu0
    %v1502 = vadd.f32 0.0, %v1501
    %1503 = vmatprep.mubr.bf16.mxu0 %v349
    %1504 = vmatmul.mubr.bf16.gmra.mxu0 %v348
    %v1505 = vpop.f32.mrf.mxu0
    %v1506 = vadd.f32 0.0, %v1505
    %v1507 = vpop.f32.mrf.mxu0
    %v1508 = vadd.f32 0.0, %v1507
    %v1509 = vpop.f32.mrf.mxu0
    %v1510 = vadd.f32 0.0, %v1509
    %v1511 = vpop.f32.mrf.mxu0
    %v1512 = vadd.f32 0.0, %v1511
    %1513 = vdwg.mxu0
    %1514 = vmatprep.subr.bf16.mxu0 %v1237
    %1515 = vmatpush1.bf16.msra.mxu0 %v1236
    %1516 = vmatprep.subr.bf16.mxu0 %v1228
    %1517 = vmatpush1.bf16.msra.mxu0 %v1227
    %1518 = vmatprep.subr.bf16.mxu0 %v1219
    %1519 = vmatpush1.bf16.msra.mxu0 %v1218
    %1520 = vmatprep.subr.bf16.mxu0 %v1210
    %1521 = vmatpush1.bf16.msra.mxu0 %v1209
    %1522 = vmatprep.subr.bf16.mxu0 %v1201
    %1523 = vmatpush1.bf16.msra.mxu0 %v1200
    %1524 = vmatprep.subr.bf16.mxu0 %v1192
    %1525 = vmatpush1.bf16.msra.mxu0 %v1191
    %1526 = vmatprep.subr.bf16.mxu0 %v1183
    %1527 = vmatpush1.bf16.msra.mxu0 %v1182
    %1528 = vmatprep.subr.bf16.mxu0 %v1174
    %1529 = vmatpush1.bf16.msra.mxu0 %v1173
    %1530 = vmatprep.subr.bf16.mxu0 0
    %1531 = vmatpush2.bf16.msra.mxu0 0
    %1532 = vmatprep.subr.bf16.mxu0 0
    %1533 = vmatpush2.bf16.msra.mxu0 0
    %1534 = vmatprep.subr.bf16.mxu0 0
    %1535 = vmatpush2.bf16.msra.mxu0 0
    %1536 = vmatprep.subr.bf16.mxu0 0
    %1537 = vmatpush2.bf16.msra.mxu0 0
    %1538 = vmatprep.subr.bf16.mxu0 0
    %1539 = vmatpush2.bf16.msra.mxu0 0
    %1540 = vmatprep.subr.bf16.mxu0 0
    %1541 = vmatpush2.bf16.msra.mxu0 0
    %1542 = vmatprep.subr.bf16.mxu0 0
    %1543 = vmatpush2.bf16.msra.mxu0 0
    %1544 = vmatprep.subr.bf16.mxu0 0
    %1545 = vmatpush2.bf16.msra.mxu0 0
    %1546 = vmatprep.mubr.bf16.mxu0 0
    %1547 = vmatmul.mubr.bf16.gmra.mxu0 %v347
    %v1548 = vpop.f32.mrf.mxu0
    %v1549 = vadd.f32 %v1496, %v1548
    %v1550 = vpop.f32.mrf.mxu0
    %v1551 = vadd.f32 %v1498, %v1550
    %v1552 = vpop.f32.mrf.mxu0
    %v1553 = vadd.f32 %v1500, %v1552
    %v1554 = vpop.f32.mrf.mxu0
    %v1555 = vadd.f32 %v1502, %v1554
    %1556 = vmatprep.mubr.bf16.mxu0 0
    %1557 = vmatmul.mubr.bf16.gmra.mxu0 %v350
    %v1558 = vpop.f32.mrf.mxu0
    %v1559 = vadd.f32 %v1506, %v1558
    %v1560 = vpop.f32.mrf.mxu0
    %v1561 = vadd.f32 %v1508, %v1560
    %v1562 = vpop.f32.mrf.mxu0
    %v1563 = vadd.f32 %v1510, %v1562
    %v1564 = vpop.f32.mrf.mxu0
    %v1565 = vadd.f32 %v1512, %v1564
    %1566 = vdwg.mxu0
    %1567 = vmatprep.subr.bf16.mxu0 %v1095
    %1568 = vmatpush1.bf16.msra.mxu0 %v1094
    %1569 = vmatprep.subr.bf16.mxu0 %v1086
    %1570 = vmatpush1.bf16.msra.mxu0 %v1085
    %1571 = vmatprep.subr.bf16.mxu0 %v1077
    %1572 = vmatpush1.bf16.msra.mxu0 %v1076
    %1573 = vmatprep.subr.bf16.mxu0 %v1068
    %1574 = vmatpush1.bf16.msra.mxu0 %v1067
    %1575 = vmatprep.subr.bf16.mxu0 %v1059
    %1576 = vmatpush1.bf16.msra.mxu0 %v1058
    %1577 = vmatprep.subr.bf16.mxu0 %v1050
    %1578 = vmatpush1.bf16.msra.mxu0 %v1049
    %1579 = vmatprep.subr.bf16.mxu0 %v1041
    %1580 = vmatpush1.bf16.msra.mxu0 %v1040
    %1581 = vmatprep.subr.bf16.mxu0 %v1032
    %1582 = vmatpush1.bf16.msra.mxu0 %v1031
    %1583 = vmatprep.subr.bf16.mxu0 %v1167
    %1584 = vmatpush2.bf16.msra.mxu0 %v1166
    %1585 = vmatprep.subr.bf16.mxu0 %v1158
    %1586 = vmatpush2.bf16.msra.mxu0 %v1157
    %1587 = vmatprep.subr.bf16.mxu0 %v1149
    %1588 = vmatpush2.bf16.msra.mxu0 %v1148
    %1589 = vmatprep.subr.bf16.mxu0 %v1140
    %1590 = vmatpush2.bf16.msra.mxu0 %v1139
    %1591 = vmatprep.subr.bf16.mxu0 %v1131
    %1592 = vmatpush2.bf16.msra.mxu0 %v1130
    %1593 = vmatprep.subr.bf16.mxu0 %v1122
    %1594 = vmatpush2.bf16.msra.mxu0 %v1121
    %1595 = vmatprep.subr.bf16.mxu0 %v1113
    %1596 = vmatpush2.bf16.msra.mxu0 %v1112
    %1597 = vmatprep.subr.bf16.mxu0 %v1104
    %1598 = vmatpush2.bf16.msra.mxu0 %v1103
    %1599 = vmatprep.mubr.bf16.mxu0 %v346
    %1600 = vmatmul.mubr.bf16.gmra.mxu0 %v345
    %v1601 = vpop.f32.mrf.mxu0
    %v1602 = vadd.f32 0.0, %v1601
    %v1603 = vpop.f32.mrf.mxu0
    %v1604 = vadd.f32 0.0, %v1603
    %v1605 = vpop.f32.mrf.mxu0
    %v1606 = vadd.f32 0.0, %v1605
    %v1607 = vpop.f32.mrf.mxu0
    %v1608 = vadd.f32 0.0, %v1607
    %1609 = vmatprep.mubr.bf16.mxu0 %v349
    %1610 = vmatmul.mubr.bf16.gmra.mxu0 %v348
    %v1611 = vpop.f32.mrf.mxu0
    %v1612 = vadd.f32 0.0, %v1611
    %v1613 = vpop.f32.mrf.mxu0
    %v1614 = vadd.f32 0.0, %v1613
    %v1615 = vpop.f32.mrf.mxu0
    %v1616 = vadd.f32 0.0, %v1615
    %v1617 = vpop.f32.mrf.mxu0
    %v1618 = vadd.f32 0.0, %v1617
    %1619 = vdwg.mxu0
    %1620 = vmatprep.subr.bf16.mxu0 %v1239
    %1621 = vmatpush1.bf16.msra.mxu0 %v1238
    %1622 = vmatprep.subr.bf16.mxu0 %v1230
    %1623 = vmatpush1.bf16.msra.mxu0 %v1229
    %1624 = vmatprep.subr.bf16.mxu0 %v1221
    %1625 = vmatpush1.bf16.msra.mxu0 %v1220
    %1626 = vmatprep.subr.bf16.mxu0 %v1212
    %1627 = vmatpush1.bf16.msra.mxu0 %v1211
    %1628 = vmatprep.subr.bf16.mxu0 %v1203
    %1629 = vmatpush1.bf16.msra.mxu0 %v1202
    %1630 = vmatprep.subr.bf16.mxu0 %v1194
    %1631 = vmatpush1.bf16.msra.mxu0 %v1193
    %1632 = vmatprep.subr.bf16.mxu0 %v1185
    %1633 = vmatpush1.bf16.msra.mxu0 %v1184
    %1634 = vmatprep.subr.bf16.mxu0 %v1176
    %1635 = vmatpush1.bf16.msra.mxu0 %v1175
    %1636 = vmatprep.subr.bf16.mxu0 0
    %1637 = vmatpush2.bf16.msra.mxu0 0
    %1638 = vmatprep.subr.bf16.mxu0 0
    %1639 = vmatpush2.bf16.msra.mxu0 0
    %1640 = vmatprep.subr.bf16.mxu0 0
    %1641 = vmatpush2.bf16.msra.mxu0 0
    %1642 = vmatprep.subr.bf16.mxu0 0
    %1643 = vmatpush2.bf16.msra.mxu0 0
    %1644 = vmatprep.subr.bf16.mxu0 0
    %1645 = vmatpush2.bf16.msra.mxu0 0
    %1646 = vmatprep.subr.bf16.mxu0 0
    %1647 = vmatpush2.bf16.msra.mxu0 0
    %1648 = vmatprep.subr.bf16.mxu0 0
    %1649 = vmatpush2.bf16.msra.mxu0 0
    %1650 = vmatprep.subr.bf16.mxu0 0
    %1651 = vmatpush2.bf16.msra.mxu0 0
    %1652 = vmatprep.mubr.bf16.mxu0 0
    %1653 = vmatmul.mubr.bf16.gmra.mxu0 %v347
    %v1654 = vpop.f32.mrf.mxu0
    %v1655 = vadd.f32 %v1602, %v1654
    %v1656 = vpop.f32.mrf.mxu0
    %v1657 = vadd.f32 %v1604, %v1656
    %v1658 = vpop.f32.mrf.mxu0
    %v1659 = vadd.f32 %v1606, %v1658
    %v1660 = vpop.f32.mrf.mxu0
    %v1661 = vadd.f32 %v1608, %v1660
    %1662 = vmatprep.mubr.bf16.mxu0 0
    %1663 = vmatmul.mubr.bf16.gmra.mxu0 %v350
    %v1664 = vpop.f32.mrf.mxu0
    %v1665 = vadd.f32 %v1612, %v1664
    %v1666 = vpop.f32.mrf.mxu0
    %v1667 = vadd.f32 %v1614, %v1666
    %v1668 = vpop.f32.mrf.mxu0
    %v1669 = vadd.f32 %v1616, %v1668
    %v1670 = vpop.f32.mrf.mxu0
    %v1671 = vadd.f32 %v1618, %v1670
    %1672 = vdwg.mxu0
    %1673 = vmatprep.subr.bf16.mxu0 %v1097
    %1674 = vmatpush1.bf16.msra.mxu0 %v1096
    %1675 = vmatprep.subr.bf16.mxu0 %v1088
    %1676 = vmatpush1.bf16.msra.mxu0 %v1087
    %1677 = vmatprep.subr.bf16.mxu0 %v1079
    %1678 = vmatpush1.bf16.msra.mxu0 %v1078
    %1679 = vmatprep.subr.bf16.mxu0 %v1070
    %1680 = vmatpush1.bf16.msra.mxu0 %v1069
    %1681 = vmatprep.subr.bf16.mxu0 %v1061
    %1682 = vmatpush1.bf16.msra.mxu0 %v1060
    %1683 = vmatprep.subr.bf16.mxu0 %v1052
    %1684 = vmatpush1.bf16.msra.mxu0 %v1051
    %1685 = vmatprep.subr.bf16.mxu0 %v1043
    %1686 = vmatpush1.bf16.msra.mxu0 %v1042
    %1687 = vmatprep.subr.bf16.mxu0 %v1034
    %1688 = vmatpush1.bf16.msra.mxu0 %v1033
    %1689 = vmatprep.subr.bf16.mxu0 %v1169
    %1690 = vmatpush2.bf16.msra.mxu0 %v1168
    %1691 = vmatprep.subr.bf16.mxu0 %v1160
    %1692 = vmatpush2.bf16.msra.mxu0 %v1159
    %1693 = vmatprep.subr.bf16.mxu0 %v1151
    %1694 = vmatpush2.bf16.msra.mxu0 %v1150
    %1695 = vmatprep.subr.bf16.mxu0 %v1142
    %1696 = vmatpush2.bf16.msra.mxu0 %v1141
    %1697 = vmatprep.subr.bf16.mxu0 %v1133
    %1698 = vmatpush2.bf16.msra.mxu0 %v1132
    %1699 = vmatprep.subr.bf16.mxu0 %v1124
    %1700 = vmatpush2.bf16.msra.mxu0 %v1123
    %1701 = vmatprep.subr.bf16.mxu0 %v1115
    %1702 = vmatpush2.bf16.msra.mxu0 %v1114
    %1703 = vmatprep.subr.bf16.mxu0 %v1106
    %1704 = vmatpush2.bf16.msra.mxu0 %v1105
    %1705 = vmatprep.mubr.bf16.mxu0 %v346
    %1706 = vmatmul.mubr.bf16.gmra.mxu0 %v345
    %v1707 = vpop.f32.mrf.mxu0
    %v1708 = vadd.f32 0.0, %v1707
    %v1709 = vpop.f32.mrf.mxu0
    %v1710 = vadd.f32 0.0, %v1709
    %v1711 = vpop.f32.mrf.mxu0
    %v1712 = vadd.f32 0.0, %v1711
    %v1713 = vpop.f32.mrf.mxu0
    %v1714 = vadd.f32 0.0, %v1713
    %1715 = vmatprep.mubr.bf16.mxu0 %v349
    %1716 = vmatmul.mubr.bf16.gmra.mxu0 %v348
    %v1717 = vpop.f32.mrf.mxu0
    %v1718 = vadd.f32 0.0, %v1717
    %v1719 = vpop.f32.mrf.mxu0
    %v1720 = vadd.f32 0.0, %v1719
    %v1721 = vpop.f32.mrf.mxu0
    %v1722 = vadd.f32 0.0, %v1721
    %v1723 = vpop.f32.mrf.mxu0
    %v1724 = vadd.f32 0.0, %v1723
    %1725 = vdwg.mxu0
    %1726 = vmatprep.subr.bf16.mxu0 %v1241
    %1727 = vmatpush1.bf16.msra.mxu0 %v1240
    %1728 = vmatprep.subr.bf16.mxu0 %v1232
    %1729 = vmatpush1.bf16.msra.mxu0 %v1231
    %1730 = vmatprep.subr.bf16.mxu0 %v1223
    %1731 = vmatpush1.bf16.msra.mxu0 %v1222
    %1732 = vmatprep.subr.bf16.mxu0 %v1214
    %1733 = vmatpush1.bf16.msra.mxu0 %v1213
    %1734 = vmatprep.subr.bf16.mxu0 %v1205
    %1735 = vmatpush1.bf16.msra.mxu0 %v1204
    %1736 = vmatprep.subr.bf16.mxu0 %v1196
    %1737 = vmatpush1.bf16.msra.mxu0 %v1195
    %1738 = vmatprep.subr.bf16.mxu0 %v1187
    %1739 = vmatpush1.bf16.msra.mxu0 %v1186
    %1740 = vmatprep.subr.bf16.mxu0 %v1178
    %1741 = vmatpush1.bf16.msra.mxu0 %v1177
    %1742 = vmatprep.subr.bf16.mxu0 0
    %1743 = vmatpush2.bf16.msra.mxu0 0
    %1744 = vmatprep.subr.bf16.mxu0 0
    %1745 = vmatpush2.bf16.msra.mxu0 0
    %1746 = vmatprep.subr.bf16.mxu0 0
    %1747 = vmatpush2.bf16.msra.mxu0 0
    %1748 = vmatprep.subr.bf16.mxu0 0
    %1749 = vmatpush2.bf16.msra.mxu0 0
    %1750 = vmatprep.subr.bf16.mxu0 0
    %1751 = vmatpush2.bf16.msra.mxu0 0
    %1752 = vmatprep.subr.bf16.mxu0 0
    %1753 = vmatpush2.bf16.msra.mxu0 0
    %1754 = vmatprep.subr.bf16.mxu0 0
    %1755 = vmatpush2.bf16.msra.mxu0 0
    %1756 = vmatprep.subr.bf16.mxu0 0
    %1757 = vmatpush2.bf16.msra.mxu0 0
    %1758 = vmatprep.mubr.bf16.mxu0 0
    %1759 = vmatmul.mubr.bf16.gmra.mxu0 %v347
    %v1760 = vpop.f32.mrf.mxu0
    %v1761 = vadd.f32 %v1708, %v1760
    %v1762 = vpop.f32.mrf.mxu0
    %v1763 = vadd.f32 %v1710, %v1762
    %v1764 = vpop.f32.mrf.mxu0
    %v1765 = vadd.f32 %v1712, %v1764
    %v1766 = vpop.f32.mrf.mxu0
    %v1767 = vadd.f32 %v1714, %v1766
    %1768 = vmatprep.mubr.bf16.mxu0 0
    %1769 = vmatmul.mubr.bf16.gmra.mxu0 %v350
    %v1770 = vpop.f32.mrf.mxu0
    %v1771 = vadd.f32 %v1718, %v1770
    %v1772 = vpop.f32.mrf.mxu0
    %v1773 = vadd.f32 %v1720, %v1772
    %v1774 = vpop.f32.mrf.mxu0
    %v1775 = vadd.f32 %v1722, %v1774
    %v1776 = vpop.f32.mrf.mxu0
    %v1777 = vadd.f32 %v1724, %v1776
    %1778 = vdwg.mxu0
    %1779 = vmatprep.subr.bf16.mxu0 %v1099
    %1780 = vmatpush1.bf16.msra.mxu0 %v1098
    %1781 = vmatprep.subr.bf16.mxu0 %v1090
    %1782 = vmatpush1.bf16.msra.mxu0 %v1089
    %1783 = vmatprep.subr.bf16.mxu0 %v1081
    %1784 = vmatpush1.bf16.msra.mxu0 %v1080
    %1785 = vmatprep.subr.bf16.mxu0 %v1072
    %1786 = vmatpush1.bf16.msra.mxu0 %v1071
    %1787 = vmatprep.subr.bf16.mxu0 %v1063
    %1788 = vmatpush1.bf16.msra.mxu0 %v1062
    %1789 = vmatprep.subr.bf16.mxu0 %v1054
    %1790 = vmatpush1.bf16.msra.mxu0 %v1053
    %1791 = vmatprep.subr.bf16.mxu0 %v1045
    %1792 = vmatpush1.bf16.msra.mxu0 %v1044
    %1793 = vmatprep.subr.bf16.mxu0 %v1036
    %1794 = vmatpush1.bf16.msra.mxu0 %v1035
    %1795 = vmatprep.subr.bf16.mxu0 %v1171
    %1796 = vmatpush2.bf16.msra.mxu0 %v1170
    %1797 = vmatprep.subr.bf16.mxu0 %v1162
    %1798 = vmatpush2.bf16.msra.mxu0 %v1161
    %1799 = vmatprep.subr.bf16.mxu0 %v1153
    %1800 = vmatpush2.bf16.msra.mxu0 %v1152
    %1801 = vmatprep.subr.bf16.mxu0 %v1144
    %1802 = vmatpush2.bf16.msra.mxu0 %v1143
    %1803 = vmatprep.subr.bf16.mxu0 %v1135
    %1804 = vmatpush2.bf16.msra.mxu0 %v1134
    %1805 = vmatprep.subr.bf16.mxu0 %v1126
    %1806 = vmatpush2.bf16.msra.mxu0 %v1125
    %1807 = vmatprep.subr.bf16.mxu0 %v1117
    %1808 = vmatpush2.bf16.msra.mxu0 %v1116
    %1809 = vmatprep.subr.bf16.mxu0 %v1108
    %1810 = vmatpush2.bf16.msra.mxu0 %v1107
    %1811 = vmatprep.mubr.bf16.mxu0 %v346
    %1812 = vmatmul.mubr.bf16.gmra.mxu0 %v345
    %v1813 = vpop.f32.mrf.mxu0
    %v1814 = vadd.f32 0.0, %v1813
    %v1815 = vpop.f32.mrf.mxu0
    %v1816 = vadd.f32 0.0, %v1815
    %v1817 = vpop.f32.mrf.mxu0
    %v1818 = vadd.f32 0.0, %v1817
    %v1819 = vpop.f32.mrf.mxu0
    %v1820 = vadd.f32 0.0, %v1819
    %1821 = vmatprep.mubr.bf16.mxu0 %v349
    %1822 = vmatmul.mubr.bf16.gmra.mxu0 %v348
    %v1823 = vpop.f32.mrf.mxu0
    %v1824 = vadd.f32 0.0, %v1823
    %v1825 = vpop.f32.mrf.mxu0
    %v1826 = vadd.f32 0.0, %v1825
    %v1827 = vpop.f32.mrf.mxu0
    %v1828 = vadd.f32 0.0, %v1827
    %v1829 = vpop.f32.mrf.mxu0
    %v1830 = vadd.f32 0.0, %v1829
    %1831 = vdwg.mxu0
    %1832 = vmatprep.subr.bf16.mxu0 %v1243
    %1833 = vmatpush1.bf16.msra.mxu0 %v1242
    %1834 = vmatprep.subr.bf16.mxu0 %v1234
    %1835 = vmatpush1.bf16.msra.mxu0 %v1233
    %1836 = vmatprep.subr.bf16.mxu0 %v1225
    %1837 = vmatpush1.bf16.msra.mxu0 %v1224
    %1838 = vmatprep.subr.bf16.mxu0 %v1216
    %1839 = vmatpush1.bf16.msra.mxu0 %v1215
    %1840 = vmatprep.subr.bf16.mxu0 %v1207
    %1841 = vmatpush1.bf16.msra.mxu0 %v1206
    %1842 = vmatprep.subr.bf16.mxu0 %v1198
    %1843 = vmatpush1.bf16.msra.mxu0 %v1197
    %1844 = vmatprep.subr.bf16.mxu0 %v1189
    %1845 = vmatpush1.bf16.msra.mxu0 %v1188
    %1846 = vmatprep.subr.bf16.mxu0 %v1180
    %1847 = vmatpush1.bf16.msra.mxu0 %v1179
    %1848 = vmatprep.subr.bf16.mxu0 0
    %1849 = vmatpush2.bf16.msra.mxu0 0
    %1850 = vmatprep.subr.bf16.mxu0 0
    %1851 = vmatpush2.bf16.msra.mxu0 0
    %1852 = vmatprep.subr.bf16.mxu0 0
    %1853 = vmatpush2.bf16.msra.mxu0 0
    %1854 = vmatprep.subr.bf16.mxu0 0
    %1855 = vmatpush2.bf16.msra.mxu0 0
    %1856 = vmatprep.subr.bf16.mxu0 0
    %1857 = vmatpush2.bf16.msra.mxu0 0
    %1858 = vmatprep.subr.bf16.mxu0 0
    %1859 = vmatpush2.bf16.msra.mxu0 0
    %1860 = vmatprep.subr.bf16.mxu0 0
    %1861 = vmatpush2.bf16.msra.mxu0 0
    %1862 = vmatprep.subr.bf16.mxu0 0
    %1863 = vmatpush2.bf16.msra.mxu0 0
    %1864 = vmatprep.mubr.bf16.mxu0 0
    %1865 = vmatmul.mubr.bf16.gmra.mxu0 %v347
    %v1866 = vpop.f32.mrf.mxu0
    %v1867 = vadd.f32 %v1814, %v1866
    %v1868 = vpop.f32.mrf.mxu0
    %v1869 = vadd.f32 %v1816, %v1868
    %v1870 = vpop.f32.mrf.mxu0
    %v1871 = vadd.f32 %v1818, %v1870
    %v1872 = vpop.f32.mrf.mxu0
    %v1873 = vadd.f32 %v1820, %v1872
    %1874 = vmatprep.mubr.bf16.mxu0 0
    %1875 = vmatmul.mubr.bf16.gmra.mxu0 %v350
    %v1876 = vpop.f32.mrf.mxu0
    %v1877 = vadd.f32 %v1824, %v1876
    %v1878 = vpop.f32.mrf.mxu0
    %v1879 = vadd.f32 %v1826, %v1878
    %v1880 = vpop.f32.mrf.mxu0
    %v1881 = vadd.f32 %v1828, %v1880
    %v1882 = vpop.f32.mrf.mxu0
    %v1883 = vadd.f32 %v1830, %v1882
    %1884 = vdwg.mxu0
    %1885 = vmatprep.subr.bf16.mxu0 0
    %1886 = vmatpush1.bf16.msra.mxu0 %v1100
    %1887 = vmatprep.subr.bf16.mxu0 0
    %1888 = vmatpush1.bf16.msra.mxu0 %v1091
    %1889 = vmatprep.subr.bf16.mxu0 0
    %1890 = vmatpush1.bf16.msra.mxu0 %v1082
    %1891 = vmatprep.subr.bf16.mxu0 0
    %1892 = vmatpush1.bf16.msra.mxu0 %v1073
    %1893 = vmatprep.subr.bf16.mxu0 0
    %1894 = vmatpush1.bf16.msra.mxu0 %v1064
    %1895 = vmatprep.subr.bf16.mxu0 0
    %1896 = vmatpush1.bf16.msra.mxu0 %v1055
    %1897 = vmatprep.subr.bf16.mxu0 0
    %1898 = vmatpush1.bf16.msra.mxu0 %v1046
    %1899 = vmatprep.subr.bf16.mxu0 0
    %1900 = vmatpush1.bf16.msra.mxu0 %v1037
    %1901 = vmatprep.subr.bf16.mxu0 0
    %1902 = vmatpush2.bf16.msra.mxu0 %v1172
    %1903 = vmatprep.subr.bf16.mxu0 0
    %1904 = vmatpush2.bf16.msra.mxu0 %v1163
    %1905 = vmatprep.subr.bf16.mxu0 0
    %1906 = vmatpush2.bf16.msra.mxu0 %v1154
    %1907 = vmatprep.subr.bf16.mxu0 0
    %1908 = vmatpush2.bf16.msra.mxu0 %v1145
    %1909 = vmatprep.subr.bf16.mxu0 0
    %1910 = vmatpush2.bf16.msra.mxu0 %v1136
    %1911 = vmatprep.subr.bf16.mxu0 0
    %1912 = vmatpush2.bf16.msra.mxu0 %v1127
    %1913 = vmatprep.subr.bf16.mxu0 0
    %1914 = vmatpush2.bf16.msra.mxu0 %v1118
    %1915 = vmatprep.subr.bf16.mxu0 0
    %1916 = vmatpush2.bf16.msra.mxu0 %v1109
    %1917 = vmatprep.mubr.bf16.mxu0 %v346
    %1918 = vmatmul.mubr.bf16.gmra.mxu0 %v345
    %v1919 = vpop.f32.mrf.mxu0
    %v1920 = vadd.f32 0.0, %v1919
    %v1921 = vpop.f32.mrf.mxu0
    %v1922 = vpop.f32.mrf.mxu0
    %v1923 = vadd.f32 0.0, %v1922
    %v1924 = vpop.f32.mrf.mxu0
    %1925 = vmatprep.mubr.bf16.mxu0 %v349
    %1926 = vmatmul.mubr.bf16.gmra.mxu0 %v348
    %v1927 = vpop.f32.mrf.mxu0
    %v1928 = vadd.f32 0.0, %v1927
    %v1929 = vpop.f32.mrf.mxu0
    %v1930 = vpop.f32.mrf.mxu0
    %v1931 = vadd.f32 0.0, %v1930
    %v1932 = vpop.f32.mrf.mxu0
    %1933 = vdwg.mxu0
    %1934 = vmatprep.subr.bf16.mxu0 0
    %1935 = vmatpush1.bf16.msra.mxu0 %v1244
    %1936 = vmatprep.subr.bf16.mxu0 0
    %1937 = vmatpush1.bf16.msra.mxu0 %v1235
    %1938 = vmatprep.subr.bf16.mxu0 0
    %1939 = vmatpush1.bf16.msra.mxu0 %v1226
    %1940 = vmatprep.subr.bf16.mxu0 0
    %1941 = vmatpush1.bf16.msra.mxu0 %v1217
    %1942 = vmatprep.subr.bf16.mxu0 0
    %1943 = vmatpush1.bf16.msra.mxu0 %v1208
    %1944 = vmatprep.subr.bf16.mxu0 0
    %1945 = vmatpush1.bf16.msra.mxu0 %v1199
    %1946 = vmatprep.subr.bf16.mxu0 0
    %1947 = vmatpush1.bf16.msra.mxu0 %v1190
    %1948 = vmatprep.subr.bf16.mxu0 0
    %1949 = vmatpush1.bf16.msra.mxu0 %v1181
    %1950 = vmatprep.subr.bf16.mxu0 0
    %1951 = vmatpush2.bf16.msra.mxu0 0
    %1952 = vmatprep.subr.bf16.mxu0 0
    %1953 = vmatpush2.bf16.msra.mxu0 0
    %1954 = vmatprep.subr.bf16.mxu0 0
    %1955 = vmatpush2.bf16.msra.mxu0 0
    %1956 = vmatprep.subr.bf16.mxu0 0
    %1957 = vmatpush2.bf16.msra.mxu0 0
    %1958 = vmatprep.subr.bf16.mxu0 0
    %1959 = vmatpush2.bf16.msra.mxu0 0
    %1960 = vmatprep.subr.bf16.mxu0 0
    %1961 = vmatpush2.bf16.msra.mxu0 0
    %1962 = vmatprep.subr.bf16.mxu0 0
    %1963 = vmatpush2.bf16.msra.mxu0 0
    %1964 = vmatprep.subr.bf16.mxu0 0
    %1965 = vmatpush2.bf16.msra.mxu0 0
    %1966 = vmatprep.mubr.bf16.mxu0 0
    %1967 = vmatmul.mubr.bf16.gmra.mxu0 %v347
    %v1968 = vpop.f32.mrf.mxu0
    %v1969 = vadd.f32 %v1920, %v1968
    %v1970 = vpop.f32.mrf.mxu0
    %v1971 = vpop.f32.mrf.mxu0
    %v1972 = vadd.f32 %v1923, %v1971
    %v1973 = vpop.f32.mrf.mxu0
    %1974 = vmatprep.mubr.bf16.mxu0 0
    %1975 = vmatmul.mubr.bf16.gmra.mxu0 %v350
    %v1976 = vpop.f32.mrf.mxu0
    %v1977 = vadd.f32 %v1928, %v1976
    %v1978 = vpop.f32.mrf.mxu0
    %v1979 = vpop.f32.mrf.mxu0
    %v1980 = vadd.f32 %v1931, %v1979
    %v1981 = vpop.f32.mrf.mxu0
    %1982 = vdwg.mxu0
    %v1983 = vpack.c.bf16 %v1553, %v1549
    %v1984 = vpack.c.bf16 %v1555, %v1551
    %v1985 = vpack.c.bf16 %v1659, %v1655
    %v1986 = vpack.c.bf16 %v1661, %v1657
    %v1987 = vpack.c.bf16 %v1765, %v1761
    %v1988 = vpack.c.bf16 %v1767, %v1763
    %v1989 = vpack.c.bf16 %v1871, %v1867
    %v1990 = vpack.c.bf16 %v1873, %v1869
    %v1991 = vpack.c.bf16 %v1972, %v1969
    %v1992 = vpack.c.bf16 %v1563, %v1559
    %v1993 = vpack.c.bf16 %v1565, %v1561
    %v1994 = vpack.c.bf16 %v1669, %v1665
    %v1995 = vpack.c.bf16 %v1671, %v1667
    %v1996 = vpack.c.bf16 %v1775, %v1771
    %v1997 = vpack.c.bf16 %v1777, %v1773
    %v1998 = vpack.c.bf16 %v1881, %v1877
    %v1999 = vpack.c.bf16 %v1883, %v1879
    %v2000 = vpack.c.bf16 %v1980, %v1977
    %v2001 = vld [vmem:[#allocation8] sm:$0xff]
    %v2002 = vld [vmem:[#allocation8 + $0x8] sm:$0xff]
    %vm2003 = vcmask 523264
    %v2005 = vsel %vm2003, %v1983, 0
    %v2008 = vsel %vm2003, %v1986, 0
    %2010 = vmatprep.subr.bf16.mxu0 0
    %2011 = vmatpush1.bf16.xpose.msra.mxu0 0
    %2012 = vmatprep.subr.bf16.mxu0 0
    %2013 = vmatpush1.bf16.xpose.msra.mxu0 0
    %2014 = vmatprep.subr.bf16.mxu0 0
    %2015 = vmatpush1.bf16.xpose.msra.mxu0 0
    %2016 = vmatprep.subr.bf16.mxu0 0
    %2017 = vmatpush1.bf16.xpose.msra.mxu0 0
    %2018 = vmatprep.subr.bf16.mxu0 0
    %2019 = vmatpush1.bf16.xpose.msra.mxu0 0
    %2020 = vmatprep.subr.bf16.mxu0 0
    %2021 = vmatpush1.bf16.xpose.msra.mxu0 0
    %2022 = vmatprep.subr.bf16.mxu0 0
    %2023 = vmatpush1.bf16.xpose.msra.mxu0 0
    %2024 = vmatprep.subr.bf16.mxu0 0
    %2025 = vmatpush1.bf16.xpose.msra.mxu0 %v2008
    %2026 = vmatprep.subr.bf16.mxu0 0
    %2027 = vmatpush2.bf16.xpose.msra.mxu0 0
    %2028 = vmatprep.subr.bf16.mxu0 0
    %2029 = vmatpush2.bf16.xpose.msra.mxu0 0
    %2030 = vmatprep.subr.bf16.mxu0 0
    %2031 = vmatpush2.bf16.xpose.msra.mxu0 0
    %2032 = vmatprep.subr.bf16.mxu0 0
    %2033 = vmatpush2.bf16.xpose.msra.mxu0 0
    %2034 = vmatprep.subr.bf16.mxu0 0
    %2035 = vmatpush2.bf16.xpose.msra.mxu0 0
    %2036 = vmatprep.subr.bf16.mxu0 0
    %2037 = vmatpush2.bf16.xpose.msra.mxu0 0
    %2038 = vmatprep.subr.bf16.mxu0 0
    %2039 = vmatpush2.bf16.xpose.msra.mxu0 0
    %2040 = vmatprep.subr.bf16.mxu0 0
    %2041 = vmatpush2.bf16.xpose.msra.mxu0 0
    %2042 = vmatprep.mubr.bf16.mxu0 0
    %2043 = vmatmul.mubr.bf16.gmra.mxu0 %v2005
    %v2044 = vpop.f32.mrf.mxu0
    %v2045 = vadd.f32 %v2001, %v2044
    %v2046 = vpop.f32.mrf.mxu0
    %v2047 = vpop.f32.mrf.mxu0
    %v2048 = vadd.f32 %v2002, %v2047
    %v2049 = vpop.f32.mrf.mxu0
    %2050 = vdwg.mxu0
    %vm2051 = vcmask 130048
    %v2052 = vsel %vm2051, %v2045, -inf
    %2053 = vmax.xlane.f32.xlu0 %v2052
    %v2054 = vpop.xlane.xlu0 %2053
    %v2055 = vsel %vm2051, %v2048, -inf
    %2056 = vmax.xlane.f32.xlu0 %v2055
    %v2057 = vpop.xlane.xlu0 %2056
    %v2058 = vsub.f32 %v2045, %v2054
    %v2059 = vsub.f32 %v2048, %v2057
    %v2060 = vmul.f32 %v2058, 1.442695
    %v2061 = vpow.pop %v2060
    %v2062 = vmul.f32 %v2059, 1.442695
    %v2063 = vpow.pop %v2062
    %v2064 = vsel %vm2051, %v2061, 0.0
    %2065 = vadd.xlane.f32.xlu0 %v2064
    %v2066 = vpop.xlane.xlu0 %2065
    %v2067 = vsel %vm2051, %v2063, 0.0
    %2068 = vadd.xlane.f32.xlu0 %v2067
    %v2069 = vpop.xlane.xlu0 %2068
    %v2070 = vrcp.pop %v2066
    %v2071 = vrcp.pop %v2069
    %v2072 = vmul.f32 %v2061, %v2070
    %v2073 = vmul.f32 %v2063, %v2071
    %v2074 = vpack.c.bf16 %v2073, %v2072
    %v2076 = vsel %vm2051, %v2074, 0
    %2078 = vmatprep.subr.bf16.mxu0 0
    %2079 = vmatpush1.bf16.msra.mxu0 0
    %2080 = vmatprep.subr.bf16.mxu0 0
    %2081 = vmatpush1.bf16.msra.mxu0 0
    %2082 = vmatprep.subr.bf16.mxu0 0
    %2083 = vmatpush1.bf16.msra.mxu0 0
    %2084 = vmatprep.subr.bf16.mxu0 0
    %2085 = vmatpush1.bf16.msra.mxu0 0
    %2086 = vmatprep.subr.bf16.mxu0 0
    %2087 = vmatpush1.bf16.msra.mxu0 0
    %2088 = vmatprep.subr.bf16.mxu0 0
    %2089 = vmatpush1.bf16.msra.mxu0 0
    %2090 = vmatprep.subr.bf16.mxu0 0
    %2091 = vmatpush1.bf16.msra.mxu0 0
    %2092 = vmatprep.subr.bf16.mxu0 0
    %2093 = vmatpush1.bf16.msra.mxu0 %v1989
    %2094 = vmatprep.subr.bf16.mxu0 0
    %2095 = vmatpush2.bf16.msra.mxu0 0
    %2096 = vmatprep.subr.bf16.mxu0 0
    %2097 = vmatpush2.bf16.msra.mxu0 0
    %2098 = vmatprep.subr.bf16.mxu0 0
    %2099 = vmatpush2.bf16.msra.mxu0 0
    %2100 = vmatprep.subr.bf16.mxu0 0
    %2101 = vmatpush2.bf16.msra.mxu0 0
    %2102 = vmatprep.subr.bf16.mxu0 0
    %2103 = vmatpush2.bf16.msra.mxu0 0
    %2104 = vmatprep.subr.bf16.mxu0 0
    %2105 = vmatpush2.bf16.msra.mxu0 0
    %2106 = vmatprep.subr.bf16.mxu0 0
    %2107 = vmatpush2.bf16.msra.mxu0 0
    %2108 = vmatprep.subr.bf16.mxu0 0
    %2109 = vmatpush2.bf16.msra.mxu0 0
    %2110 = vmatprep.mubr.bf16.mxu0 0
    %2111 = vmatmul.mubr.bf16.gmra.mxu0 %v2076
    %v2112 = vpop.f32.mrf.mxu0
    %v2113 = vadd.f32 0.0, %v2112
    %v2114 = vpop.f32.mrf.mxu0
    %v2115 = vpop.f32.mrf.mxu0
    %v2116 = vadd.f32 0.0, %v2115
    %v2117 = vpop.f32.mrf.mxu0
    %2118 = vdwg.mxu0
    %v2119 = vpack.c.bf16 %v2116, %v2113
    %2121 = vrot.lane.b32.xlu0 %v1983, 64
    %v2122 = vpop.permute.xlu0 %2121
    %2124 = vrot.lane.b32.xlu0 %v1986, 64
    %v2125 = vpop.permute.xlu0 %2124
    %v2127 = vsel %vm2003, %v2122, 0
    %v2130 = vsel %vm2003, %v2125, 0
    %2132 = vmatprep.subr.bf16.mxu0 0
    %2133 = vmatpush1.bf16.xpose.msra.mxu0 0
    %2134 = vmatprep.subr.bf16.mxu0 0
    %2135 = vmatpush1.bf16.xpose.msra.mxu0 0
    %2136 = vmatprep.subr.bf16.mxu0 0
    %2137 = vmatpush1.bf16.xpose.msra.mxu0 0
    %2138 = vmatprep.subr.bf16.mxu0 0
    %2139 = vmatpush1.bf16.xpose.msra.mxu0 0
    %2140 = vmatprep.subr.bf16.mxu0 0
    %2141 = vmatpush1.bf16.xpose.msra.mxu0 0
    %2142 = vmatprep.subr.bf16.mxu0 0
    %2143 = vmatpush1.bf16.xpose.msra.mxu0 0
    %2144 = vmatprep.subr.bf16.mxu0 0
    %2145 = vmatpush1.bf16.xpose.msra.mxu0 0
    %2146 = vmatprep.subr.bf16.mxu0 0
    %2147 = vmatpush1.bf16.xpose.msra.mxu0 %v2130
    %2148 = vmatprep.subr.bf16.mxu0 0
    %2149 = vmatpush2.bf16.xpose.msra.mxu0 0
    %2150 = vmatprep.subr.bf16.mxu0 0
    %2151 = vmatpush2.bf16.xpose.msra.mxu0 0
    %2152 = vmatprep.subr.bf16.mxu0 0
    %2153 = vmatpush2.bf16.xpose.msra.mxu0 0
    %2154 = vmatprep.subr.bf16.mxu0 0
    %2155 = vmatpush2.bf16.xpose.msra.mxu0 0
    %2156 = vmatprep.subr.bf16.mxu0 0
    %2157 = vmatpush2.bf16.xpose.msra.mxu0 0
    %2158 = vmatprep.subr.bf16.mxu0 0
    %2159 = vmatpush2.bf16.xpose.msra.mxu0 0
    %2160 = vmatprep.subr.bf16.mxu0 0
    %2161 = vmatpush2.bf16.xpose.msra.mxu0 0
    %2162 = vmatprep.subr.bf16.mxu0 0
    %2163 = vmatpush2.bf16.xpose.msra.mxu0 0
    %2164 = vmatprep.mubr.bf16.mxu0 0
    %2165 = vmatmul.mubr.bf16.gmra.mxu0 %v2127
    %v2166 = vpop.f32.mrf.mxu0
    %v2167 = vadd.f32 %v2001, %v2166
    %v2168 = vpop.f32.mrf.mxu0
    %v2169 = vpop.f32.mrf.mxu0
    %v2170 = vadd.f32 %v2002, %v2169
    %v2171 = vpop.f32.mrf.mxu0
    %2172 = vdwg.mxu0
    %v2173 = vsel %vm2051, %v2167, -inf
    %2174 = vmax.xlane.f32.xlu0 %v2173
    %v2175 = vpop.xlane.xlu0 %2174
    %v2176 = vsel %vm2051, %v2170, -inf
    %2177 = vmax.xlane.f32.xlu0 %v2176
    %v2178 = vpop.xlane.xlu0 %2177
    %v2179 = vsub.f32 %v2167, %v2175
    %v2180 = vsub.f32 %v2170, %v2178
    %v2181 = vmul.f32 %v2179, 1.442695
    %v2182 = vpow.pop %v2181
    %v2183 = vmul.f32 %v2180, 1.442695
    %v2184 = vpow.pop %v2183
    %v2185 = vsel %vm2051, %v2182, 0.0
    %2186 = vadd.xlane.f32.xlu0 %v2185
    %v2187 = vpop.xlane.xlu0 %2186
    %v2188 = vsel %vm2051, %v2184, 0.0
    %2189 = vadd.xlane.f32.xlu0 %v2188
    %v2190 = vpop.xlane.xlu0 %2189
    %v2191 = vrcp.pop %v2187
    %v2192 = vrcp.pop %v2190
    %v2193 = vmul.f32 %v2182, %v2191
    %v2194 = vmul.f32 %v2184, %v2192
    %v2195 = vpack.c.bf16 %v2194, %v2193
    %2197 = vrot.lane.b32.xlu0 %v1989, 64
    %v2198 = vpop.permute.xlu0 %2197
    %v2201 = vsel %vm2051, %v2195, 0
    %2203 = vmatprep.subr.bf16.mxu0 0
    %2204 = vmatpush1.bf16.msra.mxu0 0
    %2205 = vmatprep.subr.bf16.mxu0 0
    %2206 = vmatpush1.bf16.msra.mxu0 0
    %2207 = vmatprep.subr.bf16.mxu0 0
    %2208 = vmatpush1.bf16.msra.mxu0 0
    %2209 = vmatprep.subr.bf16.mxu0 0
    %2210 = vmatpush1.bf16.msra.mxu0 0
    %2211 = vmatprep.subr.bf16.mxu0 0
    %2212 = vmatpush1.bf16.msra.mxu0 0
    %2213 = vmatprep.subr.bf16.mxu0 0
    %2214 = vmatpush1.bf16.msra.mxu0 0
    %2215 = vmatprep.subr.bf16.mxu0 0
    %2216 = vmatpush1.bf16.msra.mxu0 0
    %2217 = vmatprep.subr.bf16.mxu0 0
    %2218 = vmatpush1.bf16.msra.mxu0 %v2198
    %2219 = vmatprep.subr.bf16.mxu0 0
    %2220 = vmatpush2.bf16.msra.mxu0 0
    %2221 = vmatprep.subr.bf16.mxu0 0
    %2222 = vmatpush2.bf16.msra.mxu0 0
    %2223 = vmatprep.subr.bf16.mxu0 0
    %2224 = vmatpush2.bf16.msra.mxu0 0
    %2225 = vmatprep.subr.bf16.mxu0 0
    %2226 = vmatpush2.bf16.msra.mxu0 0
    %2227 = vmatprep.subr.bf16.mxu0 0
    %2228 = vmatpush2.bf16.msra.mxu0 0
    %2229 = vmatprep.subr.bf16.mxu0 0
    %2230 = vmatpush2.bf16.msra.mxu0 0
    %2231 = vmatprep.subr.bf16.mxu0 0
    %2232 = vmatpush2.bf16.msra.mxu0 0
    %2233 = vmatprep.subr.bf16.mxu0 0
    %2234 = vmatpush2.bf16.msra.mxu0 0
    %2235 = vmatprep.mubr.bf16.mxu0 0
    %2236 = vmatmul.mubr.bf16.gmra.mxu0 %v2201
    %v2237 = vpop.f32.mrf.mxu0
    %v2238 = vadd.f32 0.0, %v2237
    %v2239 = vpop.f32.mrf.mxu0
    %v2240 = vpop.f32.mrf.mxu0
    %v2241 = vadd.f32 0.0, %v2240
    %v2242 = vpop.f32.mrf.mxu0
    %2243 = vdwg.mxu0
    %v2244 = vpack.c.bf16 %v2241, %v2238
    %v2246 = vsel %vm2003, %v1984, 0
    %v2249 = vsel %vm2003, %v1987, 0
    %2251 = vmatprep.subr.bf16.mxu0 0
    %2252 = vmatpush1.bf16.xpose.msra.mxu0 0
    %2253 = vmatprep.subr.bf16.mxu0 0
    %2254 = vmatpush1.bf16.xpose.msra.mxu0 0
    %2255 = vmatprep.subr.bf16.mxu0 0
    %2256 = vmatpush1.bf16.xpose.msra.mxu0 0
    %2257 = vmatprep.subr.bf16.mxu0 0
    %2258 = vmatpush1.bf16.xpose.msra.mxu0 0
    %2259 = vmatprep.subr.bf16.mxu0 0
    %2260 = vmatpush1.bf16.xpose.msra.mxu0 0
    %2261 = vmatprep.subr.bf16.mxu0 0
    %2262 = vmatpush1.bf16.xpose.msra.mxu0 0
    %2263 = vmatprep.subr.bf16.mxu0 0
    %2264 = vmatpush1.bf16.xpose.msra.mxu0 0
    %2265 = vmatprep.subr.bf16.mxu0 0
    %2266 = vmatpush1.bf16.xpose.msra.mxu0 %v2249
    %2267 = vmatprep.subr.bf16.mxu0 0
    %2268 = vmatpush2.bf16.xpose.msra.mxu0 0
    %2269 = vmatprep.subr.bf16.mxu0 0
    %2270 = vmatpush2.bf16.xpose.msra.mxu0 0
    %2271 = vmatprep.subr.bf16.mxu0 0
    %2272 = vmatpush2.bf16.xpose.msra.mxu0 0
    %2273 = vmatprep.subr.bf16.mxu0 0
    %2274 = vmatpush2.bf16.xpose.msra.mxu0 0
    %2275 = vmatprep.subr.bf16.mxu0 0
    %2276 = vmatpush2.bf16.xpose.msra.mxu0 0
    %2277 = vmatprep.subr.bf16.mxu0 0
    %2278 = vmatpush2.bf16.xpose.msra.mxu0 0
    %2279 = vmatprep.subr.bf16.mxu0 0
    %2280 = vmatpush2.bf16.xpose.msra.mxu0 0
    %2281 = vmatprep.subr.bf16.mxu0 0
    %2282 = vmatpush2.bf16.xpose.msra.mxu0 0
    %2283 = vmatprep.mubr.bf16.mxu0 0
    %2284 = vmatmul.mubr.bf16.gmra.mxu0 %v2246
    %v2285 = vpop.f32.mrf.mxu0
    %v2286 = vadd.f32 %v2001, %v2285
    %v2287 = vpop.f32.mrf.mxu0
    %v2288 = vpop.f32.mrf.mxu0
    %v2289 = vadd.f32 %v2002, %v2288
    %v2290 = vpop.f32.mrf.mxu0
    %2291 = vdwg.mxu0
    %v2292 = vsel %vm2051, %v2286, -inf
    %2293 = vmax.xlane.f32.xlu0 %v2292
    %v2294 = vpop.xlane.xlu0 %2293
    %v2295 = vsel %vm2051, %v2289, -inf
    %2296 = vmax.xlane.f32.xlu0 %v2295
    %v2297 = vpop.xlane.xlu0 %2296
    %v2298 = vsub.f32 %v2286, %v2294
    %v2299 = vsub.f32 %v2289, %v2297
    %v2300 = vmul.f32 %v2298, 1.442695
    %v2301 = vpow.pop %v2300
    %v2302 = vmul.f32 %v2299, 1.442695
    %v2303 = vpow.pop %v2302
    %v2304 = vsel %vm2051, %v2301, 0.0
    %2305 = vadd.xlane.f32.xlu0 %v2304
    %v2306 = vpop.xlane.xlu0 %2305
    %v2307 = vsel %vm2051, %v2303, 0.0
    %2308 = vadd.xlane.f32.xlu0 %v2307
    %v2309 = vpop.xlane.xlu0 %2308
    %v2310 = vrcp.pop %v2306
    %v2311 = vrcp.pop %v2309
    %v2312 = vmul.f32 %v2301, %v2310
    %v2313 = vmul.f32 %v2303, %v2311
    %v2314 = vpack.c.bf16 %v2313, %v2312
    %v2316 = vsel %vm2051, %v2314, 0
    %2318 = vmatprep.subr.bf16.mxu0 0
    %2319 = vmatpush1.bf16.msra.mxu0 0
    %2320 = vmatprep.subr.bf16.mxu0 0
    %2321 = vmatpush1.bf16.msra.mxu0 0
    %2322 = vmatprep.subr.bf16.mxu0 0
    %2323 = vmatpush1.bf16.msra.mxu0 0
    %2324 = vmatprep.subr.bf16.mxu0 0
    %2325 = vmatpush1.bf16.msra.mxu0 0
    %2326 = vmatprep.subr.bf16.mxu0 0
    %2327 = vmatpush1.bf16.msra.mxu0 0
    %2328 = vmatprep.subr.bf16.mxu0 0
    %2329 = vmatpush1.bf16.msra.mxu0 0
    %2330 = vmatprep.subr.bf16.mxu0 0
    %2331 = vmatpush1.bf16.msra.mxu0 0
    %2332 = vmatprep.subr.bf16.mxu0 0
    %2333 = vmatpush1.bf16.msra.mxu0 %v1990
    %2334 = vmatprep.subr.bf16.mxu0 0
    %2335 = vmatpush2.bf16.msra.mxu0 0
    %2336 = vmatprep.subr.bf16.mxu0 0
    %2337 = vmatpush2.bf16.msra.mxu0 0
    %2338 = vmatprep.subr.bf16.mxu0 0
    %2339 = vmatpush2.bf16.msra.mxu0 0
    %2340 = vmatprep.subr.bf16.mxu0 0
    %2341 = vmatpush2.bf16.msra.mxu0 0
    %2342 = vmatprep.subr.bf16.mxu0 0
    %2343 = vmatpush2.bf16.msra.mxu0 0
    %2344 = vmatprep.subr.bf16.mxu0 0
    %2345 = vmatpush2.bf16.msra.mxu0 0
    %2346 = vmatprep.subr.bf16.mxu0 0
    %2347 = vmatpush2.bf16.msra.mxu0 0
    %2348 = vmatprep.subr.bf16.mxu0 0
    %2349 = vmatpush2.bf16.msra.mxu0 0
    %2350 = vmatprep.mubr.bf16.mxu0 0
    %2351 = vmatmul.mubr.bf16.gmra.mxu0 %v2316
    %v2352 = vpop.f32.mrf.mxu0
    %v2353 = vadd.f32 0.0, %v2352
    %v2354 = vpop.f32.mrf.mxu0
    %v2355 = vpop.f32.mrf.mxu0
    %v2356 = vadd.f32 0.0, %v2355
    %v2357 = vpop.f32.mrf.mxu0
    %2358 = vdwg.mxu0
    %v2359 = vpack.c.bf16 %v2356, %v2353
    %2361 = vrot.lane.b32.xlu0 %v1984, 64
    %v2362 = vpop.permute.xlu0 %2361
    %2364 = vrot.lane.b32.xlu0 %v1987, 64
    %v2365 = vpop.permute.xlu0 %2364
    %v2367 = vsel %vm2003, %v2362, 0
    %v2370 = vsel %vm2003, %v2365, 0
    %2372 = vmatprep.subr.bf16.mxu0 0
    %2373 = vmatpush1.bf16.xpose.msra.mxu0 0
    %2374 = vmatprep.subr.bf16.mxu0 0
    %2375 = vmatpush1.bf16.xpose.msra.mxu0 0
    %2376 = vmatprep.subr.bf16.mxu0 0
    %2377 = vmatpush1.bf16.xpose.msra.mxu0 0
    %2378 = vmatprep.subr.bf16.mxu0 0
    %2379 = vmatpush1.bf16.xpose.msra.mxu0 0
    %2380 = vmatprep.subr.bf16.mxu0 0
    %2381 = vmatpush1.bf16.xpose.msra.mxu0 0
    %2382 = vmatprep.subr.bf16.mxu0 0
    %2383 = vmatpush1.bf16.xpose.msra.mxu0 0
    %2384 = vmatprep.subr.bf16.mxu0 0
    %2385 = vmatpush1.bf16.xpose.msra.mxu0 0
    %2386 = vmatprep.subr.bf16.mxu0 0
    %2387 = vmatpush1.bf16.xpose.msra.mxu0 %v2370
    %2388 = vmatprep.subr.bf16.mxu0 0
    %2389 = vmatpush2.bf16.xpose.msra.mxu0 0
    %2390 = vmatprep.subr.bf16.mxu0 0
    %2391 = vmatpush2.bf16.xpose.msra.mxu0 0
    %2392 = vmatprep.subr.bf16.mxu0 0
    %2393 = vmatpush2.bf16.xpose.msra.mxu0 0
    %2394 = vmatprep.subr.bf16.mxu0 0
    %2395 = vmatpush2.bf16.xpose.msra.mxu0 0
    %2396 = vmatprep.subr.bf16.mxu0 0
    %2397 = vmatpush2.bf16.xpose.msra.mxu0 0
    %2398 = vmatprep.subr.bf16.mxu0 0
    %2399 = vmatpush2.bf16.xpose.msra.mxu0 0
    %2400 = vmatprep.subr.bf16.mxu0 0
    %2401 = vmatpush2.bf16.xpose.msra.mxu0 0
    %2402 = vmatprep.subr.bf16.mxu0 0
    %2403 = vmatpush2.bf16.xpose.msra.mxu0 0
    %2404 = vmatprep.mubr.bf16.mxu0 0
    %2405 = vmatmul.mubr.bf16.gmra.mxu0 %v2367
    %v2406 = vpop.f32.mrf.mxu0
    %v2407 = vadd.f32 %v2001, %v2406
    %v2408 = vpop.f32.mrf.mxu0
    %v2409 = vpop.f32.mrf.mxu0
    %v2410 = vadd.f32 %v2002, %v2409
    %v2411 = vpop.f32.mrf.mxu0
    %2412 = vdwg.mxu0
    %v2413 = vsel %vm2051, %v2407, -inf
    %2414 = vmax.xlane.f32.xlu0 %v2413
    %v2415 = vpop.xlane.xlu0 %2414
    %v2416 = vsel %vm2051, %v2410, -inf
    %2417 = vmax.xlane.f32.xlu0 %v2416
    %v2418 = vpop.xlane.xlu0 %2417
    %v2419 = vsub.f32 %v2407, %v2415
    %v2420 = vsub.f32 %v2410, %v2418
    %v2421 = vmul.f32 %v2419, 1.442695
    %v2422 = vpow.pop %v2421
    %v2423 = vmul.f32 %v2420, 1.442695
    %v2424 = vpow.pop %v2423
    %v2425 = vsel %vm2051, %v2422, 0.0
    %2426 = vadd.xlane.f32.xlu0 %v2425
    %v2427 = vpop.xlane.xlu0 %2426
    %v2428 = vsel %vm2051, %v2424, 0.0
    %2429 = vadd.xlane.f32.xlu0 %v2428
    %v2430 = vpop.xlane.xlu0 %2429
    %v2431 = vrcp.pop %v2427
    %v2432 = vrcp.pop %v2430
    %v2433 = vmul.f32 %v2422, %v2431
    %v2434 = vmul.f32 %v2424, %v2432
    %v2435 = vpack.c.bf16 %v2434, %v2433
    %2437 = vrot.lane.b32.xlu0 %v1990, 64
    %v2438 = vpop.permute.xlu0 %2437
    %v2441 = vsel %vm2051, %v2435, 0
    %2443 = vmatprep.subr.bf16.mxu0 0
    %2444 = vmatpush1.bf16.msra.mxu0 0
    %2445 = vmatprep.subr.bf16.mxu0 0
    %2446 = vmatpush1.bf16.msra.mxu0 0
    %2447 = vmatprep.subr.bf16.mxu0 0
    %2448 = vmatpush1.bf16.msra.mxu0 0
    %2449 = vmatprep.subr.bf16.mxu0 0
    %2450 = vmatpush1.bf16.msra.mxu0 0
    %2451 = vmatprep.subr.bf16.mxu0 0
    %2452 = vmatpush1.bf16.msra.mxu0 0
    %2453 = vmatprep.subr.bf16.mxu0 0
    %2454 = vmatpush1.bf16.msra.mxu0 0
    %2455 = vmatprep.subr.bf16.mxu0 0
    %2456 = vmatpush1.bf16.msra.mxu0 0
    %2457 = vmatprep.subr.bf16.mxu0 0
    %2458 = vmatpush1.bf16.msra.mxu0 %v2438
    %2459 = vmatprep.subr.bf16.mxu0 0
    %2460 = vmatpush2.bf16.msra.mxu0 0
    %2461 = vmatprep.subr.bf16.mxu0 0
    %2462 = vmatpush2.bf16.msra.mxu0 0
    %2463 = vmatprep.subr.bf16.mxu0 0
    %2464 = vmatpush2.bf16.msra.mxu0 0
    %2465 = vmatprep.subr.bf16.mxu0 0
    %2466 = vmatpush2.bf16.msra.mxu0 0
    %2467 = vmatprep.subr.bf16.mxu0 0
    %2468 = vmatpush2.bf16.msra.mxu0 0
    %2469 = vmatprep.subr.bf16.mxu0 0
    %2470 = vmatpush2.bf16.msra.mxu0 0
    %2471 = vmatprep.subr.bf16.mxu0 0
    %2472 = vmatpush2.bf16.msra.mxu0 0
    %2473 = vmatprep.subr.bf16.mxu0 0
    %2474 = vmatpush2.bf16.msra.mxu0 0
    %2475 = vmatprep.mubr.bf16.mxu0 0
    %2476 = vmatmul.mubr.bf16.gmra.mxu0 %v2441
    %v2477 = vpop.f32.mrf.mxu0
    %v2478 = vadd.f32 0.0, %v2477
    %v2479 = vpop.f32.mrf.mxu0
    %v2480 = vpop.f32.mrf.mxu0
    %v2481 = vadd.f32 0.0, %v2480
    %v2482 = vpop.f32.mrf.mxu0
    %2483 = vdwg.mxu0
    %v2484 = vpack.c.bf16 %v2481, %v2478
    %v2486 = vsel %vm2003, %v1985, 0
    %v2489 = vsel %vm2003, %v1988, 0
    %2491 = vmatprep.subr.bf16.mxu0 0
    %2492 = vmatpush1.bf16.xpose.msra.mxu0 0
    %2493 = vmatprep.subr.bf16.mxu0 0
    %2494 = vmatpush1.bf16.xpose.msra.mxu0 0
    %2495 = vmatprep.subr.bf16.mxu0 0
    %2496 = vmatpush1.bf16.xpose.msra.mxu0 0
    %2497 = vmatprep.subr.bf16.mxu0 0
    %2498 = vmatpush1.bf16.xpose.msra.mxu0 0
    %2499 = vmatprep.subr.bf16.mxu0 0
    %2500 = vmatpush1.bf16.xpose.msra.mxu0 0
    %2501 = vmatprep.subr.bf16.mxu0 0
    %2502 = vmatpush1.bf16.xpose.msra.mxu0 0
    %2503 = vmatprep.subr.bf16.mxu0 0
    %2504 = vmatpush1.bf16.xpose.msra.mxu0 0
    %2505 = vmatprep.subr.bf16.mxu0 0
    %2506 = vmatpush1.bf16.xpose.msra.mxu0 %v2489
    %2507 = vmatprep.subr.bf16.mxu0 0
    %2508 = vmatpush2.bf16.xpose.msra.mxu0 0
    %2509 = vmatprep.subr.bf16.mxu0 0
    %2510 = vmatpush2.bf16.xpose.msra.mxu0 0
    %2511 = vmatprep.subr.bf16.mxu0 0
    %2512 = vmatpush2.bf16.xpose.msra.mxu0 0
    %2513 = vmatprep.subr.bf16.mxu0 0
    %2514 = vmatpush2.bf16.xpose.msra.mxu0 0
    %2515 = vmatprep.subr.bf16.mxu0 0
    %2516 = vmatpush2.bf16.xpose.msra.mxu0 0
    %2517 = vmatprep.subr.bf16.mxu0 0
    %2518 = vmatpush2.bf16.xpose.msra.mxu0 0
    %2519 = vmatprep.subr.bf16.mxu0 0
    %2520 = vmatpush2.bf16.xpose.msra.mxu0 0
    %2521 = vmatprep.subr.bf16.mxu0 0
    %2522 = vmatpush2.bf16.xpose.msra.mxu0 0
    %2523 = vmatprep.mubr.bf16.mxu0 0
    %2524 = vmatmul.mubr.bf16.gmra.mxu0 %v2486
    %v2525 = vpop.f32.mrf.mxu0
    %v2526 = vadd.f32 %v2001, %v2525
    %v2527 = vpop.f32.mrf.mxu0
    %v2528 = vpop.f32.mrf.mxu0
    %v2529 = vadd.f32 %v2002, %v2528
    %v2530 = vpop.f32.mrf.mxu0
    %2531 = vdwg.mxu0
    %v2532 = vsel %vm2051, %v2526, -inf
    %2533 = vmax.xlane.f32.xlu0 %v2532
    %v2534 = vpop.xlane.xlu0 %2533
    %v2535 = vsel %vm2051, %v2529, -inf
    %2536 = vmax.xlane.f32.xlu0 %v2535
    %v2537 = vpop.xlane.xlu0 %2536
    %v2538 = vsub.f32 %v2526, %v2534
    %v2539 = vsub.f32 %v2529, %v2537
    %v2540 = vmul.f32 %v2538, 1.442695
    %v2541 = vpow.pop %v2540
    %v2542 = vmul.f32 %v2539, 1.442695
    %v2543 = vpow.pop %v2542
    %v2544 = vsel %vm2051, %v2541, 0.0
    %2545 = vadd.xlane.f32.xlu0 %v2544
    %v2546 = vpop.xlane.xlu0 %2545
    %v2547 = vsel %vm2051, %v2543, 0.0
    %2548 = vadd.xlane.f32.xlu0 %v2547
    %v2549 = vpop.xlane.xlu0 %2548
    %v2550 = vrcp.pop %v2546
    %v2551 = vrcp.pop %v2549
    %v2552 = vmul.f32 %v2541, %v2550
    %v2553 = vmul.f32 %v2543, %v2551
    %v2554 = vpack.c.bf16 %v2553, %v2552
    %v2556 = vsel %vm2051, %v2554, 0
    %2558 = vmatprep.subr.bf16.mxu0 0
    %2559 = vmatpush1.bf16.msra.mxu0 0
    %2560 = vmatprep.subr.bf16.mxu0 0
    %2561 = vmatpush1.bf16.msra.mxu0 0
    %2562 = vmatprep.subr.bf16.mxu0 0
    %2563 = vmatpush1.bf16.msra.mxu0 0
    %2564 = vmatprep.subr.bf16.mxu0 0
    %2565 = vmatpush1.bf16.msra.mxu0 0
    %2566 = vmatprep.subr.bf16.mxu0 0
    %2567 = vmatpush1.bf16.msra.mxu0 0
    %2568 = vmatprep.subr.bf16.mxu0 0
    %2569 = vmatpush1.bf16.msra.mxu0 0
    %2570 = vmatprep.subr.bf16.mxu0 0
    %2571 = vmatpush1.bf16.msra.mxu0 0
    %2572 = vmatprep.subr.bf16.mxu0 0
    %2573 = vmatpush1.bf16.msra.mxu0 %v1991
    %2574 = vmatprep.subr.bf16.mxu0 0
    %2575 = vmatpush2.bf16.msra.mxu0 0
    %2576 = vmatprep.subr.bf16.mxu0 0
    %2577 = vmatpush2.bf16.msra.mxu0 0
    %2578 = vmatprep.subr.bf16.mxu0 0
    %2579 = vmatpush2.bf16.msra.mxu0 0
    %2580 = vmatprep.subr.bf16.mxu0 0
    %2581 = vmatpush2.bf16.msra.mxu0 0
    %2582 = vmatprep.subr.bf16.mxu0 0
    %2583 = vmatpush2.bf16.msra.mxu0 0
    %2584 = vmatprep.subr.bf16.mxu0 0
    %2585 = vmatpush2.bf16.msra.mxu0 0
    %2586 = vmatprep.subr.bf16.mxu0 0
    %2587 = vmatpush2.bf16.msra.mxu0 0
    %2588 = vmatprep.subr.bf16.mxu0 0
    %2589 = vmatpush2.bf16.msra.mxu0 0
    %2590 = vmatprep.mubr.bf16.mxu0 0
    %2591 = vmatmul.mubr.bf16.gmra.mxu0 %v2556
    %v2592 = vpop.f32.mrf.mxu0
    %v2593 = vadd.f32 0.0, %v2592
    %v2594 = vpop.f32.mrf.mxu0
    %v2595 = vpop.f32.mrf.mxu0
    %v2596 = vadd.f32 0.0, %v2595
    %v2597 = vpop.f32.mrf.mxu0
    %2598 = vdwg.mxu0
    %v2599 = vpack.c.bf16 %v2596, %v2593
    %2601 = vrot.lane.b32.xlu0 %v1985, 64
    %v2602 = vpop.permute.xlu0 %2601
    %2604 = vrot.lane.b32.xlu0 %v1988, 64
    %v2605 = vpop.permute.xlu0 %2604
    %v2607 = vsel %vm2003, %v2602, 0
    %v2610 = vsel %vm2003, %v2605, 0
    %2612 = vmatprep.subr.bf16.mxu0 0
    %2613 = vmatpush1.bf16.xpose.msra.mxu0 0
    %2614 = vmatprep.subr.bf16.mxu0 0
    %2615 = vmatpush1.bf16.xpose.msra.mxu0 0
    %2616 = vmatprep.subr.bf16.mxu0 0
    %2617 = vmatpush1.bf16.xpose.msra.mxu0 0
    %2618 = vmatprep.subr.bf16.mxu0 0
    %2619 = vmatpush1.bf16.xpose.msra.mxu0 0
    %2620 = vmatprep.subr.bf16.mxu0 0
    %2621 = vmatpush1.bf16.xpose.msra.mxu0 0
    %2622 = vmatprep.subr.bf16.mxu0 0
    %2623 = vmatpush1.bf16.xpose.msra.mxu0 0
    %2624 = vmatprep.subr.bf16.mxu0 0
    %2625 = vmatpush1.bf16.xpose.msra.mxu0 0
    %2626 = vmatprep.subr.bf16.mxu0 0
    %2627 = vmatpush1.bf16.xpose.msra.mxu0 %v2610
    %2628 = vmatprep.subr.bf16.mxu0 0
    %2629 = vmatpush2.bf16.xpose.msra.mxu0 0
    %2630 = vmatprep.subr.bf16.mxu0 0
    %2631 = vmatpush2.bf16.xpose.msra.mxu0 0
    %2632 = vmatprep.subr.bf16.mxu0 0
    %2633 = vmatpush2.bf16.xpose.msra.mxu0 0
    %2634 = vmatprep.subr.bf16.mxu0 0
    %2635 = vmatpush2.bf16.xpose.msra.mxu0 0
    %2636 = vmatprep.subr.bf16.mxu0 0
    %2637 = vmatpush2.bf16.xpose.msra.mxu0 0
    %2638 = vmatprep.subr.bf16.mxu0 0
    %2639 = vmatpush2.bf16.xpose.msra.mxu0 0
    %2640 = vmatprep.subr.bf16.mxu0 0
    %2641 = vmatpush2.bf16.xpose.msra.mxu0 0
    %2642 = vmatprep.subr.bf16.mxu0 0
    %2643 = vmatpush2.bf16.xpose.msra.mxu0 0
    %2644 = vmatprep.mubr.bf16.mxu0 0
    %2645 = vmatmul.mubr.bf16.gmra.mxu0 %v2607
    %v2646 = vpop.f32.mrf.mxu0
    %v2647 = vadd.f32 %v2001, %v2646
    %v2648 = vpop.f32.mrf.mxu0
    %v2649 = vpop.f32.mrf.mxu0
    %v2650 = vadd.f32 %v2002, %v2649
    %v2651 = vpop.f32.mrf.mxu0
    %2652 = vdwg.mxu0
    %v2653 = vsel %vm2051, %v2647, -inf
    %2654 = vmax.xlane.f32.xlu0 %v2653
    %v2655 = vpop.xlane.xlu0 %2654
    %v2656 = vsel %vm2051, %v2650, -inf
    %2657 = vmax.xlane.f32.xlu0 %v2656
    %v2658 = vpop.xlane.xlu0 %2657
    %v2659 = vsub.f32 %v2647, %v2655
    %v2660 = vsub.f32 %v2650, %v2658
    %v2661 = vmul.f32 %v2659, 1.442695
    %v2662 = vpow.pop %v2661
    %v2663 = vmul.f32 %v2660, 1.442695
    %v2664 = vpow.pop %v2663
    %v2665 = vsel %vm2051, %v2662, 0.0
    %2666 = vadd.xlane.f32.xlu0 %v2665
    %v2667 = vpop.xlane.xlu0 %2666
    %v2668 = vsel %vm2051, %v2664, 0.0
    %2669 = vadd.xlane.f32.xlu0 %v2668
    %v2670 = vpop.xlane.xlu0 %2669
    %v2671 = vrcp.pop %v2667
    %v2672 = vrcp.pop %v2670
    %v2673 = vmul.f32 %v2662, %v2671
    %v2674 = vmul.f32 %v2664, %v2672
    %v2675 = vpack.c.bf16 %v2674, %v2673
    %2677 = vrot.lane.b32.xlu0 %v1991, 64
    %v2678 = vpop.permute.xlu0 %2677
    %v2681 = vsel %vm2051, %v2675, 0
    %2683 = vmatprep.subr.bf16.mxu0 0
    %2684 = vmatpush1.bf16.msra.mxu0 0
    %2685 = vmatprep.subr.bf16.mxu0 0
    %2686 = vmatpush1.bf16.msra.mxu0 0
    %2687 = vmatprep.subr.bf16.mxu0 0
    %2688 = vmatpush1.bf16.msra.mxu0 0
    %2689 = vmatprep.subr.bf16.mxu0 0
    %2690 = vmatpush1.bf16.msra.mxu0 0
    %2691 = vmatprep.subr.bf16.mxu0 0
    %2692 = vmatpush1.bf16.msra.mxu0 0
    %2693 = vmatprep.subr.bf16.mxu0 0
    %2694 = vmatpush1.bf16.msra.mxu0 0
    %2695 = vmatprep.subr.bf16.mxu0 0
    %2696 = vmatpush1.bf16.msra.mxu0 0
    %2697 = vmatprep.subr.bf16.mxu0 0
    %2698 = vmatpush1.bf16.msra.mxu0 %v2678
    %2699 = vmatprep.subr.bf16.mxu0 0
    %2700 = vmatpush2.bf16.msra.mxu0 0
    %2701 = vmatprep.subr.bf16.mxu0 0
    %2702 = vmatpush2.bf16.msra.mxu0 0
    %2703 = vmatprep.subr.bf16.mxu0 0
    %2704 = vmatpush2.bf16.msra.mxu0 0
    %2705 = vmatprep.subr.bf16.mxu0 0
    %2706 = vmatpush2.bf16.msra.mxu0 0
    %2707 = vmatprep.subr.bf16.mxu0 0
    %2708 = vmatpush2.bf16.msra.mxu0 0
    %2709 = vmatprep.subr.bf16.mxu0 0
    %2710 = vmatpush2.bf16.msra.mxu0 0
    %2711 = vmatprep.subr.bf16.mxu0 0
    %2712 = vmatpush2.bf16.msra.mxu0 0
    %2713 = vmatprep.subr.bf16.mxu0 0
    %2714 = vmatpush2.bf16.msra.mxu0 0
    %2715 = vmatprep.mubr.bf16.mxu0 0
    %2716 = vmatmul.mubr.bf16.gmra.mxu0 %v2681
    %v2717 = vpop.f32.mrf.mxu0
    %v2718 = vadd.f32 0.0, %v2717
    %v2719 = vpop.f32.mrf.mxu0
    %v2720 = vpop.f32.mrf.mxu0
    %v2721 = vadd.f32 0.0, %v2720
    %v2722 = vpop.f32.mrf.mxu0
    %2723 = vdwg.mxu0
    %v2724 = vpack.c.bf16 %v2721, %v2718
    %2726 = vrot.lane.b32.xlu0 %v2244, 64
    %v2727 = vpop.permute.xlu0 %2726
    %2729 = vrot.lane.b32.xlu0 %v2484, 64
    %v2730 = vpop.permute.xlu0 %2729
    %2732 = vrot.lane.b32.xlu0 %v2724, 64
    %v2733 = vpop.permute.xlu0 %2732
    %v2736 = vsel %vm2003, %v2119, %v2727
    %v2740 = vsel %vm2003, %v2359, %v2730
    %v2744 = vsel %vm2003, %v2599, %v2733
    %v2747 = vsel %vm2003, %v1992, 0
    %v2750 = vsel %vm2003, %v1995, 0
    %2752 = vmatprep.subr.bf16.mxu0 0
    %2753 = vmatpush1.bf16.xpose.msra.mxu0 0
    %2754 = vmatprep.subr.bf16.mxu0 0
    %2755 = vmatpush1.bf16.xpose.msra.mxu0 0
    %2756 = vmatprep.subr.bf16.mxu0 0
    %2757 = vmatpush1.bf16.xpose.msra.mxu0 0
    %2758 = vmatprep.subr.bf16.mxu0 0
    %2759 = vmatpush1.bf16.xpose.msra.mxu0 0
    %2760 = vmatprep.subr.bf16.mxu0 0
    %2761 = vmatpush1.bf16.xpose.msra.mxu0 0
    %2762 = vmatprep.subr.bf16.mxu0 0
    %2763 = vmatpush1.bf16.xpose.msra.mxu0 0
    %2764 = vmatprep.subr.bf16.mxu0 0
    %2765 = vmatpush1.bf16.xpose.msra.mxu0 0
    %2766 = vmatprep.subr.bf16.mxu0 0
    %2767 = vmatpush1.bf16.xpose.msra.mxu0 %v2750
    %2768 = vmatprep.subr.bf16.mxu0 0
    %2769 = vmatpush2.bf16.xpose.msra.mxu0 0
    %2770 = vmatprep.subr.bf16.mxu0 0
    %2771 = vmatpush2.bf16.xpose.msra.mxu0 0
    %2772 = vmatprep.subr.bf16.mxu0 0
    %2773 = vmatpush2.bf16.xpose.msra.mxu0 0
    %2774 = vmatprep.subr.bf16.mxu0 0
    %2775 = vmatpush2.bf16.xpose.msra.mxu0 0
    %2776 = vmatprep.subr.bf16.mxu0 0
    %2777 = vmatpush2.bf16.xpose.msra.mxu0 0
    %2778 = vmatprep.subr.bf16.mxu0 0
    %2779 = vmatpush2.bf16.xpose.msra.mxu0 0
    %2780 = vmatprep.subr.bf16.mxu0 0
    %2781 = vmatpush2.bf16.xpose.msra.mxu0 0
    %2782 = vmatprep.subr.bf16.mxu0 0
    %2783 = vmatpush2.bf16.xpose.msra.mxu0 0
    %2784 = vmatprep.mubr.bf16.mxu0 0
    %2785 = vmatmul.mubr.bf16.gmra.mxu0 %v2747
    %v2786 = vpop.f32.mrf.mxu0
    %v2787 = vadd.f32 %v2001, %v2786
    %v2788 = vpop.f32.mrf.mxu0
    %v2789 = vpop.f32.mrf.mxu0
    %v2790 = vadd.f32 %v2002, %v2789
    %v2791 = vpop.f32.mrf.mxu0
    %2792 = vdwg.mxu0
    %v2793 = vsel %vm2051, %v2787, -inf
    %2794 = vmax.xlane.f32.xlu0 %v2793
    %v2795 = vpop.xlane.xlu0 %2794
    %v2796 = vsel %vm2051, %v2790, -inf
    %2797 = vmax.xlane.f32.xlu0 %v2796
    %v2798 = vpop.xlane.xlu0 %2797
    %v2799 = vsub.f32 %v2787, %v2795
    %v2800 = vsub.f32 %v2790, %v2798
    %v2801 = vmul.f32 %v2799, 1.442695
    %v2802 = vpow.pop %v2801
    %v2803 = vmul.f32 %v2800, 1.442695
    %v2804 = vpow.pop %v2803
    %v2805 = vsel %vm2051, %v2802, 0.0
    %2806 = vadd.xlane.f32.xlu0 %v2805
    %v2807 = vpop.xlane.xlu0 %2806
    %v2808 = vsel %vm2051, %v2804, 0.0
    %2809 = vadd.xlane.f32.xlu0 %v2808
    %v2810 = vpop.xlane.xlu0 %2809
    %v2811 = vrcp.pop %v2807
    %v2812 = vrcp.pop %v2810
    %v2813 = vmul.f32 %v2802, %v2811
    %v2814 = vmul.f32 %v2804, %v2812
    %v2815 = vpack.c.bf16 %v2814, %v2813
    %v2817 = vsel %vm2051, %v2815, 0
    %2819 = vmatprep.subr.bf16.mxu0 0
    %2820 = vmatpush1.bf16.msra.mxu0 0
    %2821 = vmatprep.subr.bf16.mxu0 0
    %2822 = vmatpush1.bf16.msra.mxu0 0
    %2823 = vmatprep.subr.bf16.mxu0 0
    %2824 = vmatpush1.bf16.msra.mxu0 0
    %2825 = vmatprep.subr.bf16.mxu0 0
    %2826 = vmatpush1.bf16.msra.mxu0 0
    %2827 = vmatprep.subr.bf16.mxu0 0
    %2828 = vmatpush1.bf16.msra.mxu0 0
    %2829 = vmatprep.subr.bf16.mxu0 0
    %2830 = vmatpush1.bf16.msra.mxu0 0
    %2831 = vmatprep.subr.bf16.mxu0 0
    %2832 = vmatpush1.bf16.msra.mxu0 0
    %2833 = vmatprep.subr.bf16.mxu0 0
    %2834 = vmatpush1.bf16.msra.mxu0 %v1998
    %2835 = vmatprep.subr.bf16.mxu0 0
    %2836 = vmatpush2.bf16.msra.mxu0 0
    %2837 = vmatprep.subr.bf16.mxu0 0
    %2838 = vmatpush2.bf16.msra.mxu0 0
    %2839 = vmatprep.subr.bf16.mxu0 0
    %2840 = vmatpush2.bf16.msra.mxu0 0
    %2841 = vmatprep.subr.bf16.mxu0 0
    %2842 = vmatpush2.bf16.msra.mxu0 0
    %2843 = vmatprep.subr.bf16.mxu0 0
    %2844 = vmatpush2.bf16.msra.mxu0 0
    %2845 = vmatprep.subr.bf16.mxu0 0
    %2846 = vmatpush2.bf16.msra.mxu0 0
    %2847 = vmatprep.subr.bf16.mxu0 0
    %2848 = vmatpush2.bf16.msra.mxu0 0
    %2849 = vmatprep.subr.bf16.mxu0 0
    %2850 = vmatpush2.bf16.msra.mxu0 0
    %2851 = vmatprep.mubr.bf16.mxu0 0
    %2852 = vmatmul.mubr.bf16.gmra.mxu0 %v2817
    %v2853 = vpop.f32.mrf.mxu0
    %v2854 = vadd.f32 0.0, %v2853
    %v2855 = vpop.f32.mrf.mxu0
    %v2856 = vpop.f32.mrf.mxu0
    %v2857 = vadd.f32 0.0, %v2856
    %v2858 = vpop.f32.mrf.mxu0
    %2859 = vdwg.mxu0
    %v2860 = vpack.c.bf16 %v2857, %v2854
    %2862 = vrot.lane.b32.xlu0 %v1992, 64
    %v2863 = vpop.permute.xlu0 %2862
    %2865 = vrot.lane.b32.xlu0 %v1995, 64
    %v2866 = vpop.permute.xlu0 %2865
    %v2868 = vsel %vm2003, %v2863, 0
    %v2871 = vsel %vm2003, %v2866, 0
    %2873 = vmatprep.subr.bf16.mxu0 0
    %2874 = vmatpush1.bf16.xpose.msra.mxu0 0
    %2875 = vmatprep.subr.bf16.mxu0 0
    %2876 = vmatpush1.bf16.xpose.msra.mxu0 0
    %2877 = vmatprep.subr.bf16.mxu0 0
    %2878 = vmatpush1.bf16.xpose.msra.mxu0 0
    %2879 = vmatprep.subr.bf16.mxu0 0
    %2880 = vmatpush1.bf16.xpose.msra.mxu0 0
    %2881 = vmatprep.subr.bf16.mxu0 0
    %2882 = vmatpush1.bf16.xpose.msra.mxu0 0
    %2883 = vmatprep.subr.bf16.mxu0 0
    %2884 = vmatpush1.bf16.xpose.msra.mxu0 0
    %2885 = vmatprep.subr.bf16.mxu0 0
    %2886 = vmatpush1.bf16.xpose.msra.mxu0 0
    %2887 = vmatprep.subr.bf16.mxu0 0
    %2888 = vmatpush1.bf16.xpose.msra.mxu0 %v2871
    %2889 = vmatprep.subr.bf16.mxu0 0
    %2890 = vmatpush2.bf16.xpose.msra.mxu0 0
    %2891 = vmatprep.subr.bf16.mxu0 0
    %2892 = vmatpush2.bf16.xpose.msra.mxu0 0
    %2893 = vmatprep.subr.bf16.mxu0 0
    %2894 = vmatpush2.bf16.xpose.msra.mxu0 0
    %2895 = vmatprep.subr.bf16.mxu0 0
    %2896 = vmatpush2.bf16.xpose.msra.mxu0 0
    %2897 = vmatprep.subr.bf16.mxu0 0
    %2898 = vmatpush2.bf16.xpose.msra.mxu0 0
    %2899 = vmatprep.subr.bf16.mxu0 0
    %2900 = vmatpush2.bf16.xpose.msra.mxu0 0
    %2901 = vmatprep.subr.bf16.mxu0 0
    %2902 = vmatpush2.bf16.xpose.msra.mxu0 0
    %2903 = vmatprep.subr.bf16.mxu0 0
    %2904 = vmatpush2.bf16.xpose.msra.mxu0 0
    %2905 = vmatprep.mubr.bf16.mxu0 0
    %2906 = vmatmul.mubr.bf16.gmra.mxu0 %v2868
    %v2907 = vpop.f32.mrf.mxu0
    %v2908 = vadd.f32 %v2001, %v2907
    %v2909 = vpop.f32.mrf.mxu0
    %v2910 = vpop.f32.mrf.mxu0
    %v2911 = vadd.f32 %v2002, %v2910
    %v2912 = vpop.f32.mrf.mxu0
    %2913 = vdwg.mxu0
    %v2914 = vsel %vm2051, %v2908, -inf
    %2915 = vmax.xlane.f32.xlu0 %v2914
    %v2916 = vpop.xlane.xlu0 %2915
    %v2917 = vsel %vm2051, %v2911, -inf
    %2918 = vmax.xlane.f32.xlu0 %v2917
    %v2919 = vpop.xlane.xlu0 %2918
    %v2920 = vsub.f32 %v2908, %v2916
    %v2921 = vsub.f32 %v2911, %v2919
    %v2922 = vmul.f32 %v2920, 1.442695
    %v2923 = vpow.pop %v2922
    %v2924 = vmul.f32 %v2921, 1.442695
    %v2925 = vpow.pop %v2924
    %v2926 = vsel %vm2051, %v2923, 0.0
    %2927 = vadd.xlane.f32.xlu0 %v2926
    %v2928 = vpop.xlane.xlu0 %2927
    %v2929 = vsel %vm2051, %v2925, 0.0
    %2930 = vadd.xlane.f32.xlu0 %v2929
    %v2931 = vpop.xlane.xlu0 %2930
    %v2932 = vrcp.pop %v2928
    %v2933 = vrcp.pop %v2931
    %v2934 = vmul.f32 %v2923, %v2932
    %v2935 = vmul.f32 %v2925, %v2933
    %v2936 = vpack.c.bf16 %v2935, %v2934
    %2938 = vrot.lane.b32.xlu0 %v1998, 64
    %v2939 = vpop.permute.xlu0 %2938
    %v2942 = vsel %vm2051, %v2936, 0
    %2944 = vmatprep.subr.bf16.mxu0 0
    %2945 = vmatpush1.bf16.msra.mxu0 0
    %2946 = vmatprep.subr.bf16.mxu0 0
    %2947 = vmatpush1.bf16.msra.mxu0 0
    %2948 = vmatprep.subr.bf16.mxu0 0
    %2949 = vmatpush1.bf16.msra.mxu0 0
    %2950 = vmatprep.subr.bf16.mxu0 0
    %2951 = vmatpush1.bf16.msra.mxu0 0
    %2952 = vmatprep.subr.bf16.mxu0 0
    %2953 = vmatpush1.bf16.msra.mxu0 0
    %2954 = vmatprep.subr.bf16.mxu0 0
    %2955 = vmatpush1.bf16.msra.mxu0 0
    %2956 = vmatprep.subr.bf16.mxu0 0
    %2957 = vmatpush1.bf16.msra.mxu0 0
    %2958 = vmatprep.subr.bf16.mxu0 0
    %2959 = vmatpush1.bf16.msra.mxu0 %v2939
    %2960 = vmatprep.subr.bf16.mxu0 0
    %2961 = vmatpush2.bf16.msra.mxu0 0
    %2962 = vmatprep.subr.bf16.mxu0 0
    %2963 = vmatpush2.bf16.msra.mxu0 0
    %2964 = vmatprep.subr.bf16.mxu0 0
    %2965 = vmatpush2.bf16.msra.mxu0 0
    %2966 = vmatprep.subr.bf16.mxu0 0
    %2967 = vmatpush2.bf16.msra.mxu0 0
    %2968 = vmatprep.subr.bf16.mxu0 0
    %2969 = vmatpush2.bf16.msra.mxu0 0
    %2970 = vmatprep.subr.bf16.mxu0 0
    %2971 = vmatpush2.bf16.msra.mxu0 0
    %2972 = vmatprep.subr.bf16.mxu0 0
    %2973 = vmatpush2.bf16.msra.mxu0 0
    %2974 = vmatprep.subr.bf16.mxu0 0
    %2975 = vmatpush2.bf16.msra.mxu0 0
    %2976 = vmatprep.mubr.bf16.mxu0 0
    %2977 = vmatmul.mubr.bf16.gmra.mxu0 %v2942
    %v2978 = vpop.f32.mrf.mxu0
    %v2979 = vadd.f32 0.0, %v2978
    %v2980 = vpop.f32.mrf.mxu0
    %v2981 = vpop.f32.mrf.mxu0
    %v2982 = vadd.f32 0.0, %v2981
    %v2983 = vpop.f32.mrf.mxu0
    %2984 = vdwg.mxu0
    %v2985 = vpack.c.bf16 %v2982, %v2979
    %v2987 = vsel %vm2003, %v1993, 0
    %v2990 = vsel %vm2003, %v1996, 0
    %2992 = vmatprep.subr.bf16.mxu0 0
    %2993 = vmatpush1.bf16.xpose.msra.mxu0 0
    %2994 = vmatprep.subr.bf16.mxu0 0
    %2995 = vmatpush1.bf16.xpose.msra.mxu0 0
    %2996 = vmatprep.subr.bf16.mxu0 0
    %2997 = vmatpush1.bf16.xpose.msra.mxu0 0
    %2998 = vmatprep.subr.bf16.mxu0 0
    %2999 = vmatpush1.bf16.xpose.msra.mxu0 0
    %3000 = vmatprep.subr.bf16.mxu0 0
    %3001 = vmatpush1.bf16.xpose.msra.mxu0 0
    %3002 = vmatprep.subr.bf16.mxu0 0
    %3003 = vmatpush1.bf16.xpose.msra.mxu0 0
    %3004 = vmatprep.subr.bf16.mxu0 0
    %3005 = vmatpush1.bf16.xpose.msra.mxu0 0
    %3006 = vmatprep.subr.bf16.mxu0 0
    %3007 = vmatpush1.bf16.xpose.msra.mxu0 %v2990
    %3008 = vmatprep.subr.bf16.mxu0 0
    %3009 = vmatpush2.bf16.xpose.msra.mxu0 0
    %3010 = vmatprep.subr.bf16.mxu0 0
    %3011 = vmatpush2.bf16.xpose.msra.mxu0 0
    %3012 = vmatprep.subr.bf16.mxu0 0
    %3013 = vmatpush2.bf16.xpose.msra.mxu0 0
    %3014 = vmatprep.subr.bf16.mxu0 0
    %3015 = vmatpush2.bf16.xpose.msra.mxu0 0
    %3016 = vmatprep.subr.bf16.mxu0 0
    %3017 = vmatpush2.bf16.xpose.msra.mxu0 0
    %3018 = vmatprep.subr.bf16.mxu0 0
    %3019 = vmatpush2.bf16.xpose.msra.mxu0 0
    %3020 = vmatprep.subr.bf16.mxu0 0
    %3021 = vmatpush2.bf16.xpose.msra.mxu0 0
    %3022 = vmatprep.subr.bf16.mxu0 0
    %3023 = vmatpush2.bf16.xpose.msra.mxu0 0
    %3024 = vmatprep.mubr.bf16.mxu0 0
    %3025 = vmatmul.mubr.bf16.gmra.mxu0 %v2987
    %v3026 = vpop.f32.mrf.mxu0
    %v3027 = vadd.f32 %v2001, %v3026
    %v3028 = vpop.f32.mrf.mxu0
    %v3029 = vpop.f32.mrf.mxu0
    %v3030 = vadd.f32 %v2002, %v3029
    %v3031 = vpop.f32.mrf.mxu0
    %3032 = vdwg.mxu0
    %v3033 = vsel %vm2051, %v3027, -inf
    %3034 = vmax.xlane.f32.xlu0 %v3033
    %v3035 = vpop.xlane.xlu0 %3034
    %v3036 = vsel %vm2051, %v3030, -inf
    %3037 = vmax.xlane.f32.xlu0 %v3036
    %v3038 = vpop.xlane.xlu0 %3037
    %v3039 = vsub.f32 %v3027, %v3035
    %v3040 = vsub.f32 %v3030, %v3038
    %v3041 = vmul.f32 %v3039, 1.442695
    %v3042 = vpow.pop %v3041
    %v3043 = vmul.f32 %v3040, 1.442695
    %v3044 = vpow.pop %v3043
    %v3045 = vsel %vm2051, %v3042, 0.0
    %3046 = vadd.xlane.f32.xlu0 %v3045
    %v3047 = vpop.xlane.xlu0 %3046
    %v3048 = vsel %vm2051, %v3044, 0.0
    %3049 = vadd.xlane.f32.xlu0 %v3048
    %v3050 = vpop.xlane.xlu0 %3049
    %v3051 = vrcp.pop %v3047
    %v3052 = vrcp.pop %v3050
    %v3053 = vmul.f32 %v3042, %v3051
    %v3054 = vmul.f32 %v3044, %v3052
    %v3055 = vpack.c.bf16 %v3054, %v3053
    %v3057 = vsel %vm2051, %v3055, 0
    %3059 = vmatprep.subr.bf16.mxu0 0
    %3060 = vmatpush1.bf16.msra.mxu0 0
    %3061 = vmatprep.subr.bf16.mxu0 0
    %3062 = vmatpush1.bf16.msra.mxu0 0
    %3063 = vmatprep.subr.bf16.mxu0 0
    %3064 = vmatpush1.bf16.msra.mxu0 0
    %3065 = vmatprep.subr.bf16.mxu0 0
    %3066 = vmatpush1.bf16.msra.mxu0 0
    %3067 = vmatprep.subr.bf16.mxu0 0
    %3068 = vmatpush1.bf16.msra.mxu0 0
    %3069 = vmatprep.subr.bf16.mxu0 0
    %3070 = vmatpush1.bf16.msra.mxu0 0
    %3071 = vmatprep.subr.bf16.mxu0 0
    %3072 = vmatpush1.bf16.msra.mxu0 0
    %3073 = vmatprep.subr.bf16.mxu0 0
    %3074 = vmatpush1.bf16.msra.mxu0 %v1999
    %3075 = vmatprep.subr.bf16.mxu0 0
    %3076 = vmatpush2.bf16.msra.mxu0 0
    %3077 = vmatprep.subr.bf16.mxu0 0
    %3078 = vmatpush2.bf16.msra.mxu0 0
    %3079 = vmatprep.subr.bf16.mxu0 0
    %3080 = vmatpush2.bf16.msra.mxu0 0
    %3081 = vmatprep.subr.bf16.mxu0 0
    %3082 = vmatpush2.bf16.msra.mxu0 0
    %3083 = vmatprep.subr.bf16.mxu0 0
    %3084 = vmatpush2.bf16.msra.mxu0 0
    %3085 = vmatprep.subr.bf16.mxu0 0
    %3086 = vmatpush2.bf16.msra.mxu0 0
    %3087 = vmatprep.subr.bf16.mxu0 0
    %3088 = vmatpush2.bf16.msra.mxu0 0
    %3089 = vmatprep.subr.bf16.mxu0 0
    %3090 = vmatpush2.bf16.msra.mxu0 0
    %3091 = vmatprep.mubr.bf16.mxu0 0
    %3092 = vmatmul.mubr.bf16.gmra.mxu0 %v3057
    %v3093 = vpop.f32.mrf.mxu0
    %v3094 = vadd.f32 0.0, %v3093
    %v3095 = vpop.f32.mrf.mxu0
    %v3096 = vpop.f32.mrf.mxu0
    %v3097 = vadd.f32 0.0, %v3096
    %v3098 = vpop.f32.mrf.mxu0
    %3099 = vdwg.mxu0
    %v3100 = vpack.c.bf16 %v3097, %v3094
    %3102 = vrot.lane.b32.xlu0 %v1993, 64
    %v3103 = vpop.permute.xlu0 %3102
    %3105 = vrot.lane.b32.xlu0 %v1996, 64
    %v3106 = vpop.permute.xlu0 %3105
    %v3108 = vsel %vm2003, %v3103, 0
    %v3111 = vsel %vm2003, %v3106, 0
    %3113 = vmatprep.subr.bf16.mxu0 0
    %3114 = vmatpush1.bf16.xpose.msra.mxu0 0
    %3115 = vmatprep.subr.bf16.mxu0 0
    %3116 = vmatpush1.bf16.xpose.msra.mxu0 0
    %3117 = vmatprep.subr.bf16.mxu0 0
    %3118 = vmatpush1.bf16.xpose.msra.mxu0 0
    %3119 = vmatprep.subr.bf16.mxu0 0
    %3120 = vmatpush1.bf16.xpose.msra.mxu0 0
    %3121 = vmatprep.subr.bf16.mxu0 0
    %3122 = vmatpush1.bf16.xpose.msra.mxu0 0
    %3123 = vmatprep.subr.bf16.mxu0 0
    %3124 = vmatpush1.bf16.xpose.msra.mxu0 0
    %3125 = vmatprep.subr.bf16.mxu0 0
    %3126 = vmatpush1.bf16.xpose.msra.mxu0 0
    %3127 = vmatprep.subr.bf16.mxu0 0
    %3128 = vmatpush1.bf16.xpose.msra.mxu0 %v3111
    %3129 = vmatprep.subr.bf16.mxu0 0
    %3130 = vmatpush2.bf16.xpose.msra.mxu0 0
    %3131 = vmatprep.subr.bf16.mxu0 0
    %3132 = vmatpush2.bf16.xpose.msra.mxu0 0
    %3133 = vmatprep.subr.bf16.mxu0 0
    %3134 = vmatpush2.bf16.xpose.msra.mxu0 0
    %3135 = vmatprep.subr.bf16.mxu0 0
    %3136 = vmatpush2.bf16.xpose.msra.mxu0 0
    %3137 = vmatprep.subr.bf16.mxu0 0
    %3138 = vmatpush2.bf16.xpose.msra.mxu0 0
    %3139 = vmatprep.subr.bf16.mxu0 0
    %3140 = vmatpush2.bf16.xpose.msra.mxu0 0
    %3141 = vmatprep.subr.bf16.mxu0 0
    %3142 = vmatpush2.bf16.xpose.msra.mxu0 0
    %3143 = vmatprep.subr.bf16.mxu0 0
    %3144 = vmatpush2.bf16.xpose.msra.mxu0 0
    %3145 = vmatprep.mubr.bf16.mxu0 0
    %3146 = vmatmul.mubr.bf16.gmra.mxu0 %v3108
    %v3147 = vpop.f32.mrf.mxu0
    %v3148 = vadd.f32 %v2001, %v3147
    %v3149 = vpop.f32.mrf.mxu0
    %v3150 = vpop.f32.mrf.mxu0
    %v3151 = vadd.f32 %v2002, %v3150
    %v3152 = vpop.f32.mrf.mxu0
    %3153 = vdwg.mxu0
    %v3154 = vsel %vm2051, %v3148, -inf
    %3155 = vmax.xlane.f32.xlu0 %v3154
    %v3156 = vpop.xlane.xlu0 %3155
    %v3157 = vsel %vm2051, %v3151, -inf
    %3158 = vmax.xlane.f32.xlu0 %v3157
    %v3159 = vpop.xlane.xlu0 %3158
    %v3160 = vsub.f32 %v3148, %v3156
    %v3161 = vsub.f32 %v3151, %v3159
    %v3162 = vmul.f32 %v3160, 1.442695
    %v3163 = vpow.pop %v3162
    %v3164 = vmul.f32 %v3161, 1.442695
    %v3165 = vpow.pop %v3164
    %v3166 = vsel %vm2051, %v3163, 0.0
    %3167 = vadd.xlane.f32.xlu0 %v3166
    %v3168 = vpop.xlane.xlu0 %3167
    %v3169 = vsel %vm2051, %v3165, 0.0
    %3170 = vadd.xlane.f32.xlu0 %v3169
    %v3171 = vpop.xlane.xlu0 %3170
    %v3172 = vrcp.pop %v3168
    %v3173 = vrcp.pop %v3171
    %v3174 = vmul.f32 %v3163, %v3172
    %v3175 = vmul.f32 %v3165, %v3173
    %v3176 = vpack.c.bf16 %v3175, %v3174
    %3178 = vrot.lane.b32.xlu0 %v1999, 64
    %v3179 = vpop.permute.xlu0 %3178
    %v3182 = vsel %vm2051, %v3176, 0
    %3184 = vmatprep.subr.bf16.mxu0 0
    %3185 = vmatpush1.bf16.msra.mxu0 0
    %3186 = vmatprep.subr.bf16.mxu0 0
    %3187 = vmatpush1.bf16.msra.mxu0 0
    %3188 = vmatprep.subr.bf16.mxu0 0
    %3189 = vmatpush1.bf16.msra.mxu0 0
    %3190 = vmatprep.subr.bf16.mxu0 0
    %3191 = vmatpush1.bf16.msra.mxu0 0
    %3192 = vmatprep.subr.bf16.mxu0 0
    %3193 = vmatpush1.bf16.msra.mxu0 0
    %3194 = vmatprep.subr.bf16.mxu0 0
    %3195 = vmatpush1.bf16.msra.mxu0 0
    %3196 = vmatprep.subr.bf16.mxu0 0
    %3197 = vmatpush1.bf16.msra.mxu0 0
    %3198 = vmatprep.subr.bf16.mxu0 0
    %3199 = vmatpush1.bf16.msra.mxu0 %v3179
    %3200 = vmatprep.subr.bf16.mxu0 0
    %3201 = vmatpush2.bf16.msra.mxu0 0
    %3202 = vmatprep.subr.bf16.mxu0 0
    %3203 = vmatpush2.bf16.msra.mxu0 0
    %3204 = vmatprep.subr.bf16.mxu0 0
    %3205 = vmatpush2.bf16.msra.mxu0 0
    %3206 = vmatprep.subr.bf16.mxu0 0
    %3207 = vmatpush2.bf16.msra.mxu0 0
    %3208 = vmatprep.subr.bf16.mxu0 0
    %3209 = vmatpush2.bf16.msra.mxu0 0
    %3210 = vmatprep.subr.bf16.mxu0 0
    %3211 = vmatpush2.bf16.msra.mxu0 0
    %3212 = vmatprep.subr.bf16.mxu0 0
    %3213 = vmatpush2.bf16.msra.mxu0 0
    %3214 = vmatprep.subr.bf16.mxu0 0
    %3215 = vmatpush2.bf16.msra.mxu0 0
    %3216 = vmatprep.mubr.bf16.mxu0 0
    %3217 = vmatmul.mubr.bf16.gmra.mxu0 %v3182
    %v3218 = vpop.f32.mrf.mxu0
    %v3219 = vadd.f32 0.0, %v3218
    %v3220 = vpop.f32.mrf.mxu0
    %v3221 = vpop.f32.mrf.mxu0
    %v3222 = vadd.f32 0.0, %v3221
    %v3223 = vpop.f32.mrf.mxu0
    %3224 = vdwg.mxu0
    %v3225 = vpack.c.bf16 %v3222, %v3219
    %v3227 = vsel %vm2003, %v1994, 0
    %v3230 = vsel %vm2003, %v1997, 0
    %3232 = vmatprep.subr.bf16.mxu0 0
    %3233 = vmatpush1.bf16.xpose.msra.mxu0 0
    %3234 = vmatprep.subr.bf16.mxu0 0
    %3235 = vmatpush1.bf16.xpose.msra.mxu0 0
    %3236 = vmatprep.subr.bf16.mxu0 0
    %3237 = vmatpush1.bf16.xpose.msra.mxu0 0
    %3238 = vmatprep.subr.bf16.mxu0 0
    %3239 = vmatpush1.bf16.xpose.msra.mxu0 0
    %3240 = vmatprep.subr.bf16.mxu0 0
    %3241 = vmatpush1.bf16.xpose.msra.mxu0 0
    %3242 = vmatprep.subr.bf16.mxu0 0
    %3243 = vmatpush1.bf16.xpose.msra.mxu0 0
    %3244 = vmatprep.subr.bf16.mxu0 0
    %3245 = vmatpush1.bf16.xpose.msra.mxu0 0
    %3246 = vmatprep.subr.bf16.mxu0 0
    %3247 = vmatpush1.bf16.xpose.msra.mxu0 %v3230
    %3248 = vmatprep.subr.bf16.mxu0 0
    %3249 = vmatpush2.bf16.xpose.msra.mxu0 0
    %3250 = vmatprep.subr.bf16.mxu0 0
    %3251 = vmatpush2.bf16.xpose.msra.mxu0 0
    %3252 = vmatprep.subr.bf16.mxu0 0
    %3253 = vmatpush2.bf16.xpose.msra.mxu0 0
    %3254 = vmatprep.subr.bf16.mxu0 0
    %3255 = vmatpush2.bf16.xpose.msra.mxu0 0
    %3256 = vmatprep.subr.bf16.mxu0 0
    %3257 = vmatpush2.bf16.xpose.msra.mxu0 0
    %3258 = vmatprep.subr.bf16.mxu0 0
    %3259 = vmatpush2.bf16.xpose.msra.mxu0 0
    %3260 = vmatprep.subr.bf16.mxu0 0
    %3261 = vmatpush2.bf16.xpose.msra.mxu0 0
    %3262 = vmatprep.subr.bf16.mxu0 0
    %3263 = vmatpush2.bf16.xpose.msra.mxu0 0
    %3264 = vmatprep.mubr.bf16.mxu0 0
    %3265 = vmatmul.mubr.bf16.gmra.mxu0 %v3227
    %v3266 = vpop.f32.mrf.mxu0
    %v3267 = vadd.f32 %v2001, %v3266
    %v3268 = vpop.f32.mrf.mxu0
    %v3269 = vpop.f32.mrf.mxu0
    %v3270 = vadd.f32 %v2002, %v3269
    %v3271 = vpop.f32.mrf.mxu0
    %3272 = vdwg.mxu0
    %v3273 = vsel %vm2051, %v3267, -inf
    %3274 = vmax.xlane.f32.xlu0 %v3273
    %v3275 = vpop.xlane.xlu0 %3274
    %v3276 = vsel %vm2051, %v3270, -inf
    %3277 = vmax.xlane.f32.xlu0 %v3276
    %v3278 = vpop.xlane.xlu0 %3277
    %v3279 = vsub.f32 %v3267, %v3275
    %v3280 = vsub.f32 %v3270, %v3278
    %v3281 = vmul.f32 %v3279, 1.442695
    %v3282 = vpow.pop %v3281
    %v3283 = vmul.f32 %v3280, 1.442695
    %v3284 = vpow.pop %v3283
    %v3285 = vsel %vm2051, %v3282, 0.0
    %3286 = vadd.xlane.f32.xlu0 %v3285
    %v3287 = vpop.xlane.xlu0 %3286
    %v3288 = vsel %vm2051, %v3284, 0.0
    %3289 = vadd.xlane.f32.xlu0 %v3288
    %v3290 = vpop.xlane.xlu0 %3289
    %v3291 = vrcp.pop %v3287
    %v3292 = vrcp.pop %v3290
    %v3293 = vmul.f32 %v3282, %v3291
    %v3294 = vmul.f32 %v3284, %v3292
    %v3295 = vpack.c.bf16 %v3294, %v3293
    %v3297 = vsel %vm2051, %v3295, 0
    %3299 = vmatprep.subr.bf16.mxu0 0
    %3300 = vmatpush1.bf16.msra.mxu0 0
    %3301 = vmatprep.subr.bf16.mxu0 0
    %3302 = vmatpush1.bf16.msra.mxu0 0
    %3303 = vmatprep.subr.bf16.mxu0 0
    %3304 = vmatpush1.bf16.msra.mxu0 0
    %3305 = vmatprep.subr.bf16.mxu0 0
    %3306 = vmatpush1.bf16.msra.mxu0 0
    %3307 = vmatprep.subr.bf16.mxu0 0
    %3308 = vmatpush1.bf16.msra.mxu0 0
    %3309 = vmatprep.subr.bf16.mxu0 0
    %3310 = vmatpush1.bf16.msra.mxu0 0
    %3311 = vmatprep.subr.bf16.mxu0 0
    %3312 = vmatpush1.bf16.msra.mxu0 0
    %3313 = vmatprep.subr.bf16.mxu0 0
    %3314 = vmatpush1.bf16.msra.mxu0 %v2000
    %3315 = vmatprep.subr.bf16.mxu0 0
    %3316 = vmatpush2.bf16.msra.mxu0 0
    %3317 = vmatprep.subr.bf16.mxu0 0
    %3318 = vmatpush2.bf16.msra.mxu0 0
    %3319 = vmatprep.subr.bf16.mxu0 0
    %3320 = vmatpush2.bf16.msra.mxu0 0
    %3321 = vmatprep.subr.bf16.mxu0 0
    %3322 = vmatpush2.bf16.msra.mxu0 0
    %3323 = vmatprep.subr.bf16.mxu0 0
    %3324 = vmatpush2.bf16.msra.mxu0 0
    %3325 = vmatprep.subr.bf16.mxu0 0
    %3326 = vmatpush2.bf16.msra.mxu0 0
    %3327 = vmatprep.subr.bf16.mxu0 0
    %3328 = vmatpush2.bf16.msra.mxu0 0
    %3329 = vmatprep.subr.bf16.mxu0 0
    %3330 = vmatpush2.bf16.msra.mxu0 0
    %3331 = vmatprep.mubr.bf16.mxu0 0
    %3332 = vmatmul.mubr.bf16.gmra.mxu0 %v3297
    %v3333 = vpop.f32.mrf.mxu0
    %v3334 = vadd.f32 0.0, %v3333
    %v3335 = vpop.f32.mrf.mxu0
    %v3336 = vpop.f32.mrf.mxu0
    %v3337 = vadd.f32 0.0, %v3336
    %v3338 = vpop.f32.mrf.mxu0
    %3339 = vdwg.mxu0
    %v3340 = vpack.c.bf16 %v3337, %v3334
    %3342 = vrot.lane.b32.xlu0 %v1994, 64
    %v3343 = vpop.permute.xlu0 %3342
    %3345 = vrot.lane.b32.xlu0 %v1997, 64
    %v3346 = vpop.permute.xlu0 %3345
    %v3348 = vsel %vm2003, %v3343, 0
    %v3351 = vsel %vm2003, %v3346, 0
    %3353 = vmatprep.subr.bf16.mxu0 0
    %3354 = vmatpush1.bf16.xpose.msra.mxu0 0
    %3355 = vmatprep.subr.bf16.mxu0 0
    %3356 = vmatpush1.bf16.xpose.msra.mxu0 0
    %3357 = vmatprep.subr.bf16.mxu0 0
    %3358 = vmatpush1.bf16.xpose.msra.mxu0 0
    %3359 = vmatprep.subr.bf16.mxu0 0
    %3360 = vmatpush1.bf16.xpose.msra.mxu0 0
    %3361 = vmatprep.subr.bf16.mxu0 0
    %3362 = vmatpush1.bf16.xpose.msra.mxu0 0
    %3363 = vmatprep.subr.bf16.mxu0 0
    %3364 = vmatpush1.bf16.xpose.msra.mxu0 0
    %3365 = vmatprep.subr.bf16.mxu0 0
    %3366 = vmatpush1.bf16.xpose.msra.mxu0 0
    %3367 = vmatprep.subr.bf16.mxu0 0
    %3368 = vmatpush1.bf16.xpose.msra.mxu0 %v3351
    %3369 = vmatprep.subr.bf16.mxu0 0
    %3370 = vmatpush2.bf16.xpose.msra.mxu0 0
    %3371 = vmatprep.subr.bf16.mxu0 0
    %3372 = vmatpush2.bf16.xpose.msra.mxu0 0
    %3373 = vmatprep.subr.bf16.mxu0 0
    %3374 = vmatpush2.bf16.xpose.msra.mxu0 0
    %3375 = vmatprep.subr.bf16.mxu0 0
    %3376 = vmatpush2.bf16.xpose.msra.mxu0 0
    %3377 = vmatprep.subr.bf16.mxu0 0
    %3378 = vmatpush2.bf16.xpose.msra.mxu0 0
    %3379 = vmatprep.subr.bf16.mxu0 0
    %3380 = vmatpush2.bf16.xpose.msra.mxu0 0
    %3381 = vmatprep.subr.bf16.mxu0 0
    %3382 = vmatpush2.bf16.xpose.msra.mxu0 0
    %3383 = vmatprep.subr.bf16.mxu0 0
    %3384 = vmatpush2.bf16.xpose.msra.mxu0 0
    %3385 = vmatprep.mubr.bf16.mxu0 0
    %3386 = vmatmul.mubr.bf16.gmra.mxu0 %v3348
    %v3387 = vpop.f32.mrf.mxu0
    %v3388 = vadd.f32 %v2001, %v3387
    %v3389 = vpop.f32.mrf.mxu0
    %v3390 = vpop.f32.mrf.mxu0
    %v3391 = vadd.f32 %v2002, %v3390
    %v3392 = vpop.f32.mrf.mxu0
    %3393 = vdwg.mxu0
    %v3394 = vsel %vm2051, %v3388, -inf
    %3395 = vmax.xlane.f32.xlu0 %v3394
    %v3396 = vpop.xlane.xlu0 %3395
    %v3397 = vsel %vm2051, %v3391, -inf
    %3398 = vmax.xlane.f32.xlu0 %v3397
    %v3399 = vpop.xlane.xlu0 %3398
    %v3400 = vsub.f32 %v3388, %v3396
    %v3401 = vsub.f32 %v3391, %v3399
    %v3402 = vmul.f32 %v3400, 1.442695
    %v3403 = vpow.pop %v3402
    %v3404 = vmul.f32 %v3401, 1.442695
    %v3405 = vpow.pop %v3404
    %v3406 = vsel %vm2051, %v3403, 0.0
    %3407 = vadd.xlane.f32.xlu0 %v3406
    %v3408 = vpop.xlane.xlu0 %3407
    %v3409 = vsel %vm2051, %v3405, 0.0
    %3410 = vadd.xlane.f32.xlu0 %v3409
    %v3411 = vpop.xlane.xlu0 %3410
    %v3412 = vrcp.pop %v3408
    %v3413 = vrcp.pop %v3411
    %v3414 = vmul.f32 %v3403, %v3412
    %v3415 = vmul.f32 %v3405, %v3413
    %v3416 = vpack.c.bf16 %v3415, %v3414
    %3418 = vrot.lane.b32.xlu0 %v2000, 64
    %v3419 = vpop.permute.xlu0 %3418
    %v3422 = vsel %vm2051, %v3416, 0
    %3424 = vmatprep.subr.bf16.mxu0 0
    %3425 = vmatpush1.bf16.msra.mxu0 0
    %3426 = vmatprep.subr.bf16.mxu0 0
    %3427 = vmatpush1.bf16.msra.mxu0 0
    %3428 = vmatprep.subr.bf16.mxu0 0
    %3429 = vmatpush1.bf16.msra.mxu0 0
    %3430 = vmatprep.subr.bf16.mxu0 0
    %3431 = vmatpush1.bf16.msra.mxu0 0
    %3432 = vmatprep.subr.bf16.mxu0 0
    %3433 = vmatpush1.bf16.msra.mxu0 0
    %3434 = vmatprep.subr.bf16.mxu0 0
    %3435 = vmatpush1.bf16.msra.mxu0 0
    %3436 = vmatprep.subr.bf16.mxu0 0
    %3437 = vmatpush1.bf16.msra.mxu0 0
    %3438 = vmatprep.subr.bf16.mxu0 0
    %3439 = vmatpush1.bf16.msra.mxu0 %v3419
    %3440 = vmatprep.subr.bf16.mxu0 0
    %3441 = vmatpush2.bf16.msra.mxu0 0
    %3442 = vmatprep.subr.bf16.mxu0 0
    %3443 = vmatpush2.bf16.msra.mxu0 0
    %3444 = vmatprep.subr.bf16.mxu0 0
    %3445 = vmatpush2.bf16.msra.mxu0 0
    %3446 = vmatprep.subr.bf16.mxu0 0
    %3447 = vmatpush2.bf16.msra.mxu0 0
    %3448 = vmatprep.subr.bf16.mxu0 0
    %3449 = vmatpush2.bf16.msra.mxu0 0
    %3450 = vmatprep.subr.bf16.mxu0 0
    %3451 = vmatpush2.bf16.msra.mxu0 0
    %3452 = vmatprep.subr.bf16.mxu0 0
    %3453 = vmatpush2.bf16.msra.mxu0 0
    %3454 = vmatprep.subr.bf16.mxu0 0
    %3455 = vmatpush2.bf16.msra.mxu0 0
    %3456 = vmatprep.mubr.bf16.mxu0 0
    %3457 = vmatmul.mubr.bf16.gmra.mxu0 %v3422
    %v3458 = vpop.f32.mrf.mxu0
    %v3459 = vadd.f32 0.0, %v3458
    %v3460 = vpop.f32.mrf.mxu0
    %v3461 = vpop.f32.mrf.mxu0
    %v3462 = vadd.f32 0.0, %v3461
    %v3463 = vpop.f32.mrf.mxu0
    %3464 = vdwg.mxu0
    %v3465 = vpack.c.bf16 %v3462, %v3459
    %3467 = vrot.lane.b32.xlu0 %v2985, 64
    %v3468 = vpop.permute.xlu0 %3467
    %3470 = vrot.lane.b32.xlu0 %v3225, 64
    %v3471 = vpop.permute.xlu0 %3470
    %3473 = vrot.lane.b32.xlu0 %v3465, 64
    %v3474 = vpop.permute.xlu0 %3473
    %v3477 = vsel %vm2003, %v2860, %v3468
    %v3481 = vsel %vm2003, %v3100, %v3471
    %v3485 = vsel %vm2003, %v3340, %v3474
    %v3487 = vld [vmem:[#allocation7] sm:$0xff]
    %v3488 = vld [vmem:[#allocation7 + $0x8] sm:$0xf]
    %v3489 = vld [vmem:[#allocation7 + $0xc] sm:$0xff]
    %v3490 = vld [vmem:[#allocation7 + $0x14] sm:$0xf]
    %v3491 = vld [vmem:[#allocation7 + $0x18] sm:$0xff]
    %v3492 = vld [vmem:[#allocation7 + $0x20] sm:$0xf]
    %v3493 = vld [vmem:[#allocation7 + $0x24] sm:$0xff]
    %v3494 = vld [vmem:[#allocation7 + $0x2c] sm:$0xf]
    %v3495 = vld [vmem:[#allocation7 + $0x30] sm:$0xff]
    %v3496 = vld [vmem:[#allocation7 + $0x38] sm:$0xf]
    %v3497 = vld [vmem:[#allocation7 + $0x3c] sm:$0xff]
    %v3498 = vld [vmem:[#allocation7 + $0x44] sm:$0xf]
    %v3499 = vld [vmem:[#allocation7 + $0x48] sm:$0xff]
    %v3500 = vld [vmem:[#allocation7 + $0x50] sm:$0xf]
    %v3501 = vld [vmem:[#allocation7 + $0x54] sm:$0xff]
    %v3502 = vld [vmem:[#allocation7 + $0x5c] sm:$0xf]
    %v3503 = vld [vmem:[#allocation7 + $0x60] sm:$0xff]
    %v3504 = vld [vmem:[#allocation7 + $0x68] sm:$0xf]
    %v3505 = vld [vmem:[#allocation7 + $0x6c] sm:$0xff]
    %v3506 = vld [vmem:[#allocation7 + $0x74] sm:$0xf]
    %v3507 = vld [vmem:[#allocation7 + $0x78] sm:$0xff]
    %v3508 = vld [vmem:[#allocation7 + $0x80] sm:$0xf]
    %v3509 = vld [vmem:[#allocation7 + $0x84] sm:$0xff]
    %v3510 = vld [vmem:[#allocation7 + $0x8c] sm:$0xf]
    %v3511 = vld [vmem:[#allocation7 + $0x90] sm:$0xff]
    %v3512 = vld [vmem:[#allocation7 + $0x98] sm:$0xf]
    %v3513 = vld [vmem:[#allocation7 + $0x9c] sm:$0xff]
    %v3514 = vld [vmem:[#allocation7 + $0xa4] sm:$0xf]
    %v3515 = vld [vmem:[#allocation7 + $0xa8] sm:$0xff]
    %v3516 = vld [vmem:[#allocation7 + $0xb0] sm:$0xf]
    %v3517 = vld [vmem:[#allocation7 + $0xb4] sm:$0xff]
    %v3518 = vld [vmem:[#allocation7 + $0xbc] sm:$0xf]
    %v3519 = vld [vmem:[#allocation7 + $0xc0] sm:$0xff]
    %v3520 = vld [vmem:[#allocation7 + $0xc8] sm:$0xf]
    %v3521 = vld [vmem:[#allocation7 + $0xcc] sm:$0xff]
    %v3522 = vld [vmem:[#allocation7 + $0xd4] sm:$0xf]
    %v3523 = vld [vmem:[#allocation7 + $0xd8] sm:$0xff]
    %v3524 = vld [vmem:[#allocation7 + $0xe0] sm:$0xf]
    %v3525 = vld [vmem:[#allocation7 + $0xe4] sm:$0xff]
    %v3526 = vld [vmem:[#allocation7 + $0xec] sm:$0xf]
    %v3527 = vld [vmem:[#allocation7 + $0xf0] sm:$0xff]
    %v3528 = vld [vmem:[#allocation7 + $0xf8] sm:$0xf]
    %v3529 = vld [vmem:[#allocation7 + $0xfc] sm:$0xff]
    %v3530 = vld [vmem:[#allocation7 + $0x104] sm:$0xf]
    %v3531 = vld [vmem:[#allocation7 + $0x108] sm:$0xff]
    %v3532 = vld [vmem:[#allocation7 + $0x110] sm:$0xf]
    %v3533 = vld [vmem:[#allocation7 + $0x114] sm:$0xff]
    %v3534 = vld [vmem:[#allocation7 + $0x11c] sm:$0xf]
    %v3535 = vld [vmem:[#allocation7 + $0x120] sm:$0xff]
    %v3536 = vld [vmem:[#allocation7 + $0x128] sm:$0xf]
    %v3537 = vld [vmem:[#allocation7 + $0x12c] sm:$0xff]
    %v3538 = vld [vmem:[#allocation7 + $0x134] sm:$0xf]
    %v3539 = vld [vmem:[#allocation7 + $0x138] sm:$0xff]
    %v3540 = vld [vmem:[#allocation7 + $0x140] sm:$0xf]
    %v3541 = vld [vmem:[#allocation7 + $0x144] sm:$0xff]
    %v3542 = vld [vmem:[#allocation7 + $0x14c] sm:$0xf]
    %v3543 = vld [vmem:[#allocation7 + $0x150] sm:$0xff]
    %v3544 = vld [vmem:[#allocation7 + $0x158] sm:$0xf]
    %v3545 = vld [vmem:[#allocation7 + $0x15c] sm:$0xff]
    %v3546 = vld [vmem:[#allocation7 + $0x164] sm:$0xf]
    %v3547 = vld [vmem:[#allocation7 + $0x168] sm:$0xff]
    %v3548 = vld [vmem:[#allocation7 + $0x170] sm:$0xf]
    %v3549 = vld [vmem:[#allocation7 + $0x174] sm:$0xff]
    %v3550 = vld [vmem:[#allocation7 + $0x17c] sm:$0xf]
    %v3551 = vld [vmem:[#allocation7 + $0x180] sm:$0xff]
    %v3552 = vld [vmem:[#allocation7 + $0x188] sm:$0xf]
    %v3553 = vld [vmem:[#allocation7 + $0x18c] sm:$0xff]
    %v3554 = vld [vmem:[#allocation7 + $0x194] sm:$0xf]
    %v3555 = vld [vmem:[#allocation7 + $0x198] sm:$0xff]
    %v3556 = vld [vmem:[#allocation7 + $0x1a0] sm:$0xf]
    %v3557 = vld [vmem:[#allocation7 + $0x1a4] sm:$0xff]
    %v3558 = vld [vmem:[#allocation7 + $0x1ac] sm:$0xf]
    %v3559 = vld [vmem:[#allocation7 + $0x1b0] sm:$0xff]
    %v3560 = vld [vmem:[#allocation7 + $0x1b8] sm:$0xf]
    %v3561 = vld [vmem:[#allocation7 + $0x1bc] sm:$0xff]
    %v3562 = vld [vmem:[#allocation7 + $0x1c4] sm:$0xf]
    %v3563 = vld [vmem:[#allocation7 + $0x1c8] sm:$0xff]
    %v3564 = vld [vmem:[#allocation7 + $0x1d0] sm:$0xf]
    %v3565 = vld [vmem:[#allocation7 + $0x1d4] sm:$0xff]
    %v3566 = vld [vmem:[#allocation7 + $0x1dc] sm:$0xf]
    %v3567 = vld [vmem:[#allocation7 + $0x1e0] sm:$0xff]
    %v3568 = vld [vmem:[#allocation7 + $0x1e8] sm:$0xf]
    %v3569 = vld [vmem:[#allocation7 + $0x1ec] sm:$0xff]
    %v3570 = vld [vmem:[#allocation7 + $0x1f4] sm:$0xf]
    %v3571 = vld [vmem:[#allocation7 + $0x1f8] sm:$0xff]
    %v3572 = vld [vmem:[#allocation7 + $0x200] sm:$0xf]
    %v3573 = vld [vmem:[#allocation7 + $0x204] sm:$0xff]
    %v3574 = vld [vmem:[#allocation7 + $0x20c] sm:$0xf]
    %v3575 = vld [vmem:[#allocation7 + $0x210] sm:$0xff]
    %v3576 = vld [vmem:[#allocation7 + $0x218] sm:$0xf]
    %v3577 = vld [vmem:[#allocation7 + $0x21c] sm:$0xff]
    %v3578 = vld [vmem:[#allocation7 + $0x224] sm:$0xf]
    %v3579 = vld [vmem:[#allocation7 + $0x228] sm:$0xff]
    %v3580 = vld [vmem:[#allocation7 + $0x230] sm:$0xf]
    %v3581 = vld [vmem:[#allocation7 + $0x234] sm:$0xff]
    %v3582 = vld [vmem:[#allocation7 + $0x23c] sm:$0xf]
    %v3583 = vld [vmem:[%s3] sm:$0x7]
    %v3585 = vlaneseq
    %v3586 = vshrl.u32 %v3585, 7
    %v3587 = vsub.s32 0, %v3586
    %v3588 = vrot.slane %v3583, %v3587
    %v3589 = vlaneseq
    %v3590 = vshrl.u32 %v3589, 7
    %v3591 = vsub.s32 1, %v3590
    %v3592 = vrot.slane %v3583, %v3591
    %v3593 = vlaneseq
    %v3594 = vshrl.u32 %v3593, 7
    %v3595 = vsub.s32 2, %v3594
    %v3596 = vrot.slane %v3583, %v3595
    %v3696 = vunpack.c.l.b16 %v3487
    %v3697 = vunpack.c.h.b16 %v3487
    %v3698 = vunpack.c.l.b16 %v3488
    %v3699 = vunpack.c.l.b16 %v3489
    %v3700 = vunpack.c.h.b16 %v3489
    %v3701 = vunpack.c.l.b16 %v3490
    %v3702 = vunpack.c.l.b16 %v3491
    %v3703 = vunpack.c.h.b16 %v3491
    %v3704 = vunpack.c.l.b16 %v3492
    %v3705 = vunpack.c.l.b16 %v3493
    %v3706 = vunpack.c.h.b16 %v3493
    %v3707 = vunpack.c.l.b16 %v3494
    %v3708 = vunpack.c.l.b16 %v3495
    %v3709 = vunpack.c.h.b16 %v3495
    %v3710 = vunpack.c.l.b16 %v3496
    %v3711 = vunpack.c.l.b16 %v3497
    %v3712 = vunpack.c.h.b16 %v3497
    %v3713 = vunpack.c.l.b16 %v3498
    %v3714 = vunpack.c.l.b16 %v3499
    %v3715 = vunpack.c.h.b16 %v3499
    %v3716 = vunpack.c.l.b16 %v3500
    %v3717 = vunpack.c.l.b16 %v3501
    %v3718 = vunpack.c.h.b16 %v3501
    %v3719 = vunpack.c.l.b16 %v3502
    %v3720 = vunpack.c.l.b16 %v3503
    %v3721 = vunpack.c.h.b16 %v3503
    %v3722 = vunpack.c.l.b16 %v3504
    %v3723 = vunpack.c.l.b16 %v3505
    %v3724 = vunpack.c.h.b16 %v3505
    %v3725 = vunpack.c.l.b16 %v3506
    %v3726 = vunpack.c.l.b16 %v3507
    %v3727 = vunpack.c.h.b16 %v3507
    %v3728 = vunpack.c.l.b16 %v3508
    %v3729 = vunpack.c.l.b16 %v3509
    %v3730 = vunpack.c.h.b16 %v3509
    %v3731 = vunpack.c.l.b16 %v3510
    %v3732 = vunpack.c.l.b16 %v3511
    %v3733 = vunpack.c.h.b16 %v3511
    %v3734 = vunpack.c.l.b16 %v3512
    %v3735 = vunpack.c.l.b16 %v3513
    %v3736 = vunpack.c.h.b16 %v3513
    %v3737 = vunpack.c.l.b16 %v3514
    %v3738 = vunpack.c.l.b16 %v3515
    %v3739 = vunpack.c.h.b16 %v3515
    %v3740 = vunpack.c.l.b16 %v3516
    %v3741 = vunpack.c.l.b16 %v3517
    %v3742 = vunpack.c.h.b16 %v3517
    %v3743 = vunpack.c.l.b16 %v3518
    %v3744 = vunpack.c.l.b16 %v3519
    %v3745 = vunpack.c.h.b16 %v3519
    %v3746 = vunpack.c.l.b16 %v3520
    %v3747 = vunpack.c.l.b16 %v3521
    %v3748 = vunpack.c.h.b16 %v3521
    %v3749 = vunpack.c.l.b16 %v3522
    %v3750 = vunpack.c.l.b16 %v3523
    %v3751 = vunpack.c.h.b16 %v3523
    %v3752 = vunpack.c.l.b16 %v3524
    %v3753 = vunpack.c.l.b16 %v3525
    %v3754 = vunpack.c.h.b16 %v3525
    %v3755 = vunpack.c.l.b16 %v3526
    %v3756 = vunpack.c.l.b16 %v3527
    %v3757 = vunpack.c.h.b16 %v3527
    %v3758 = vunpack.c.l.b16 %v3528
    %v3759 = vunpack.c.l.b16 %v3529
    %v3760 = vunpack.c.h.b16 %v3529
    %v3761 = vunpack.c.l.b16 %v3530
    %v3762 = vunpack.c.l.b16 %v3531
    %v3763 = vunpack.c.h.b16 %v3531
    %v3764 = vunpack.c.l.b16 %v3532
    %v3765 = vunpack.c.l.b16 %v3533
    %v3766 = vunpack.c.h.b16 %v3533
    %v3767 = vunpack.c.l.b16 %v3534
    %v3768 = vunpack.c.l.b16 %v3535
    %v3769 = vunpack.c.h.b16 %v3535
    %v3770 = vunpack.c.l.b16 %v3536
    %v3771 = vunpack.c.l.b16 %v3537
    %v3772 = vunpack.c.h.b16 %v3537
    %v3773 = vunpack.c.l.b16 %v3538
    %v3774 = vunpack.c.l.b16 %v3539
    %v3775 = vunpack.c.h.b16 %v3539
    %v3776 = vunpack.c.l.b16 %v3540
    %v3777 = vunpack.c.l.b16 %v3541
    %v3778 = vunpack.c.h.b16 %v3541
    %v3779 = vunpack.c.l.b16 %v3542
    %v3780 = vunpack.c.l.b16 %v3543
    %v3781 = vunpack.c.h.b16 %v3543
    %v3782 = vunpack.c.l.b16 %v3544
    %v3783 = vunpack.c.l.b16 %v3545
    %v3784 = vunpack.c.h.b16 %v3545
    %v3785 = vunpack.c.l.b16 %v3546
    %v3786 = vunpack.c.l.b16 %v3547
    %v3787 = vunpack.c.h.b16 %v3547
    %v3788 = vunpack.c.l.b16 %v3548
    %v3789 = vunpack.c.l.b16 %v3549
    %v3790 = vunpack.c.h.b16 %v3549
    %v3791 = vunpack.c.l.b16 %v3550
    %v3792 = vunpack.c.l.b16 %v3551
    %v3793 = vunpack.c.h.b16 %v3551
    %v3794 = vunpack.c.l.b16 %v3552
    %v3795 = vunpack.c.l.b16 %v3553
    %v3796 = vunpack.c.h.b16 %v3553
    %v3797 = vunpack.c.l.b16 %v3554
    %v3798 = vunpack.c.l.b16 %v3555
    %v3799 = vunpack.c.h.b16 %v3555
    %v3800 = vunpack.c.l.b16 %v3556
    %v3801 = vunpack.c.l.b16 %v3557
    %v3802 = vunpack.c.h.b16 %v3557
    %v3803 = vunpack.c.l.b16 %v3558
    %v3804 = vunpack.c.l.b16 %v3559
    %v3805 = vunpack.c.h.b16 %v3559
    %v3806 = vunpack.c.l.b16 %v3560
    %v3807 = vunpack.c.l.b16 %v3561
    %v3808 = vunpack.c.h.b16 %v3561
    %v3809 = vunpack.c.l.b16 %v3562
    %v3810 = vunpack.c.l.b16 %v3563
    %v3811 = vunpack.c.h.b16 %v3563
    %v3812 = vunpack.c.l.b16 %v3564
    %v3813 = vunpack.c.l.b16 %v3565
    %v3814 = vunpack.c.h.b16 %v3565
    %v3815 = vunpack.c.l.b16 %v3566
    %v3816 = vunpack.c.l.b16 %v3567
    %v3817 = vunpack.c.h.b16 %v3567
    %v3818 = vunpack.c.l.b16 %v3568
    %v3819 = vunpack.c.l.b16 %v3569
    %v3820 = vunpack.c.h.b16 %v3569
    %v3821 = vunpack.c.l.b16 %v3570
    %v3822 = vunpack.c.l.b16 %v3571
    %v3823 = vunpack.c.h.b16 %v3571
    %v3824 = vunpack.c.l.b16 %v3572
    %v3825 = vunpack.c.l.b16 %v3573
    %v3826 = vunpack.c.h.b16 %v3573
    %v3827 = vunpack.c.l.b16 %v3574
    %v3828 = vunpack.c.l.b16 %v3575
    %v3829 = vunpack.c.h.b16 %v3575
    %v3830 = vunpack.c.l.b16 %v3576
    %v3831 = vunpack.c.l.b16 %v3577
    %v3832 = vunpack.c.h.b16 %v3577
    %v3833 = vunpack.c.l.b16 %v3578
    %v3834 = vunpack.c.l.b16 %v3579
    %v3835 = vunpack.c.h.b16 %v3579
    %v3836 = vunpack.c.l.b16 %v3580
    %v3837 = vunpack.c.l.b16 %v3581
    %v3838 = vunpack.c.h.b16 %v3581
    %v3839 = vunpack.c.l.b16 %v3582
    %v3840 = vpack.c.b16 %v3699, %v3696
    %v3841 = vpack.c.b16 %v3700, %v3697
    %v3842 = vpack.c.b16 %v3701, %v3698
    %v3843 = vpack.c.b16 %v3705, %v3702
    %v3844 = vpack.c.b16 %v3706, %v3703
    %v3845 = vpack.c.b16 %v3707, %v3704
    %v3846 = vpack.c.b16 %v3711, %v3708
    %v3847 = vpack.c.b16 %v3712, %v3709
    %v3848 = vpack.c.b16 %v3713, %v3710
    %v3849 = vpack.c.b16 %v3717, %v3714
    %v3850 = vpack.c.b16 %v3718, %v3715
    %v3851 = vpack.c.b16 %v3719, %v3716
    %v3852 = vpack.c.b16 %v3723, %v3720
    %v3853 = vpack.c.b16 %v3724, %v3721
    %v3854 = vpack.c.b16 %v3725, %v3722
    %v3855 = vpack.c.b16 %v3729, %v3726
    %v3856 = vpack.c.b16 %v3730, %v3727
    %v3857 = vpack.c.b16 %v3731, %v3728
    %v3858 = vpack.c.b16 %v3735, %v3732
    %v3859 = vpack.c.b16 %v3736, %v3733
    %v3860 = vpack.c.b16 %v3737, %v3734
    %v3861 = vpack.c.b16 %v3741, %v3738
    %v3862 = vpack.c.b16 %v3742, %v3739
    %v3863 = vpack.c.b16 %v3743, %v3740
    %v3864 = vpack.c.b16 %v3747, %v3744
    %v3865 = vpack.c.b16 %v3748, %v3745
    %v3866 = vpack.c.b16 %v3749, %v3746
    %v3867 = vpack.c.b16 %v3753, %v3750
    %v3868 = vpack.c.b16 %v3754, %v3751
    %v3869 = vpack.c.b16 %v3755, %v3752
    %v3870 = vpack.c.b16 %v3759, %v3756
    %v3871 = vpack.c.b16 %v3760, %v3757
    %v3872 = vpack.c.b16 %v3761, %v3758
    %v3873 = vpack.c.b16 %v3765, %v3762
    %v3874 = vpack.c.b16 %v3766, %v3763
    %v3875 = vpack.c.b16 %v3767, %v3764
    %v3876 = vpack.c.b16 %v3771, %v3768
    %v3877 = vpack.c.b16 %v3772, %v3769
    %v3878 = vpack.c.b16 %v3773, %v3770
    %v3879 = vpack.c.b16 %v3777, %v3774
    %v3880 = vpack.c.b16 %v3778, %v3775
    %v3881 = vpack.c.b16 %v3779, %v3776
    %v3882 = vpack.c.b16 %v3783, %v3780
    %v3883 = vpack.c.b16 %v3784, %v3781
    %v3884 = vpack.c.b16 %v3785, %v3782
    %v3885 = vpack.c.b16 %v3789, %v3786
    %v3886 = vpack.c.b16 %v3790, %v3787
    %v3887 = vpack.c.b16 %v3791, %v3788
    %v3888 = vpack.c.b16 %v3795, %v3792
    %v3889 = vpack.c.b16 %v3796, %v3793
    %v3890 = vpack.c.b16 %v3797, %v3794
    %v3891 = vpack.c.b16 %v3801, %v3798
    %v3892 = vpack.c.b16 %v3802, %v3799
    %v3893 = vpack.c.b16 %v3803, %v3800
    %v3894 = vpack.c.b16 %v3807, %v3804
    %v3895 = vpack.c.b16 %v3808, %v3805
    %v3896 = vpack.c.b16 %v3809, %v3806
    %v3897 = vpack.c.b16 %v3813, %v3810
    %v3898 = vpack.c.b16 %v3814, %v3811
    %v3899 = vpack.c.b16 %v3815, %v3812
    %v3900 = vpack.c.b16 %v3819, %v3816
    %v3901 = vpack.c.b16 %v3820, %v3817
    %v3902 = vpack.c.b16 %v3821, %v3818
    %v3903 = vpack.c.b16 %v3825, %v3822
    %v3904 = vpack.c.b16 %v3826, %v3823
    %v3905 = vpack.c.b16 %v3827, %v3824
    %v3906 = vpack.c.b16 %v3831, %v3828
    %v3907 = vpack.c.b16 %v3832, %v3829
    %v3908 = vpack.c.b16 %v3833, %v3830
    %v3909 = vpack.c.b16 %v3837, %v3834
    %v3910 = vpack.c.b16 %v3838, %v3835
    %v3911 = vpack.c.b16 %v3839, %v3836
    %3984 = vmatprep.subr.bf16.mxu0 %v3862
    %3985 = vmatpush1.bf16.msra.mxu0 %v3861
    %3986 = vmatprep.subr.bf16.mxu0 %v3859
    %3987 = vmatpush1.bf16.msra.mxu0 %v3858
    %3988 = vmatprep.subr.bf16.mxu0 %v3856
    %3989 = vmatpush1.bf16.msra.mxu0 %v3855
    %3990 = vmatprep.subr.bf16.mxu0 %v3853
    %3991 = vmatpush1.bf16.msra.mxu0 %v3852
    %3992 = vmatprep.subr.bf16.mxu0 %v3850
    %3993 = vmatpush1.bf16.msra.mxu0 %v3849
    %3994 = vmatprep.subr.bf16.mxu0 %v3847
    %3995 = vmatpush1.bf16.msra.mxu0 %v3846
    %3996 = vmatprep.subr.bf16.mxu0 %v3844
    %3997 = vmatpush1.bf16.msra.mxu0 %v3843
    %3998 = vmatprep.subr.bf16.mxu0 %v3841
    %3999 = vmatpush1.bf16.msra.mxu0 %v3840
    %4000 = vmatprep.subr.bf16.mxu0 %v3886
    %4001 = vmatpush2.bf16.msra.mxu0 %v3885
    %4002 = vmatprep.subr.bf16.mxu0 %v3883
    %4003 = vmatpush2.bf16.msra.mxu0 %v3882
    %4004 = vmatprep.subr.bf16.mxu0 %v3880
    %4005 = vmatpush2.bf16.msra.mxu0 %v3879
    %4006 = vmatprep.subr.bf16.mxu0 %v3877
    %4007 = vmatpush2.bf16.msra.mxu0 %v3876
    %4008 = vmatprep.subr.bf16.mxu0 %v3874
    %4009 = vmatpush2.bf16.msra.mxu0 %v3873
    %4010 = vmatprep.subr.bf16.mxu0 %v3871
    %4011 = vmatpush2.bf16.msra.mxu0 %v3870
    %4012 = vmatprep.subr.bf16.mxu0 %v3868
    %4013 = vmatpush2.bf16.msra.mxu0 %v3867
    %4014 = vmatprep.subr.bf16.mxu0 %v3865
    %4015 = vmatpush2.bf16.msra.mxu0 %v3864
    %4016 = vmatprep.mubr.bf16.mxu0 %v2740
    %4017 = vmatmul.mubr.bf16.gmra.mxu0 %v2736
    %v4018 = vpop.f32.mrf.mxu0
    %v4019 = vadd.f32 %v3588, %v4018
    %v4020 = vpop.f32.mrf.mxu0
    %v4021 = vadd.f32 %v3592, %v4020
    %v4022 = vpop.f32.mrf.mxu0
    %v4023 = vadd.f32 %v3588, %v4022
    %v4024 = vpop.f32.mrf.mxu0
    %v4025 = vadd.f32 %v3592, %v4024
    %4026 = vmatprep.mubr.bf16.mxu0 %v3481
    %4027 = vmatmul.mubr.bf16.gmra.mxu0 %v3477
    %v4028 = vpop.f32.mrf.mxu0
    %v4029 = vadd.f32 %v3588, %v4028
    %v4030 = vpop.f32.mrf.mxu0
    %v4031 = vadd.f32 %v3592, %v4030
    %v4032 = vpop.f32.mrf.mxu0
    %v4033 = vadd.f32 %v3588, %v4032
    %v4034 = vpop.f32.mrf.mxu0
    %v4035 = vadd.f32 %v3592, %v4034
    %4036 = vdwg.mxu0
    %4037 = vmatprep.subr.bf16.mxu0 %v3910
    %4038 = vmatpush1.bf16.msra.mxu0 %v3909
    %4039 = vmatprep.subr.bf16.mxu0 %v3907
    %4040 = vmatpush1.bf16.msra.mxu0 %v3906
    %4041 = vmatprep.subr.bf16.mxu0 %v3904
    %4042 = vmatpush1.bf16.msra.mxu0 %v3903
    %4043 = vmatprep.subr.bf16.mxu0 %v3901
    %4044 = vmatpush1.bf16.msra.mxu0 %v3900
    %4045 = vmatprep.subr.bf16.mxu0 %v3898
    %4046 = vmatpush1.bf16.msra.mxu0 %v3897
    %4047 = vmatprep.subr.bf16.mxu0 %v3895
    %4048 = vmatpush1.bf16.msra.mxu0 %v3894
    %4049 = vmatprep.subr.bf16.mxu0 %v3892
    %4050 = vmatpush1.bf16.msra.mxu0 %v3891
    %4051 = vmatprep.subr.bf16.mxu0 %v3889
    %4052 = vmatpush1.bf16.msra.mxu0 %v3888
    %4053 = vmatprep.subr.bf16.mxu0 0
    %4054 = vmatpush2.bf16.msra.mxu0 0
    %4055 = vmatprep.subr.bf16.mxu0 0
    %4056 = vmatpush2.bf16.msra.mxu0 0
    %4057 = vmatprep.subr.bf16.mxu0 0
    %4058 = vmatpush2.bf16.msra.mxu0 0
    %4059 = vmatprep.subr.bf16.mxu0 0
    %4060 = vmatpush2.bf16.msra.mxu0 0
    %4061 = vmatprep.subr.bf16.mxu0 0
    %4062 = vmatpush2.bf16.msra.mxu0 0
    %4063 = vmatprep.subr.bf16.mxu0 0
    %4064 = vmatpush2.bf16.msra.mxu0 0
    %4065 = vmatprep.subr.bf16.mxu0 0
    %4066 = vmatpush2.bf16.msra.mxu0 0
    %4067 = vmatprep.subr.bf16.mxu0 0
    %4068 = vmatpush2.bf16.msra.mxu0 0
    %4069 = vmatprep.mubr.bf16.mxu0 0
    %4070 = vmatmul.mubr.bf16.gmra.mxu0 %v2744
    %v4071 = vpop.f32.mrf.mxu0
    %v4072 = vadd.f32 %v4019, %v4071
    %v4073 = vpop.f32.mrf.mxu0
    %v4074 = vadd.f32 %v4021, %v4073
    %v4075 = vpop.f32.mrf.mxu0
    %v4076 = vadd.f32 %v4023, %v4075
    %v4077 = vpop.f32.mrf.mxu0
    %v4078 = vadd.f32 %v4025, %v4077
    %4079 = vmatprep.mubr.bf16.mxu0 0
    %4080 = vmatmul.mubr.bf16.gmra.mxu0 %v3485
    %v4081 = vpop.f32.mrf.mxu0
    %v4082 = vadd.f32 %v4029, %v4081
    %v4083 = vpop.f32.mrf.mxu0
    %v4084 = vadd.f32 %v4031, %v4083
    %v4085 = vpop.f32.mrf.mxu0
    %v4086 = vadd.f32 %v4033, %v4085
    %v4087 = vpop.f32.mrf.mxu0
    %v4088 = vadd.f32 %v4035, %v4087
    %4089 = vdwg.mxu0
    %4090 = vmatprep.subr.bf16.mxu0 0
    %4091 = vmatpush1.bf16.msra.mxu0 %v3863
    %4092 = vmatprep.subr.bf16.mxu0 0
    %4093 = vmatpush1.bf16.msra.mxu0 %v3860
    %4094 = vmatprep.subr.bf16.mxu0 0
    %4095 = vmatpush1.bf16.msra.mxu0 %v3857
    %4096 = vmatprep.subr.bf16.mxu0 0
    %4097 = vmatpush1.bf16.msra.mxu0 %v3854
    %4098 = vmatprep.subr.bf16.mxu0 0
    %4099 = vmatpush1.bf16.msra.mxu0 %v3851
    %4100 = vmatprep.subr.bf16.mxu0 0
    %4101 = vmatpush1.bf16.msra.mxu0 %v3848
    %4102 = vmatprep.subr.bf16.mxu0 0
    %4103 = vmatpush1.bf16.msra.mxu0 %v3845
    %4104 = vmatprep.subr.bf16.mxu0 0
    %4105 = vmatpush1.bf16.msra.mxu0 %v3842
    %4106 = vmatprep.subr.bf16.mxu0 0
    %4107 = vmatpush2.bf16.msra.mxu0 %v3887
    %4108 = vmatprep.subr.bf16.mxu0 0
    %4109 = vmatpush2.bf16.msra.mxu0 %v3884
    %4110 = vmatprep.subr.bf16.mxu0 0
    %4111 = vmatpush2.bf16.msra.mxu0 %v3881
    %4112 = vmatprep.subr.bf16.mxu0 0
    %4113 = vmatpush2.bf16.msra.mxu0 %v3878
    %4114 = vmatprep.subr.bf16.mxu0 0
    %4115 = vmatpush2.bf16.msra.mxu0 %v3875
    %4116 = vmatprep.subr.bf16.mxu0 0
    %4117 = vmatpush2.bf16.msra.mxu0 %v3872
    %4118 = vmatprep.subr.bf16.mxu0 0
    %4119 = vmatpush2.bf16.msra.mxu0 %v3869
    %4120 = vmatprep.subr.bf16.mxu0 0
    %4121 = vmatpush2.bf16.msra.mxu0 %v3866
    %4122 = vmatprep.mubr.bf16.mxu0 %v2740
    %4123 = vmatmul.mubr.bf16.gmra.mxu0 %v2736
    %v4124 = vpop.f32.mrf.mxu0
    %v4125 = vadd.f32 %v3596, %v4124
    %v4126 = vpop.f32.mrf.mxu0
    %v4127 = vpop.f32.mrf.mxu0
    %v4128 = vadd.f32 %v3596, %v4127
    %v4129 = vpop.f32.mrf.mxu0
    %4130 = vmatprep.mubr.bf16.mxu0 %v3481
    %4131 = vmatmul.mubr.bf16.gmra.mxu0 %v3477
    %v4132 = vpop.f32.mrf.mxu0
    %v4133 = vadd.f32 %v3596, %v4132
    %v4134 = vpop.f32.mrf.mxu0
    %v4135 = vpop.f32.mrf.mxu0
    %v4136 = vadd.f32 %v3596, %v4135
    %v4137 = vpop.f32.mrf.mxu0
    %4138 = vdwg.mxu0
    %4139 = vmatprep.subr.bf16.mxu0 0
    %4140 = vmatpush1.bf16.msra.mxu0 %v3911
    %4141 = vmatprep.subr.bf16.mxu0 0
    %4142 = vmatpush1.bf16.msra.mxu0 %v3908
    %4143 = vmatprep.subr.bf16.mxu0 0
    %4144 = vmatpush1.bf16.msra.mxu0 %v3905
    %4145 = vmatprep.subr.bf16.mxu0 0
    %4146 = vmatpush1.bf16.msra.mxu0 %v3902
    %4147 = vmatprep.subr.bf16.mxu0 0
    %4148 = vmatpush1.bf16.msra.mxu0 %v3899
    %4149 = vmatprep.subr.bf16.mxu0 0
    %4150 = vmatpush1.bf16.msra.mxu0 %v3896
    %4151 = vmatprep.subr.bf16.mxu0 0
    %4152 = vmatpush1.bf16.msra.mxu0 %v3893
    %4153 = vmatprep.subr.bf16.mxu0 0
    %4154 = vmatpush1.bf16.msra.mxu0 %v3890
    %4155 = vmatprep.subr.bf16.mxu0 0
    %4156 = vmatpush2.bf16.msra.mxu0 0
    %4157 = vmatprep.subr.bf16.mxu0 0
    %4158 = vmatpush2.bf16.msra.mxu0 0
    %4159 = vmatprep.subr.bf16.mxu0 0
    %4160 = vmatpush2.bf16.msra.mxu0 0
    %4161 = vmatprep.subr.bf16.mxu0 0
    %4162 = vmatpush2.bf16.msra.mxu0 0
    %4163 = vmatprep.subr.bf16.mxu0 0
    %4164 = vmatpush2.bf16.msra.mxu0 0
    %4165 = vmatprep.subr.bf16.mxu0 0
    %4166 = vmatpush2.bf16.msra.mxu0 0
    %4167 = vmatprep.subr.bf16.mxu0 0
    %4168 = vmatpush2.bf16.msra.mxu0 0
    %4169 = vmatprep.subr.bf16.mxu0 0
    %4170 = vmatpush2.bf16.msra.mxu0 0
    %4171 = vmatprep.mubr.bf16.mxu0 0
    %4172 = vmatmul.mubr.bf16.gmra.mxu0 %v2744
    %v4173 = vpop.f32.mrf.mxu0
    %v4174 = vadd.f32 %v4125, %v4173
    %v4175 = vpop.f32.mrf.mxu0
    %v4176 = vpop.f32.mrf.mxu0
    %v4177 = vadd.f32 %v4128, %v4176
    %v4178 = vpop.f32.mrf.mxu0
    %4179 = vmatprep.mubr.bf16.mxu0 0
    %4180 = vmatmul.mubr.bf16.gmra.mxu0 %v3485
    %v4181 = vpop.f32.mrf.mxu0
    %v4182 = vadd.f32 %v4133, %v4181
    %v4183 = vpop.f32.mrf.mxu0
    %v4184 = vpop.f32.mrf.mxu0
    %v4185 = vadd.f32 %v4136, %v4184
    %v4186 = vpop.f32.mrf.mxu0
    %4187 = vdwg.mxu0
    %4188 = vst [vmem:[#allocation10] sm:$0xff] %v4072
    %4189 = vst [vmem:[#allocation10 + $0x8] sm:$0xff] %v4074
    %4190 = vst [vmem:[#allocation10 + $0x10] sm:$0xff] %v4174
    %4191 = vst [vmem:[#allocation10 + $0x18] sm:$0xff] %v4076
    %4192 = vst [vmem:[#allocation10 + $0x20] sm:$0xff] %v4078
    %4193 = vst [vmem:[#allocation10 + $0x28] sm:$0xff] %v4177
    %4194 = vst [vmem:[#allocation10 + $0x30] sm:$0xff] %v4082
    %4195 = vst [vmem:[#allocation10 + $0x38] sm:$0xff] %v4084
    %4196 = vst [vmem:[#allocation10 + $0x40] sm:$0xff] %v4182
    %4197 = vst [vmem:[#allocation10 + $0x48] sm:$0xff] %v4086
    %4198 = vst [vmem:[#allocation10 + $0x50] sm:$0xff] %v4088
    %4199 = vst [vmem:[#allocation10 + $0x58] sm:$0xff] %v4185
    // Predicated region
    $region38: #{tpu_custom_call.1} parent=1 // pred_check
      _
    $region39: #{tpu_custom_call.1} parent=1 // pred_check_branch
      %4201 = sbr.rel (0) target = $region41
    $region40: #{tpu_custom_call.1} parent=1 // pred_region
      %s4203 = ssub.s32 1536, 1536
      %4204 = vsyncadd [#allocation4], %s4203
      %s4205 = sshll.u32 [#allocation10], 4
      %s4206 = int_to_ptr.vmem [resolvable:$true] %s4205
      %4211 = dma.vmem_to_hbm [thread:$0]  %s4206, 1536, %s5, [#allocation4], 384, 384, 24
    $region41: #{tpu_custom_call.1} parent=1 // pred_fallthru
      _
    // Predicated region
    $region42: #{tpu_custom_call.1} parent=1 // pred_check
      _
    $region43: #{tpu_custom_call.1} parent=1 // pred_check_branch
      %4213 = sbr.rel (0) target = $region45
    $region44: #{tpu_custom_call.1} parent=1 // pred_region
      %4214 = dma.done [#allocation4], 1536
    $region45: #{tpu_custom_call.1} parent=1 // pred_fallthru
      _
    %4215 = vsyncpa [#allocation3], 1
    %4216 = vsyncpa [#allocation6], 1
    %4217 = vsyncpa [#allocation9], 1
    %4218 = vsyncpa [#allocation4], 1

</llo_original>
